<compile_context>
chip_gen: v6e
topology: v6e:2x2x1
jax: 0.10.0
libtpu: 0.0.40
codegen_flags: <defaults>
</compile_context>

<pallas_src>
import functools
import math

import jax
import jax.numpy as jnp
from jax.experimental import pallas as pl
from jax.experimental.pallas import tpu as pltpu

F32 = jnp.float32
BF16 = jnp.bfloat16
_VMEM = pl.BlockSpec(memory_space=pltpu.MemorySpace.VMEM)
_SMEM = pl.BlockSpec(memory_space=pltpu.MemorySpace.SMEM)


def _round_up(x, m):
    return (x + m - 1) // m * m


def _pad_axes(x, pad_widths):
    """jnp.pad that is a no-op (no extra HBM copy) when every width is 0."""
    if any(p for pair in pad_widths for p in pair):
        return jnp.pad(x, pad_widths)
    return x


def _vmem_limit_bytes():
    """Generation-aware scoped-VMEM limit (~half of physical, >= 32 MiB)."""
    default = 32 * 1024 * 1024
    try:
        cap = getattr(pltpu.get_tpu_info(), "vmem_capacity_bytes", None)
        if not cap:
            return default
        return int(min(max(cap // 2, default), 100 * 1024 * 1024))
    except Exception:
        return default


_VMEM_LIMIT = _vmem_limit_bytes()


# ---------------------------------------------------------------------------
# Pallas kernel 1: block-complex matmul (+bias, optional tanh epilogue)
# ---------------------------------------------------------------------------
def _bcmm_kernel(w_ref, x_ref, b_ref, or_ref, oi_ref, *, rh, apply_tanh):
    """acc = W_block @ X_block + bias; real rows -> or_ref, imag rows -> oi_ref."""
    acc = jnp.dot(w_ref[...], x_ref[...], preferred_element_type=jnp.float32)
    acc = acc + b_ref[...]                    # (2Rh,1) lane-broadcast
    if apply_tanh:
        acc = jnp.tanh(acc)
    or_ref[...] = acc[:rh, :]
    oi_ref[...] = acc[rh:, :]


def block_complex_matmul(wr, wi, xr, xi, br, bi, apply_tanh=False, tile_m=1024):
    """Complex (R,K)x(K,M) matmul as ONE real MXU matmul.

    W_block = [[Wr, -Wi], [Wi, Wr]]  (2Rh, Kp)   (weights duplicated: tiny)
    X_block = [Xr; Xi]               (Kp, M)     (activations stacked once)
    out     = W_block @ X_block  ->  real rows [0:Rh), imag rows [Rh:2Rh)

    Big M dimension (B*Ho*Wo / T*B) maps to lanes -> lane-dense stores.
    Kp only rounds to 16 (blocks equal full array extents -> (8,128) exempt).
    """
    R, K = wr.shape
    _, M = xr.shape
    Rh = _round_up(R, 8)              # sublane-aligned half split
    Kp = _round_up(2 * K, 16)         # contraction dim: 16 is enough
    Mt = min(tile_m, _round_up(M, 128))
    Mp = _round_up(M, Mt)

    w_top = _pad_axes(jnp.concatenate([wr, -wi], axis=1),
                      ((0, Rh - R), (0, Kp - 2 * K)))
    w_bot = _pad_axes(jnp.concatenate([wi, wr], axis=1),
                      ((0, Rh - R), (0, Kp - 2 * K)))
    wb = jnp.concatenate([w_top, w_bot], axis=0).astype(BF16)       # (2Rh, Kp)
    xb = _pad_axes(jnp.concatenate([xr, xi], axis=0),
                   ((0, Kp - 2 * K), (0, Mp - M))).astype(BF16)     # (Kp, Mp)
    bb = jnp.concatenate([jnp.pad(br, (0, Rh - R)),
                          jnp.pad(bi, (0, Rh - R))]).reshape(2 * Rh, 1).astype(F32)

    out_sds = jax.ShapeDtypeStruct((Rh, Mp), F32)
    o_spec = pl.BlockSpec((Rh, Mt), lambda i: (0, i))
    out_r, out_i = pl.pallas_call(
        functools.partial(_bcmm_kernel, rh=Rh, apply_tanh=apply_tanh),
        out_shape=(out_sds, out_sds),
        grid=(Mp // Mt,),
        in_specs=[
            pl.BlockSpec((2 * Rh, Kp), lambda i: (0, 0)),
            pl.BlockSpec((Kp, Mt), lambda i: (0, i)),
            pl.BlockSpec((2 * Rh, 1), lambda i: (0, 0)),
        ],
        out_specs=(o_spec, o_spec),
        compiler_params=pltpu.CompilerParams(
            dimension_semantics=("parallel",),
            vmem_limit_bytes=_VMEM_LIMIT),
    )(wb, xb, bb)
    return out_r[:R, :M], out_i[:R, :M]


# ---------------------------------------------------------------------------
# Pallas kernel 2: fused complex batch-norm (batch statistics) + PReLU
# ---------------------------------------------------------------------------
def _cbn_prelu_kernel(xr_ref, xi_ref, grr_ref, gri_ref, gii_ref,
                      br_ref, bi_ref, alpha_ref, yr_ref, yi_ref):
    """Complex BN (batch stats over axis 0, 2x2 whitening) + PReLU, fused.

    Statistics are per (C,H,W) location over the batch axis, matching
    ComplexBatchNormal(C, H, W) of the reference model (train=True path).
    """
    eps = 1e-5
    a = alpha_ref[0]                         # PReLU slope from SMEM
    xr, xi = xr_ref[...], xi_ref[...]
    mu_r = jnp.mean(xr, axis=0, keepdims=True)
    mu_i = jnp.mean(xi, axis=0, keepdims=True)
    xrc = xr - mu_r
    xic = xi - mu_i
    vrr = jnp.mean(xrc * xrc, axis=0, keepdims=True) + eps
    vii = jnp.mean(xic * xic, axis=0, keepdims=True) + eps
    vri = jnp.mean(xrc * xic, axis=0, keepdims=True)
    tau = vrr + vii
    delta = vrr * vii - vri * vri
    s = jnp.sqrt(delta)
    # 1/(sqrt(delta)*sqrt(tau+2s)) via a single rsqrt (EUP slot, ~free)
    inv_st = jax.lax.rsqrt(delta * (tau + 2.0 * s))
    wrr = (vii + s) * inv_st
    wii = (vrr + s) * inv_st
    wri = -vri * inv_st
    xhr = wrr * xrc + wri * xic
    xhi = wri * xrc + wii * xic
    yr = grr_ref[...] * xhr + gri_ref[...] * xhi + br_ref[...]
    yi = gri_ref[...] * xhr + gii_ref[...] * xhi + bi_ref[...]
    yr_ref[...] = jnp.where(yr >= 0.0, yr, a * yr)
    yi_ref[...] = jnp.where(yi >= 0.0, yi, a * yi)


def complex_bn_prelu(xr, xi, bn, alpha):
    B, C, H, W = xr.shape
    N = C * H * W
    Nt = min(2048, _round_up(N, 128))   # stats are per-location -> lane-parallel
    Np = _round_up(N, Nt)
    pad_x = lambda x: _pad_axes(x.reshape(B, N), ((0, 0), (0, Np - N)))
    pad_p = lambda p: _pad_axes(p.reshape(1, N), ((0, 0), (0, Np - N)))
    alpha_arr = jnp.asarray(alpha, F32).reshape(1)
    out_sds = jax.ShapeDtypeStruct((B, Np), F32)
    x_spec = pl.BlockSpec((B, Nt), lambda i: (0, i))
    p_spec = pl.BlockSpec((1, Nt), lambda i: (0, i))
    yr, yi = pl.pallas_call(
        _cbn_prelu_kernel,
        out_shape=(out_sds, out_sds),
        grid=(Np // Nt,),
        in_specs=[x_spec, x_spec, p_spec, p_spec, p_spec, p_spec, p_spec, _SMEM],
        out_specs=(x_spec, x_spec),
        compiler_params=pltpu.CompilerParams(
            dimension_semantics=("parallel",),
            vmem_limit_bytes=_VMEM_LIMIT),
    )(pad_x(xr), pad_x(xi),
      pad_p(bn['grr']), pad_p(bn['gri']), pad_p(bn['gii']),
      pad_p(bn['br']), pad_p(bn['bi']), alpha_arr)
    return yr[:, :N].reshape(B, C, H, W), yi[:, :N].reshape(B, C, H, W)


# ---------------------------------------------------------------------------
# Pallas kernel 3: merged complex LSTM (real + imag recurrences interleaved)
# ---------------------------------------------------------------------------
def _complex_lstm_kernel(x_ref, wih_r_ref, whh_r_ref, b_r_ref,
                         wih_i_ref, whh_i_ref, b_i_ref,
                         or_ref, oi_ref,
                         xp_r, xp_i, h_r, c_r, h_i, c_i):
    """x:(T*Bp,Ip) f32  wih:(Ip,4Hp) whh:(Hp,4Hp) b:(1,4Hp) f32.
    Gate order i,f,g,o; each gate owns an Hp-lane block.  Both recurrences
    (real/imag weight sets) are advanced inside the same time loop so the two
    independent h@Whh dots + EUP nonlinearities overlap.
    """
    Bp, Hp = h_r.shape
    T = or_ref.shape[0]

    x = x_ref[...]
    # Hoisted: input projection + bias for ALL timesteps, one MXU call each.
    xp_r[...] = jnp.dot(x, wih_r_ref[...],
                        preferred_element_type=jnp.float32) + b_r_ref[...]
    xp_i[...] = jnp.dot(x, wih_i_ref[...],
                        preferred_element_type=jnp.float32) + b_i_ref[...]
    h_r[...] = jnp.zeros_like(h_r)
    c_r[...] = jnp.zeros_like(c_r)
    h_i[...] = jnp.zeros_like(h_i)
    c_i[...] = jnp.zeros_like(c_i)

    def gates(z, c_prev):
        i_g = jax.nn.sigmoid(z[:, 0 * Hp:1 * Hp])
        f_g = jax.nn.sigmoid(z[:, 1 * Hp:2 * Hp])
        g_g = jnp.tanh(z[:, 2 * Hp:3 * Hp])
        o_g = jax.nn.sigmoid(z[:, 3 * Hp:4 * Hp])
        c_new = f_g * c_prev + i_g * g_g
        h_new = o_g * jnp.tanh(c_new)
        return h_new, c_new

    @pl.loop(0, T)
    def _(t):
        row = pl.multiple_of(t * Bp, Bp)
        z_r = xp_r[pl.ds(row, Bp), :] + jnp.dot(
            h_r[...], whh_r_ref[...], preferred_element_type=jnp.float32)
        z_i = xp_i[pl.ds(row, Bp), :] + jnp.dot(
            h_i[...], whh_i_ref[...], preferred_element_type=jnp.float32)
        hr_new, cr_new = gates(z_r, c_r[...])
        hi_new, ci_new = gates(z_i, c_i[...])
        h_r[...] = hr_new
        c_r[...] = cr_new
        h_i[...] = hi_new
        c_i[...] = ci_new
        or_ref[t] = hr_new
        oi_ref[t] = hi_new


def _pack_lstm(ph, Ip, Hp):
    """(4,I,H)/(4,H,H)/(4,1,H) -> gate-packed, padded (Ip,4Hp)/(Hp,4Hp)/(1,4Hp)."""
    I = ph['wih'].shape[1]
    H = ph['wih'].shape[2]
    wih = jnp.zeros((Ip, 4 * Hp), F32)
    whh = jnp.zeros((Hp, 4 * Hp), F32)
    b = jnp.zeros((1, 4 * Hp), F32)
    for k in range(4):
        wih = wih.at[:I, k * Hp:k * Hp + H].set(ph['wih'][k])
        whh = whh.at[:H, k * Hp:k * Hp + H].set(ph['whh'][k])
        b = b.at[:, k * Hp:k * Hp + H].set(ph['b'][k])
    return wih, whh, b


def complex_lstm(xr, xi, p):
    """ONE pallas_call for the whole complex LSTM: xr/xi stacked along batch,
    real/imag recurrences interleaved inside the kernel (f32 throughout).
    """
    T, B, I = xr.shape
    H = p['real']['whh'].shape[2]
    Bx = 2 * B
    Bp = _round_up(Bx, 8)
    Ip = _round_up(I, 128)
    Hp = _round_up(H, 128)
    wih_r, whh_r, b_r = _pack_lstm(p['real'], Ip, Hp)
    wih_i, whh_i, b_i = _pack_lstm(p['imag'], Ip, Hp)
    x_cat = jnp.concatenate([xr, xi], axis=1)                       # (T, 2B, I)
    x2d = _pad_axes(x_cat, ((0, 0), (0, Bp - Bx), (0, Ip - I))).reshape(T * Bp, Ip)

    # TODO(synk): tile over T (grid axis + h/c carried in scratch) for long
    #             sequences on v7x's 64 MiB VMEM; use 2nd TensorCore there.
    out_sds = jax.ShapeDtypeStruct((T, Bp, Hp), F32)
    o_r, o_i = pl.pallas_call(
        _complex_lstm_kernel,
        out_shape=(out_sds, out_sds),
        in_specs=[_VMEM] * 7,
        out_specs=(_VMEM, _VMEM),
        scratch_shapes=[pltpu.VMEM((T * Bp, 4 * Hp), F32),
                        pltpu.VMEM((T * Bp, 4 * Hp), F32),
                        pltpu.VMEM((Bp, Hp), F32),
                        pltpu.VMEM((Bp, Hp), F32),
                        pltpu.VMEM((Bp, Hp), F32),
                        pltpu.VMEM((Bp, Hp), F32)],
        compiler_params=pltpu.CompilerParams(vmem_limit_bytes=_VMEM_LIMIT),
    )(x2d, wih_r, whh_r, b_r, wih_i, whh_i, b_i)
    rr, ir = o_r[:, :B, :H], o_r[:, B:Bx, :H]   # Lr(xr), Lr(xi)
    ri, ii = o_i[:, :B, :H], o_i[:, B:Bx, :H]   # Li(xr), Li(xi)
    return rr - ii, ri + ir


# ---------------------------------------------------------------------------
# Glue: im2col-based complex convolutions (matmul runs in Pallas)
# ---------------------------------------------------------------------------
def _im2col_t(x, kh, kw, sh, sw, ph, pw):
    """TRANSPOSED column matrix (C*kh*kw, B*Ho*Wo).

    Transpose to channel-major (1x volume) BEFORE stacking the kh*kw shifted
    slices so the reshape to matmul layout is free (no 9x transpose copy).
    TODO(synk): move the whole im2col into the matmul kernel (halo'd tile DMA).
    """
    B, C, H, W = x.shape
    Ho = (H + 2 * ph - kh) // sh + 1
    Wo = (W + 2 * pw - kw) // sw + 1
    xp = _pad_axes(x, ((0, 0), (0, 0), (ph, ph), (pw, pw))).transpose(1, 0, 2, 3)
    cols = [xp[:, :, i:i + sh * Ho:sh, j:j + sw * Wo:sw]
            for i in range(kh) for j in range(kw)]
    col = jnp.stack(cols, axis=1)                       # (C, kh*kw, B, Ho, Wo)
    return col.reshape(C * kh * kw, B * Ho * Wo), Ho, Wo


def complex_conv2d(xr, xi, p, apply_tanh=False):
    out_c, in_c, kh, kw = p['wr'].shape
    sh, sw = p['stride']
    ph, pw = p['padding']
    colr, Ho, Wo = _im2col_t(xr, kh, kw, sh, sw, ph, pw)
    coli, _, _ = _im2col_t(xi, kh, kw, sh, sw, ph, pw)
    wr = p['wr'].reshape(out_c, in_c * kh * kw)
    wi = p['wi'].reshape(out_c, in_c * kh * kw)
    cr, ci = block_complex_matmul(wr, wi, colr, coli, p['br'], p['bi'],
                                  apply_tanh=apply_tanh)
    B = xr.shape[0]
    cr = cr.reshape(out_c, B, Ho, Wo).transpose(1, 0, 2, 3)
    ci = ci.reshape(out_c, B, Ho, Wo).transpose(1, 0, 2, 3)
    return cr, ci


def _dilate(x, sh, sw):
    B, C, H, W = x.shape
    y = jnp.zeros((B, C, (H - 1) * sh + 1, (W - 1) * sw + 1), x.dtype)
    return y.at[:, :, ::sh, ::sw].set(x)


def complex_conv_transpose2d(xr, xi, p):
    in_c, out_c, kh, kw = p['wr'].shape
    sh, sw = p['stride']
    ph, pw = p['padding']

    # Transposed conv == direct conv (stride 1) on zero-dilated input with the
    # kernel spatially flipped and in/out channels swapped; pad = k - 1 - p.
    # TODO(synk): stride-phase (sub-pixel) decomposition would avoid the
    #             structural-zero MACs / traffic of the dilated input.
    def eq_w(w):
        return jnp.flip(w, axis=(2, 3)).transpose(1, 0, 2, 3)

    xr_d, xi_d = _dilate(xr, sh, sw), _dilate(xi, sh, sw)
    pconv = dict(wr=eq_w(p['wr']), wi=eq_w(p['wi']), br=p['br'], bi=p['bi'],
                 stride=(1, 1), padding=(kh - 1 - ph, kw - 1 - pw))
    return complex_conv2d(xr_d, xi_d, pconv)


def complex_dense_cols(xr_cols, xi_cols, p):
    """xr_cols/xi_cols: (d_in, M) lane-dense columns -> (d_out, M) pair."""
    return block_complex_matmul(p['wr'], p['wi'], xr_cols, xi_cols,
                                p['br'], p['bi'])


# ---------------------------------------------------------------------------
# Parameters (deterministic init, shapes follow DCCRN.__init__)
# ---------------------------------------------------------------------------
def _norm(key, shape, scale=0.05):
    return scale * jax.random.normal(key, shape, F32)


def init_dccrn_params(key, net):
    keys = iter(jax.random.split(key, 128))
    nk = lambda: next(keys)

    def conv_params(in_c, out_c, k, s, p):
        kh, kw = k
        return dict(wr=_norm(nk(), (out_c, in_c, kh, kw)),
                    wi=_norm(nk(), (out_c, in_c, kh, kw)),
                    br=_norm(nk(), (out_c,)), bi=_norm(nk(), (out_c,)),
                    stride=s, padding=p)

    def tconv_params(in_c, out_c, k, s, p):
        kh, kw = k
        return dict(wr=_norm(nk(), (in_c, out_c, kh, kw)),
                    wi=_norm(nk(), (in_c, out_c, kh, kw)),
                    br=_norm(nk(), (out_c,)), bi=_norm(nk(), (out_c,)),
                    stride=s, padding=p)

    def bn_params(chw):
        c, h, w = chw
        g = 1.0 / math.sqrt(2.0)
        return dict(grr=jnp.full((c, h, w), g, F32),
                    gii=jnp.full((c, h, w), g, F32),
                    gri=jnp.zeros((c, h, w), F32),
                    br=jnp.zeros((c, h, w), F32),
                    bi=jnp.zeros((c, h, w), F32))

    def lstm_half(in_sz, hid):
        return dict(wih=_norm(nk(), (4, in_sz, hid)),
                    whh=_norm(nk(), (4, hid, hid)),
                    b=_norm(nk(), (4, 1, hid)))

    params = dict(encoders=[], decoders=[], lstms=[])
    en_ch = net['encoder_channels']
    for i in range(len(en_ch) - 1):
        params['encoders'].append(dict(
            conv=conv_params(en_ch[i], en_ch[i + 1],
                             net['encoder_kernel_sizes'][i],
                             net['encoder_strides'][i],
                             net['encoder_paddings'][i]),
            bn=bn_params(net['encoder_chw'][i]),
            alpha=jnp.float32(0.25)))
    ldims = net['lstm_dim']
    for i in range(len(ldims) - 1):
        params['lstms'].append(dict(real=lstm_half(ldims[i], ldims[i + 1]),
                                    imag=lstm_half(ldims[i], ldims[i + 1])))
    d_in, d_out = net['dense']
    params['dense'] = dict(wr=_norm(nk(), (d_out, d_in)),
                           wi=_norm(nk(), (d_out, d_in)),
                           br=_norm(nk(), (d_out,)), bi=_norm(nk(), (d_out,)))
    de_ch = net['decoder_channels']
    n_enc = len(en_ch) - 1
    for i in range(len(de_ch) - 1):
        in_c = de_ch[i] + en_ch[n_enc - i]
        params['decoders'].append(dict(
            tconv=tconv_params(in_c, de_ch[i + 1],
                               net['decoder_kernel_sizes'][i],
                               net['decoder_strides'][i],
                               net['decoder_paddings'][i]),
            bn=bn_params(net['decoder_chw'][i]),
            alpha=jnp.float32(0.25)))
    params['linear'] = conv_params(2, 1, (1, 1), (1, 1), (0, 0))
    return params


# ---------------------------------------------------------------------------
# DCCRN forward (mirrors the PyTorch module's forward, train=True)
# ---------------------------------------------------------------------------
def dccrn_forward(params, x):
    xr, xi = x[..., 0], x[..., 1]
    skips = []
    for enc in params['encoders']:
        skips.append((xr, xi))
        xr, xi = complex_conv2d(xr, xi, enc['conv'])
        # TODO(synk): fuse BN+PReLU into the conv matmul epilogue (needs a
        #             cross-batch reduction over the output tiles).
        xr, xi = complex_bn_prelu(xr, xi, enc['bn'], enc['alpha'])

    B, C, Fr, T = xr.shape
    lr = xr.reshape(B, C * Fr, T).transpose(2, 0, 1)   # (T, B, C*F)
    li = xi.reshape(B, C * Fr, T).transpose(2, 0, 1)
    for lp in params['lstms']:
        lr, li = complex_lstm(lr, li, lp)

    # Dense consumes the LSTM output directly as (hidden, T*B) lane-dense
    # columns (one transpose instead of the previous transpose/.T chain).
    Hd = lr.shape[-1]
    dr, di = complex_dense_cols(lr.reshape(T * B, Hd).T,
                                li.reshape(T * B, Hd).T, params['dense'])
    pr = dr.reshape(C, Fr, T, B).transpose(3, 0, 1, 2)  # (B, C, F, T)
    pi = di.reshape(C, Fr, T, B).transpose(3, 0, 1, 2)

    n = len(skips)
    for i, dec in enumerate(params['decoders']):
        pr, pi = complex_conv_transpose2d(pr, pi, dec['tconv'])
        pr, pi = complex_bn_prelu(pr, pi, dec['bn'], dec['alpha'])
        sr, si = skips[n - i - 1]
        # TODO(synk): eliminate this concat by splitting the next stage's
        #             weights along input channels (two-K-block accumulation).
        pr = jnp.concatenate([pr, sr], axis=1)
        pi = jnp.concatenate([pi, si], axis=1)

    mr, mi = complex_conv2d(pr, pi, params['linear'], apply_tanh=True)
    return jnp.stack([mr, mi], axis=-1)


if __name__ == "__main__":
    net_params = {
        'encoder_channels': [1, 4, 8],
        'encoder_kernel_sizes': [(3, 3), (3, 3)],
        'encoder_strides': [(2, 1), (2, 1)],
        'encoder_paddings': [(1, 1), (1, 1)],
        'encoder_chw': [(4, 8, 8), (8, 4, 8)],
        'lstm_dim': [32, 32],
        'lstm_layer_num': 1,
        'dense': (32, 32),
        'decoder_channels': [0, 4, 1],
        'decoder_kernel_sizes': [(4, 3), (4, 3)],
        'decoder_strides': [(2, 1), (2, 1)],
        'decoder_paddings': [(1, 1), (1, 1)],
        'decoder_chw': [(4, 8, 8), (1, 16, 8)],
    }
    key = jax.random.PRNGKey(0)
    pkey, xkey = jax.random.split(key)
    params = init_dccrn_params(pkey, net_params)
    # x: (B, C, F, T, 2) == (batch, channels, freq, time, real/imag)
    x = jax.random.normal(xkey, (2, 1, 16, 8, 2), F32)

    fwd = jax.jit(lambda xx: dccrn_forward(params, xx))
    mask = fwd(x)
    jax.block_until_ready(mask)
    assert mask.shape == (2, 1, 16, 8, 2), mask.shape
    assert bool(jnp.all(jnp.isfinite(mask)))
    print("KERNEL_OK")
</pallas_src>

<mosaic_0001>
module attributes {stable_mosaic.version = 11 : i64} {
  func.func @_bcmm_kernel(%arg0: i32, %arg1: memref<16x32xbf16, #tpu.memory_space<vmem>>, %arg2: memref<32x128xbf16, #tpu.memory_space<vmem>>, %arg3: memref<16x1xf32, #tpu.memory_space<vmem>>, %arg4: memref<8x128xf32, #tpu.memory_space<vmem>>, %arg5: memref<8x128xf32, #tpu.memory_space<vmem>>) attributes {dimension_semantics = [#tpu.dimension_semantics<parallel>], iteration_bounds = array<i64: 1>, scalar_prefetch = 0 : i64, scratch_operands = 0 : i64, tpu.core_type = #tpu.core_type<tc>, window_params = [{pipeline_mode = #tpu.pipeline_mode<synchronous>, transform_indices = @transform_0, window_bounds = array<i64: 16, 32>}, {transform_indices = @transform_1, window_bounds = array<i64: 32, 128>}, {pipeline_mode = #tpu.pipeline_mode<synchronous>, transform_indices = @transform_2, window_bounds = array<i64: 16, 1>}, {transform_indices = @transform_3, window_bounds = array<i64: 8, 128>}, {transform_indices = @transform_4, window_bounds = array<i64: 8, 128>}]} {
    %c0 = arith.constant 0 : index
    %c0_0 = arith.constant 0 : index
    %0 = vector.load %arg1[%c0, %c0_0] : memref<16x32xbf16, #tpu.memory_space<vmem>>, vector<16x32xbf16>
    %c0_1 = arith.constant 0 : index
    %c0_2 = arith.constant 0 : index
    %1 = vector.load %arg2[%c0_1, %c0_2] : memref<32x128xbf16, #tpu.memory_space<vmem>>, vector<32x128xbf16>
    %cst = arith.constant dense<0.000000e+00> : vector<16x128xf32>
    %2 = tpu.matmul %0, %1, %cst {dimension_numbers = #tpu.dot_dimension_numbers<[1], [0], [0], [1], [0, 0, 1, 1], [], []>} : vector<16x32xbf16>, vector<32x128xbf16>, vector<16x128xf32> -> vector<16x128xf32>
    %c0_3 = arith.constant 0 : index
    %c0_4 = arith.constant 0 : index
    %3 = vector.load %arg3[%c0_3, %c0_4] : memref<16x1xf32, #tpu.memory_space<vmem>>, vector<16x1xf32>
    %4 = vector.broadcast %3 : vector<16x1xf32> to vector<16x128xf32>
    %5 = arith.addf %2, %4 : vector<16x128xf32>
    %6 = vector.extract_strided_slice %5 {offsets = [0, 0], sizes = [8, 128], strides = [1, 1]} : vector<16x128xf32> to vector<8x128xf32>
    %c0_5 = arith.constant 0 : index
    %c0_6 = arith.constant 0 : index
    %7 = vector.load %arg4[%c0_5, %c0_6] : memref<8x128xf32, #tpu.memory_space<vmem>>, vector<8x128xf32>
    tpu.vector_store %arg4[%c0_5, %c0_6], %6 {strides = array<i32>} : memref<8x128xf32, #tpu.memory_space<vmem>>, vector<8x128xf32>,
    %8 = vector.extract_strided_slice %5 {offsets = [8, 0], sizes = [8, 128], strides = [1, 1]} : vector<16x128xf32> to vector<8x128xf32>
    %c0_7 = arith.constant 0 : index
    %c0_8 = arith.constant 0 : index
    %9 = vector.load %arg5[%c0_7, %c0_8] : memref<8x128xf32, #tpu.memory_space<vmem>>, vector<8x128xf32>
    tpu.vector_store %arg5[%c0_7, %c0_8], %8 {strides = array<i32>} : memref<8x128xf32, #tpu.memory_space<vmem>>, vector<8x128xf32>,
    return
  }
  func.func @transform_0(%arg0: i32) -> (i32, i32) {
    %c0_i32 = arith.constant 0 : i32
    %c0_i32_0 = arith.constant 0 : i32
    %c0_i32_1 = arith.constant 0 : i32
    return %c0_i32, %c0_i32_0 : i32, i32
  }
  func.func @transform_1(%arg0: i32) -> (i32, i32) {
    %c0_i32 = arith.constant 0 : i32
    %c0_i32_0 = arith.constant 0 : i32
    return %c0_i32, %arg0 : i32, i32
  }
  func.func @transform_2(%arg0: i32) -> (i32, i32) {
    %c0_i32 = arith.constant 0 : i32
    %c0_i32_0 = arith.constant 0 : i32
    %c0_i32_1 = arith.constant 0 : i32
    return %c0_i32, %c0_i32_0 : i32, i32
  }
  func.func @transform_3(%arg0: i32) -> (i32, i32) {
    %c0_i32 = arith.constant 0 : i32
    %c0_i32_0 = arith.constant 0 : i32
    return %c0_i32, %arg0 : i32, i32
  }
  func.func @transform_4(%arg0: i32) -> (i32, i32) {
    %c0_i32 = arith.constant 0 : i32
    %c0_i32_0 = arith.constant 0 : i32
    return %c0_i32, %arg0 : i32, i32
  }
}

module attributes {stable_mosaic.version = 11 : i64} {
  func.func @_cbn_prelu_kernel(%arg0: i32, %arg1: memref<2x256xf32, #tpu.memory_space<vmem>>, %arg2: memref<2x256xf32, #tpu.memory_space<vmem>>, %arg3: memref<1x256xf32, #tpu.memory_space<vmem>>, %arg4: memref<1x256xf32, #tpu.memory_space<vmem>>, %arg5: memref<1x256xf32, #tpu.memory_space<vmem>>, %arg6: memref<1x256xf32, #tpu.memory_space<vmem>>, %arg7: memref<1x256xf32, #tpu.memory_space<vmem>>, %arg8: memref<1xf32, #tpu.memory_space<smem>>, %arg9: memref<2x256xf32, #tpu.memory_space<vmem>>, %arg10: memref<2x256xf32, #tpu.memory_space<vmem>>) attributes {dimension_semantics = [#tpu.dimension_semantics<parallel>], iteration_bounds = array<i64: 1>, scalar_prefetch = 0 : i64, scratch_operands = 0 : i64, tpu.core_type = #tpu.core_type<tc>, window_params = [{transform_indices = @transform_0, window_bounds = array<i64: 2, 256>}, {transform_indices = @transform_1, window_bounds = array<i64: 2, 256>}, {transform_indices = @transform_2, window_bounds = array<i64: 1, 256>}, {transform_indices = @transform_3, window_bounds = array<i64: 1, 256>}, {transform_indices = @transform_4, window_bounds = array<i64: 1, 256>}, {transform_indices = @transform_5, window_bounds = array<i64: 1, 256>}, {transform_indices = @transform_6, window_bounds = array<i64: 1, 256>}, {transform_indices = @transform_7, window_bounds = array<i64: 1>}, {transform_indices = @transform_8, window_bounds = array<i64: 2, 256>}, {transform_indices = @transform_9, window_bounds = array<i64: 2, 256>}]} {
    %c0 = arith.constant 0 : index
    %0 = memref.load %arg8[%c0] : memref<1xf32, #tpu.memory_space<smem>>
    %c0_0 = arith.constant 0 : index
    %c0_1 = arith.constant 0 : index
    %1 = vector.load %arg1[%c0_0, %c0_1] : memref<2x256xf32, #tpu.memory_space<vmem>>, vector<2x256xf32>
    %c0_2 = arith.constant 0 : index
    %c0_3 = arith.constant 0 : index
    %2 = vector.load %arg2[%c0_2, %c0_3] : memref<2x256xf32, #tpu.memory_space<vmem>>, vector<2x256xf32>
    %cst = arith.constant dense<0.000000e+00> : vector<256xf32>
    %3 = vector.multi_reduction <add>, %1, %cst [0] : vector<2x256xf32> to vector<256xf32>
    %4 = vector.shape_cast %3 : vector<256xf32> to vector<1x256xf32>
    %cst_4 = arith.constant 2.000000e+00 : f32
    %5 = vector.broadcast %cst_4 : f32 to vector<1x256xf32>
    %6 = arith.divf %4, %5 : vector<1x256xf32>
    %cst_5 = arith.constant dense<0.000000e+00> : vector<256xf32>
    %7 = vector.multi_reduction <add>, %2, %cst_5 [0] : vector<2x256xf32> to vector<256xf32>
    %8 = vector.shape_cast %7 : vector<256xf32> to vector<1x256xf32>
    %cst_6 = arith.constant 2.000000e+00 : f32
    %9 = vector.broadcast %cst_6 : f32 to vector<1x256xf32>
    %10 = arith.divf %8, %9 : vector<1x256xf32>
    %11 = vector.broadcast %6 : vector<1x256xf32> to vector<2x256xf32>
    %12 = arith.subf %1, %11 : vector<2x256xf32>
    %13 = vector.broadcast %10 : vector<1x256xf32> to vector<2x256xf32>
    %14 = arith.subf %2, %13 : vector<2x256xf32>
    %15 = arith.mulf %12, %12 : vector<2x256xf32>
    %cst_7 = arith.constant dense<0.000000e+00> : vector<256xf32>
    %16 = vector.multi_reduction <add>, %15, %cst_7 [0] : vector<2x256xf32> to vector<256xf32>
    %17 = vector.shape_cast %16 : vector<256xf32> to vector<1x256xf32>
    %cst_8 = arith.constant 2.000000e+00 : f32
    %18 = vector.broadcast %cst_8 : f32 to vector<1x256xf32>
    %19 = arith.divf %17, %18 : vector<1x256xf32>
    %cst_9 = arith.constant 9.99999974E-6 : f32
    %20 = vector.broadcast %cst_9 : f32 to vector<1x256xf32>
    %21 = arith.addf %19, %20 : vector<1x256xf32>
    %22 = arith.mulf %14, %14 : vector<2x256xf32>
    %cst_10 = arith.constant dense<0.000000e+00> : vector<256xf32>
    %23 = vector.multi_reduction <add>, %22, %cst_10 [0] : vector<2x256xf32> to vector<256xf32>
    %24 = vector.shape_cast %23 : vector<256xf32> to vector<1x256xf32>
    %cst_11 = arith.constant 2.000000e+00 : f32
    %25 = vector.broadcast %cst_11 : f32 to vector<1x256xf32>
    %26 = arith.divf %24, %25 : vector<1x256xf32>
    %cst_12 = arith.constant 9.99999974E-6 : f32
    %27 = vector.broadcast %cst_12 : f32 to vector<1x256xf32>
    %28 = arith.addf %26, %27 : vector<1x256xf32>
    %29 = arith.mulf %12, %14 : vector<2x256xf32>
    %cst_13 = arith.constant dense<0.000000e+00> : vector<256xf32>
    %30 = vector.multi_reduction <add>, %29, %cst_13 [0] : vector<2x256xf32> to vector<256xf32>
    %31 = vector.shape_cast %30 : vector<256xf32> to vector<1x256xf32>
    %cst_14 = arith.constant 2.000000e+00 : f32
    %32 = vector.broadcast %cst_14 : f32 to vector<1x256xf32>
    %33 = arith.divf %31, %32 : vector<1x256xf32>
    %34 = arith.addf %21, %28 : vector<1x256xf32>
    %35 = arith.mulf %21, %28 : vector<1x256xf32>
    %36 = arith.mulf %33, %33 : vector<1x256xf32>
    %37 = arith.subf %35, %36 : vector<1x256xf32>
    %38 = math.sqrt %37 : vector<1x256xf32>
    %cst_15 = arith.constant 2.000000e+00 : f32
    %39 = vector.broadcast %cst_15 : f32 to vector<1x256xf32>
    %40 = arith.mulf %39, %38 : vector<1x256xf32>
    %41 = arith.addf %34, %40 : vector<1x256xf32>
    %42 = arith.mulf %37, %41 : vector<1x256xf32>
    %43 = math.rsqrt %42 : vector<1x256xf32>
    %44 = arith.addf %28, %38 : vector<1x256xf32>
    %45 = arith.mulf %44, %43 : vector<1x256xf32>
    %46 = arith.addf %21, %38 : vector<1x256xf32>
    %47 = arith.mulf %46, %43 : vector<1x256xf32>
    %cst_16 = arith.constant 0.000000e+00 : f32
    %48 = vector.broadcast %cst_16 : f32 to vector<1x256xf32>
    %49 = arith.subf %48, %33 : vector<1x256xf32>
    %50 = arith.mulf %49, %43 : vector<1x256xf32>
    %51 = vector.broadcast %45 : vector<1x256xf32> to vector<2x256xf32>
    %52 = arith.mulf %51, %12 : vector<2x256xf32>
    %53 = vector.broadcast %50 : vector<1x256xf32> to vector<2x256xf32>
    %54 = arith.mulf %53, %14 : vector<2x256xf32>
    %55 = arith.addf %52, %54 : vector<2x256xf32>
    %56 = vector.broadcast %50 : vector<1x256xf32> to vector<2x256xf32>
    %57 = arith.mulf %56, %12 : vector<2x256xf32>
    %58 = vector.broadcast %47 : vector<1x256xf32> to vector<2x256xf32>
    %59 = arith.mulf %58, %14 : vector<2x256xf32>
    %60 = arith.addf %57, %59 : vector<2x256xf32>
    %c0_17 = arith.constant 0 : index
    %c0_18 = arith.constant 0 : index
    %61 = vector.load %arg3[%c0_17, %c0_18] : memref<1x256xf32, #tpu.memory_space<vmem>>, vector<1x256xf32>
    %62 = vector.broadcast %61 : vector<1x256xf32> to vector<2x256xf32>
    %63 = arith.mulf %62, %55 : vector<2x256xf32>
    %c0_19 = arith.constant 0 : index
    %c0_20 = arith.constant 0 : index
    %64 = vector.load %arg4[%c0_19, %c0_20] : memref<1x256xf32, #tpu.memory_space<vmem>>, vector<1x256xf32>
    %65 = vector.broadcast %64 : vector<1x256xf32> to vector<2x256xf32>
    %66 = arith.mulf %65, %60 : vector<2x256xf32>
    %67 = arith.addf %63, %66 : vector<2x256xf32>
    %c0_21 = arith.constant 0 : index
    %c0_22 = arith.constant 0 : index
    %68 = vector.load %arg6[%c0_21, %c0_22] : memref<1x256xf32, #tpu.memory_space<vmem>>, vector<1x256xf32>
    %69 = vector.broadcast %68 : vector<1x256xf32> to vector<2x256xf32>
    %70 = arith.addf %67, %69 : vector<2x256xf32>
    %c0_23 = arith.constant 0 : index
    %c0_24 = arith.constant 0 : index
    %71 = vector.load %arg4[%c0_23, %c0_24] : memref<1x256xf32, #tpu.memory_space<vmem>>, vector<1x256xf32>
    %72 = vector.broadcast %71 : vector<1x256xf32> to vector<2x256xf32>
    %73 = arith.mulf %72, %55 : vector<2x256xf32>
    %c0_25 = arith.constant 0 : index
    %c0_26 = arith.constant 0 : index
    %74 = vector.load %arg5[%c0_25, %c0_26] : memref<1x256xf32, #tpu.memory_space<vmem>>, vector<1x256xf32>
    %75 = vector.broadcast %74 : vector<1x256xf32> to vector<2x256xf32>
    %76 = arith.mulf %75, %60 : vector<2x256xf32>
    %77 = arith.addf %73, %76 : vector<2x256xf32>
    %c0_27 = arith.constant 0 : index
    %c0_28 = arith.constant 0 : index
    %78 = vector.load %arg7[%c0_27, %c0_28] : memref<1x256xf32, #tpu.memory_space<vmem>>, vector<1x256xf32>
    %79 = vector.broadcast %78 : vector<1x256xf32> to vector<2x256xf32>
    %80 = arith.addf %77, %79 : vector<2x256xf32>
    %cst_29 = arith.constant 0.000000e+00 : f32
    %81 = vector.broadcast %cst_29 : f32 to vector<2x256xf32>
    %82 = arith.cmpf oge, %70, %81 : vector<2x256xf32>
    %83 = vector.broadcast %0 : f32 to vector<2x256xf32>
    %84 = arith.mulf %83, %70 : vector<2x256xf32>
    %85 = arith.select %82, %70, %84 : vector<2x256xi1>, vector<2x256xf32>
    %c0_30 = arith.constant 0 : index
    %c0_31 = arith.constant 0 : index
    %86 = vector.load %arg9[%c0_30, %c0_31] : memref<2x256xf32, #tpu.memory_space<vmem>>, vector<2x256xf32>
    tpu.vector_store %arg9[%c0_30, %c0_31], %85 {strides = array<i32>} : memref<2x256xf32, #tpu.memory_space<vmem>>, vector<2x256xf32>,
    %cst_32 = arith.constant 0.000000e+00 : f32
    %87 = vector.broadcast %cst_32 : f32 to vector<2x256xf32>
    %88 = arith.cmpf oge, %80, %87 : vector<2x256xf32>
    %89 = vector.broadcast %0 : f32 to vector<2x256xf32>
    %90 = arith.mulf %89, %80 : vector<2x256xf32>
    %91 = arith.select %88, %80, %90 : vector<2x256xi1>, vector<2x256xf32>
    %c0_33 = arith.constant 0 : index
    %c0_34 = arith.constant 0 : index
    %92 = vector.load %arg10[%c0_33, %c0_34] : memref<2x256xf32, #tpu.memory_space<vmem>>, vector<2x256xf32>
    tpu.vector_store %arg10[%c0_33, %c0_34], %91 {strides = array<i32>} : memref<2x256xf32, #tpu.memory_space<vmem>>, vector<2x256xf32>,
    return
  }
  func.func @transform_0(%arg0: i32) -> (i32, i32) {
    %c0_i32 = arith.constant 0 : i32
    %c0_i32_0 = arith.constant 0 : i32
    return %c0_i32, %arg0 : i32, i32
  }
  func.func @transform_1(%arg0: i32) -> (i32, i32) {
    %c0_i32 = arith.constant 0 : i32
    %c0_i32_0 = arith.constant 0 : i32
    return %c0_i32, %arg0 : i32, i32
  }
  func.func @transform_2(%arg0: i32) -> (i32, i32) {
    %c0_i32 = arith.constant 0 : i32
    %c0_i32_0 = arith.constant 0 : i32
    return %c0_i32, %arg0 : i32, i32
  }
  func.func @transform_3(%arg0: i32) -> (i32, i32) {
    %c0_i32 = arith.constant 0 : i32
    %c0_i32_0 = arith.constant 0 : i32
    return %c0_i32, %arg0 : i32, i32
  }
  func.func @transform_4(%arg0: i32) -> (i32, i32) {
    %c0_i32 = arith.constant 0 : i32
    %c0_i32_0 = arith.constant 0 : i32
    return %c0_i32, %arg0 : i32, i32
  }
  func.func @transform_5(%arg0: i32) -> (i32, i32) {
    %c0_i32 = arith.constant 0 : i32
    %c0_i32_0 = arith.constant 0 : i32
    return %c0_i32, %arg0 : i32, i32
  }
  func.func @transform_6(%arg0: i32) -> (i32, i32) {
    %c0_i32 = arith.constant 0 : i32
    %c0_i32_0 = arith.constant 0 : i32
    return %c0_i32, %arg0 : i32, i32
  }
  func.func @transform_7(%arg0: i32) -> i32 {
    %c0_i32 = arith.constant 0 : i32
    %c0_i32_0 = arith.constant 0 : i32
    return %c0_i32 : i32
  }
  func.func @transform_8(%arg0: i32) -> (i32, i32) {
    %c0_i32 = arith.constant 0 : i32
    %c0_i32_0 = arith.constant 0 : i32
    return %c0_i32, %arg0 : i32, i32
  }
  func.func @transform_9(%arg0: i32) -> (i32, i32) {
    %c0_i32 = arith.constant 0 : i32
    %c0_i32_0 = arith.constant 0 : i32
    return %c0_i32, %arg0 : i32, i32
  }
}

module attributes {stable_mosaic.version = 11 : i64} {
  func.func @_bcmm_kernel(%arg0: i32, %arg1: memref<16x80xbf16, #tpu.memory_space<vmem>>, %arg2: memref<80x128xbf16, #tpu.memory_space<vmem>>, %arg3: memref<16x1xf32, #tpu.memory_space<vmem>>, %arg4: memref<8x128xf32, #tpu.memory_space<vmem>>, %arg5: memref<8x128xf32, #tpu.memory_space<vmem>>) attributes {dimension_semantics = [#tpu.dimension_semantics<parallel>], iteration_bounds = array<i64: 1>, scalar_prefetch = 0 : i64, scratch_operands = 0 : i64, tpu.core_type = #tpu.core_type<tc>, window_params = [{pipeline_mode = #tpu.pipeline_mode<synchronous>, transform_indices = @transform_0, window_bounds = array<i64: 16, 80>}, {transform_indices = @transform_1, window_bounds = array<i64: 80, 128>}, {pipeline_mode = #tpu.pipeline_mode<synchronous>, transform_indices = @transform_2, window_bounds = array<i64: 16, 1>}, {transform_indices = @transform_3, window_bounds = array<i64: 8, 128>}, {transform_indices = @transform_4, window_bounds = array<i64: 8, 128>}]} {
    %c0 = arith.constant 0 : index
    %c0_0 = arith.constant 0 : index
    %0 = vector.load %arg1[%c0, %c0_0] : memref<16x80xbf16, #tpu.memory_space<vmem>>, vector<16x80xbf16>
    %c0_1 = arith.constant 0 : index
    %c0_2 = arith.constant 0 : index
    %1 = vector.load %arg2[%c0_1, %c0_2] : memref<80x128xbf16, #tpu.memory_space<vmem>>, vector<80x128xbf16>
    %cst = arith.constant dense<0.000000e+00> : vector<16x128xf32>
    %2 = tpu.matmul %0, %1, %cst {dimension_numbers = #tpu.dot_dimension_numbers<[1], [0], [0], [1], [0, 0, 1, 1], [], []>} : vector<16x80xbf16>, vector<80x128xbf16>, vector<16x128xf32> -> vector<16x128xf32>
    %c0_3 = arith.constant 0 : index
    %c0_4 = arith.constant 0 : index
    %3 = vector.load %arg3[%c0_3, %c0_4] : memref<16x1xf32, #tpu.memory_space<vmem>>, vector<16x1xf32>
    %4 = vector.broadcast %3 : vector<16x1xf32> to vector<16x128xf32>
    %5 = arith.addf %2, %4 : vector<16x128xf32>
    %6 = vector.extract_strided_slice %5 {offsets = [0, 0], sizes = [8, 128], strides = [1, 1]} : vector<16x128xf32> to vector<8x128xf32>
    %c0_5 = arith.constant 0 : index
    %c0_6 = arith.constant 0 : index
    %7 = vector.load %arg4[%c0_5, %c0_6] : memref<8x128xf32, #tpu.memory_space<vmem>>, vector<8x128xf32>
    tpu.vector_store %arg4[%c0_5, %c0_6], %6 {strides = array<i32>} : memref<8x128xf32, #tpu.memory_space<vmem>>, vector<8x128xf32>,
    %8 = vector.extract_strided_slice %5 {offsets = [8, 0], sizes = [8, 128], strides = [1, 1]} : vector<16x128xf32> to vector<8x128xf32>
    %c0_7 = arith.constant 0 : index
    %c0_8 = arith.constant 0 : index
    %9 = vector.load %arg5[%c0_7, %c0_8] : memref<8x128xf32, #tpu.memory_space<vmem>>, vector<8x128xf32>
    tpu.vector_store %arg5[%c0_7, %c0_8], %8 {strides = array<i32>} : memref<8x128xf32, #tpu.memory_space<vmem>>, vector<8x128xf32>,
    return
  }
  func.func @transform_0(%arg0: i32) -> (i32, i32) {
    %c0_i32 = arith.constant 0 : i32
    %c0_i32_0 = arith.constant 0 : i32
    %c0_i32_1 = arith.constant 0 : i32
    return %c0_i32, %c0_i32_0 : i32, i32
  }
  func.func @transform_1(%arg0: i32) -> (i32, i32) {
    %c0_i32 = arith.constant 0 : i32
    %c0_i32_0 = arith.constant 0 : i32
    return %c0_i32, %arg0 : i32, i32
  }
  func.func @transform_2(%arg0: i32) -> (i32, i32) {
    %c0_i32 = arith.constant 0 : i32
    %c0_i32_0 = arith.constant 0 : i32
    %c0_i32_1 = arith.constant 0 : i32
    return %c0_i32, %c0_i32_0 : i32, i32
  }
  func.func @transform_3(%arg0: i32) -> (i32, i32) {
    %c0_i32 = arith.constant 0 : i32
    %c0_i32_0 = arith.constant 0 : i32
    return %c0_i32, %arg0 : i32, i32
  }
  func.func @transform_4(%arg0: i32) -> (i32, i32) {
    %c0_i32 = arith.constant 0 : i32
    %c0_i32_0 = arith.constant 0 : i32
    return %c0_i32, %arg0 : i32, i32
  }
}

module attributes {stable_mosaic.version = 11 : i64} {
  func.func @_complex_lstm_kernel(%arg0: memref<64x128xf32, #tpu.memory_space<vmem>>, %arg1: memref<128x512xf32, #tpu.memory_space<vmem>>, %arg2: memref<128x512xf32, #tpu.memory_space<vmem>>, %arg3: memref<1x512xf32, #tpu.memory_space<vmem>>, %arg4: memref<128x512xf32, #tpu.memory_space<vmem>>, %arg5: memref<128x512xf32, #tpu.memory_space<vmem>>, %arg6: memref<1x512xf32, #tpu.memory_space<vmem>>, %arg7: memref<8x8x128xf32, #tpu.memory_space<vmem>>, %arg8: memref<8x8x128xf32, #tpu.memory_space<vmem>>, %arg9: memref<64x512xf32, #tpu.memory_space<vmem>>, %arg10: memref<64x512xf32, #tpu.memory_space<vmem>>, %arg11: memref<8x128xf32, #tpu.memory_space<vmem>>, %arg12: memref<8x128xf32, #tpu.memory_space<vmem>>, %arg13: memref<8x128xf32, #tpu.memory_space<vmem>>, %arg14: memref<8x128xf32, #tpu.memory_space<vmem>>) attributes {dimension_semantics = [], scalar_prefetch = 0 : i64, scratch_operands = 6 : i64, tpu.core_type = #tpu.core_type<tc>} {
    %c0 = arith.constant 0 : index
    %c0_0 = arith.constant 0 : index
    %0 = vector.load %arg0[%c0, %c0_0] : memref<64x128xf32, #tpu.memory_space<vmem>>, vector<64x128xf32>
    %c0_1 = arith.constant 0 : index
    %c0_2 = arith.constant 0 : index
    %1 = vector.load %arg1[%c0_1, %c0_2] : memref<128x512xf32, #tpu.memory_space<vmem>>, vector<128x512xf32>
    %cst = arith.constant dense<0.000000e+00> : vector<64x512xf32>
    %2 = tpu.matmul %0, %1, %cst {dimension_numbers = #tpu.dot_dimension_numbers<[1], [0], [0], [1], [0, 0, 1, 1], [], []>} : vector<64x128xf32>, vector<128x512xf32>, vector<64x512xf32> -> vector<64x512xf32>
    %c0_3 = arith.constant 0 : index
    %c0_4 = arith.constant 0 : index
    %3 = vector.load %arg3[%c0_3, %c0_4] : memref<1x512xf32, #tpu.memory_space<vmem>>, vector<1x512xf32>
    %4 = vector.broadcast %3 : vector<1x512xf32> to vector<64x512xf32>
    %5 = arith.addf %2, %4 : vector<64x512xf32>
    %c0_5 = arith.constant 0 : index
    %c0_6 = arith.constant 0 : index
    %6 = vector.load %arg9[%c0_5, %c0_6] : memref<64x512xf32, #tpu.memory_space<vmem>>, vector<64x512xf32>
    tpu.vector_store %arg9[%c0_5, %c0_6], %5 {strides = array<i32>} : memref<64x512xf32, #tpu.memory_space<vmem>>, vector<64x512xf32>,
    %c0_7 = arith.constant 0 : index
    %c0_8 = arith.constant 0 : index
    %7 = vector.load %arg4[%c0_7, %c0_8] : memref<128x512xf32, #tpu.memory_space<vmem>>, vector<128x512xf32>
    %cst_9 = arith.constant dense<0.000000e+00> : vector<64x512xf32>
    %8 = tpu.matmul %0, %7, %cst_9 {dimension_numbers = #tpu.dot_dimension_numbers<[1], [0], [0], [1], [0, 0, 1, 1], [], []>} : vector<64x128xf32>, vector<128x512xf32>, vector<64x512xf32> -> vector<64x512xf32>
    %c0_10 = arith.constant 0 : index
    %c0_11 = arith.constant 0 : index
    %9 = vector.load %arg6[%c0_10, %c0_11] : memref<1x512xf32, #tpu.memory_space<vmem>>, vector<1x512xf32>
    %10 = vector.broadcast %9 : vector<1x512xf32> to vector<64x512xf32>
    %11 = arith.addf %8, %10 : vector<64x512xf32>
    %c0_12 = arith.constant 0 : index
    %c0_13 = arith.constant 0 : index
    %12 = vector.load %arg10[%c0_12, %c0_13] : memref<64x512xf32, #tpu.memory_space<vmem>>, vector<64x512xf32>
    tpu.vector_store %arg10[%c0_12, %c0_13], %11 {strides = array<i32>} : memref<64x512xf32, #tpu.memory_space<vmem>>, vector<64x512xf32>,
    %cst_14 = arith.constant 0.000000e+00 : f32
    %13 = vector.broadcast %cst_14 : f32 to vector<8x128xf32>
    %c0_15 = arith.constant 0 : index
    %c0_16 = arith.constant 0 : index
    %14 = vector.load %arg11[%c0_15, %c0_16] : memref<8x128xf32, #tpu.memory_space<vmem>>, vector<8x128xf32>
    tpu.vector_store %arg11[%c0_15, %c0_16], %13 {strides = array<i32>} : memref<8x128xf32, #tpu.memory_space<vmem>>, vector<8x128xf32>,
    %cst_17 = arith.constant 0.000000e+00 : f32
    %15 = vector.broadcast %cst_17 : f32 to vector<8x128xf32>
    %c0_18 = arith.constant 0 : index
    %c0_19 = arith.constant 0 : index
    %16 = vector.load %arg12[%c0_18, %c0_19] : memref<8x128xf32, #tpu.memory_space<vmem>>, vector<8x128xf32>
    tpu.vector_store %arg12[%c0_18, %c0_19], %15 {strides = array<i32>} : memref<8x128xf32, #tpu.memory_space<vmem>>, vector<8x128xf32>,
    %cst_20 = arith.constant 0.000000e+00 : f32
    %17 = vector.broadcast %cst_20 : f32 to vector<8x128xf32>
    %c0_21 = arith.constant 0 : index
    %c0_22 = arith.constant 0 : index
    %18 = vector.load %arg13[%c0_21, %c0_22] : memref<8x128xf32, #tpu.memory_space<vmem>>, vector<8x128xf32>
    tpu.vector_store %arg13[%c0_21, %c0_22], %17 {strides = array<i32>} : memref<8x128xf32, #tpu.memory_space<vmem>>, vector<8x128xf32>,
    %cst_23 = arith.constant 0.000000e+00 : f32
    %19 = vector.broadcast %cst_23 : f32 to vector<8x128xf32>
    %c0_24 = arith.constant 0 : index
    %c0_25 = arith.constant 0 : index
    %20 = vector.load %arg14[%c0_24, %c0_25] : memref<8x128xf32, #tpu.memory_space<vmem>>, vector<8x128xf32>
    tpu.vector_store %arg14[%c0_24, %c0_25], %19 {strides = array<i32>} : memref<8x128xf32, #tpu.memory_space<vmem>>, vector<8x128xf32>,
    %c0_i32 = arith.constant 0 : i32
    %c8_i32 = arith.constant 8 : i32
    %21 = arith.addi %c0_i32, %c8_i32 : i32
    %c1_i32 = arith.constant 1 : i32
    scf.for %arg15 = %c0_i32 to %21 step %c1_i32  : i32 {
      %c1_i32_27 = arith.constant 1 : i32
      %22 = arith.muli %arg15, %c1_i32_27 : i32
      %c0_i32_28 = arith.constant 0 : i32
      %23 = arith.addi %c0_i32_28, %22 : i32
      %c8_i32_29 = arith.constant 8 : i32
      %24 = arith.muli %23, %c8_i32_29 : i32
      %25 = tpu.assume_multiple %24, 8 : i32
      %26 = arith.index_cast %25 : i32 to index
      %c0_30 = arith.constant 0 : index
      %27 = vector.load %arg9[%26, %c0_30] : memref<64x512xf32, #tpu.memory_space<vmem>>, vector<8x512xf32>
      %c0_31 = arith.constant 0 : index
      %c0_32 = arith.constant 0 : index
      %28 = vector.load %arg11[%c0_31, %c0_32] : memref<8x128xf32, #tpu.memory_space<vmem>>, vector<8x128xf32>
      %c0_33 = arith.constant 0 : index
      %c0_34 = arith.constant 0 : index
      %29 = vector.load %arg2[%c0_33, %c0_34] : memref<128x512xf32, #tpu.memory_space<vmem>>, vector<128x512xf32>
      %cst_35 = arith.constant dense<0.000000e+00> : vector<8x512xf32>
      %30 = tpu.matmul %28, %29, %cst_35 {dimension_numbers = #tpu.dot_dimension_numbers<[1], [0], [0], [1], [0, 0, 1, 1], [], []>} : vector<8x128xf32>, vector<128x512xf32>, vector<8x512xf32> -> vector<8x512xf32>
      %31 = arith.addf %27, %30 : vector<8x512xf32>
      %32 = arith.index_cast %25 : i32 to index
      %c0_36 = arith.constant 0 : index
      %33 = vector.load %arg10[%32, %c0_36] : memref<64x512xf32, #tpu.memory_space<vmem>>, vector<8x512xf32>
      %c0_37 = arith.constant 0 : index
      %c0_38 = arith.constant 0 : index
      %34 = vector.load %arg13[%c0_37, %c0_38] : memref<8x128xf32, #tpu.memory_space<vmem>>, vector<8x128xf32>
      %c0_39 = arith.constant 0 : index
      %c0_40 = arith.constant 0 : index
      %35 = vector.load %arg5[%c0_39, %c0_40] : memref<128x512xf32, #tpu.memory_space<vmem>>, vector<128x512xf32>
      %cst_41 = arith.constant dense<0.000000e+00> : vector<8x512xf32>
      %36 = tpu.matmul %34, %35, %cst_41 {dimension_numbers = #tpu.dot_dimension_numbers<[1], [0], [0], [1], [0, 0, 1, 1], [], []>} : vector<8x128xf32>, vector<128x512xf32>, vector<8x512xf32> -> vector<8x512xf32>
      %37 = arith.addf %33, %36 : vector<8x512xf32>
      %c0_42 = arith.constant 0 : index
      %c0_43 = arith.constant 0 : index
      %38 = vector.load %arg12[%c0_42, %c0_43] : memref<8x128xf32, #tpu.memory_space<vmem>>, vector<8x128xf32>
      %39 = vector.extract_strided_slice %31 {offsets = [0, 0], sizes = [8, 128], strides = [1, 1]} : vector<8x512xf32> to vector<8x128xf32>
      %40 = arith.negf %39 : vector<8x128xf32>
      %41 = math.exp %40 : vector<8x128xf32>
      %cst_44 = arith.constant 1.000000e+00 : f32
      %42 = vector.broadcast %cst_44 : f32 to vector<8x128xf32>
      %43 = arith.addf %42, %41 : vector<8x128xf32>
      %44 = arith.divf %42, %43 : vector<8x128xf32>
      %45 = vector.extract_strided_slice %31 {offsets = [0, 128], sizes = [8, 128], strides = [1, 1]} : vector<8x512xf32> to vector<8x128xf32>
      %46 = arith.negf %45 : vector<8x128xf32>
      %47 = math.exp %46 : vector<8x128xf32>
      %cst_45 = arith.constant 1.000000e+00 : f32
      %48 = vector.broadcast %cst_45 : f32 to vector<8x128xf32>
      %49 = arith.addf %48, %47 : vector<8x128xf32>
      %50 = arith.divf %48, %49 : vector<8x128xf32>
      %51 = vector.extract_strided_slice %31 {offsets = [0, 256], sizes = [8, 128], strides = [1, 1]} : vector<8x512xf32> to vector<8x128xf32>
      %52 = math.tanh %51 : vector<8x128xf32>
      %53 = vector.extract_strided_slice %31 {offsets = [0, 384], sizes = [8, 128], strides = [1, 1]} : vector<8x512xf32> to vector<8x128xf32>
      %54 = arith.negf %53 : vector<8x128xf32>
      %55 = math.exp %54 : vector<8x128xf32>
      %cst_46 = arith.constant 1.000000e+00 : f32
      %56 = vector.broadcast %cst_46 : f32 to vector<8x128xf32>
      %57 = arith.addf %56, %55 : vector<8x128xf32>
      %58 = arith.divf %56, %57 : vector<8x128xf32>
      %59 = arith.mulf %50, %38 : vector<8x128xf32>
      %60 = arith.mulf %44, %52 : vector<8x128xf32>
      %61 = arith.addf %59, %60 : vector<8x128xf32>
      %62 = math.tanh %61 : vector<8x128xf32>
      %63 = arith.mulf %58, %62 : vector<8x128xf32>
      %c0_47 = arith.constant 0 : index
      %c0_48 = arith.constant 0 : index
      %64 = vector.load %arg14[%c0_47, %c0_48] : memref<8x128xf32, #tpu.memory_space<vmem>>, vector<8x128xf32>
      %65 = vector.extract_strided_slice %37 {offsets = [0, 0], sizes = [8, 128], strides = [1, 1]} : vector<8x512xf32> to vector<8x128xf32>
      %66 = arith.negf %65 : vector<8x128xf32>
      %67 = math.exp %66 : vector<8x128xf32>
      %cst_49 = arith.constant 1.000000e+00 : f32
      %68 = vector.broadcast %cst_49 : f32 to vector<8x128xf32>
      %69 = arith.addf %68, %67 : vector<8x128xf32>
      %70 = arith.divf %68, %69 : vector<8x128xf32>
      %71 = vector.extract_strided_slice %37 {offsets = [0, 128], sizes = [8, 128], strides = [1, 1]} : vector<8x512xf32> to vector<8x128xf32>
      %72 = arith.negf %71 : vector<8x128xf32>
      %73 = math.exp %72 : vector<8x128xf32>
      %cst_50 = arith.constant 1.000000e+00 : f32
      %74 = vector.broadcast %cst_50 : f32 to vector<8x128xf32>
      %75 = arith.addf %74, %73 : vector<8x128xf32>
      %76 = arith.divf %74, %75 : vector<8x128xf32>
      %77 = vector.extract_strided_slice %37 {offsets = [0, 256], sizes = [8, 128], strides = [1, 1]} : vector<8x512xf32> to vector<8x128xf32>
      %78 = math.tanh %77 : vector<8x128xf32>
      %79 = vector.extract_strided_slice %37 {offsets = [0, 384], sizes = [8, 128], strides = [1, 1]} : vector<8x512xf32> to vector<8x128xf32>
      %80 = arith.negf %79 : vector<8x128xf32>
      %81 = math.exp %80 : vector<8x128xf32>
      %cst_51 = arith.constant 1.000000e+00 : f32
      %82 = vector.broadcast %cst_51 : f32 to vector<8x128xf32>
      %83 = arith.addf %82, %81 : vector<8x128xf32>
      %84 = arith.divf %82, %83 : vector<8x128xf32>
      %85 = arith.mulf %76, %64 : vector<8x128xf32>
      %86 = arith.mulf %70, %78 : vector<8x128xf32>
      %87 = arith.addf %85, %86 : vector<8x128xf32>
      %88 = math.tanh %87 : vector<8x128xf32>
      %89 = arith.mulf %84, %88 : vector<8x128xf32>
      %c0_52 = arith.constant 0 : index
      %c0_53 = arith.constant 0 : index
      %90 = vector.load %arg11[%c0_52, %c0_53] : memref<8x128xf32, #tpu.memory_space<vmem>>, vector<8x128xf32>
      tpu.vector_store %arg11[%c0_52, %c0_53], %63 {strides = array<i32>} : memref<8x128xf32, #tpu.memory_space<vmem>>, vector<8x128xf32>,
      %c0_54 = arith.constant 0 : index
      %c0_55 = arith.constant 0 : index
      %91 = vector.load %arg12[%c0_54, %c0_55] : memref<8x128xf32, #tpu.memory_space<vmem>>, vector<8x128xf32>
      tpu.vector_store %arg12[%c0_54, %c0_55], %61 {strides = array<i32>} : memref<8x128xf32, #tpu.memory_space<vmem>>, vector<8x128xf32>,
      %c0_56 = arith.constant 0 : index
      %c0_57 = arith.constant 0 : index
      %92 = vector.load %arg13[%c0_56, %c0_57] : memref<8x128xf32, #tpu.memory_space<vmem>>, vector<8x128xf32>
      tpu.vector_store %arg13[%c0_56, %c0_57], %89 {strides = array<i32>} : memref<8x128xf32, #tpu.memory_space<vmem>>, vector<8x128xf32>,
      %c0_58 = arith.constant 0 : index
      %c0_59 = arith.constant 0 : index
      %93 = vector.load %arg14[%c0_58, %c0_59] : memref<8x128xf32, #tpu.memory_space<vmem>>, vector<8x128xf32>
      tpu.vector_store %arg14[%c0_58, %c0_59], %87 {strides = array<i32>} : memref<8x128xf32, #tpu.memory_space<vmem>>, vector<8x128xf32>,
      %94 = arith.index_cast %23 : i32 to index
      %c0_60 = arith.constant 0 : index
      %c0_61 = arith.constant 0 : index
      %95 = vector.load %arg7[%94, %c0_60, %c0_61] : memref<8x8x128xf32, #tpu.memory_space<vmem>>, vector<1x8x128xf32>
      %96 = vector.shape_cast %95 : vector<1x8x128xf32> to vector<8x128xf32>
      %97 = vector.shape_cast %63 : vector<8x128xf32> to vector<1x8x128xf32>
      tpu.vector_store %arg7[%94, %c0_60, %c0_61], %97 {strides = array<i32>} : memref<8x8x128xf32, #tpu.memory_space<vmem>>, vector<1x8x128xf32>,
      %98 = arith.index_cast %23 : i32 to index
      %c0_62 = arith.constant 0 : index
      %c0_63 = arith.constant 0 : index
      %99 = vector.load %arg8[%98, %c0_62, %c0_63] : memref<8x8x128xf32, #tpu.memory_space<vmem>>, vector<1x8x128xf32>
      %100 = vector.shape_cast %99 : vector<1x8x128xf32> to vector<8x128xf32>
      %101 = vector.shape_cast %89 : vector<8x128xf32> to vector<1x8x128xf32>
      tpu.vector_store %arg8[%98, %c0_62, %c0_63], %101 {strides = array<i32>} : memref<8x8x128xf32, #tpu.memory_space<vmem>>, vector<1x8x128xf32>,
    }
    %c8_i32_26 = arith.constant 8 : i32
    return
  }
}

module attributes {stable_mosaic.version = 11 : i64} {
  func.func @_bcmm_kernel(%arg0: i32, %arg1: memref<64x64xbf16, #tpu.memory_space<vmem>>, %arg2: memref<64x128xbf16, #tpu.memory_space<vmem>>, %arg3: memref<64x1xf32, #tpu.memory_space<vmem>>, %arg4: memref<32x128xf32, #tpu.memory_space<vmem>>, %arg5: memref<32x128xf32, #tpu.memory_space<vmem>>) attributes {dimension_semantics = [#tpu.dimension_semantics<parallel>], iteration_bounds = array<i64: 1>, scalar_prefetch = 0 : i64, scratch_operands = 0 : i64, tpu.core_type = #tpu.core_type<tc>, window_params = [{pipeline_mode = #tpu.pipeline_mode<synchronous>, transform_indices = @transform_0, window_bounds = array<i64: 64, 64>}, {transform_indices = @transform_1, window_bounds = array<i64: 64, 128>}, {pipeline_mode = #tpu.pipeline_mode<synchronous>, transform_indices = @transform_2, window_bounds = array<i64: 64, 1>}, {transform_indices = @transform_3, window_bounds = array<i64: 32, 128>}, {transform_indices = @transform_4, window_bounds = array<i64: 32, 128>}]} {
    %c0 = arith.constant 0 : index
    %c0_0 = arith.constant 0 : index
    %0 = vector.load %arg1[%c0, %c0_0] : memref<64x64xbf16, #tpu.memory_space<vmem>>, vector<64x64xbf16>
    %c0_1 = arith.constant 0 : index
    %c0_2 = arith.constant 0 : index
    %1 = vector.load %arg2[%c0_1, %c0_2] : memref<64x128xbf16, #tpu.memory_space<vmem>>, vector<64x128xbf16>
    %cst = arith.constant dense<0.000000e+00> : vector<64x128xf32>
    %2 = tpu.matmul %0, %1, %cst {dimension_numbers = #tpu.dot_dimension_numbers<[1], [0], [0], [1], [0, 0, 1, 1], [], []>} : vector<64x64xbf16>, vector<64x128xbf16>, vector<64x128xf32> -> vector<64x128xf32>
    %c0_3 = arith.constant 0 : index
    %c0_4 = arith.constant 0 : index
    %3 = vector.load %arg3[%c0_3, %c0_4] : memref<64x1xf32, #tpu.memory_space<vmem>>, vector<64x1xf32>
    %4 = vector.broadcast %3 : vector<64x1xf32> to vector<64x128xf32>
    %5 = arith.addf %2, %4 : vector<64x128xf32>
    %6 = vector.extract_strided_slice %5 {offsets = [0, 0], sizes = [32, 128], strides = [1, 1]} : vector<64x128xf32> to vector<32x128xf32>
    %c0_5 = arith.constant 0 : index
    %c0_6 = arith.constant 0 : index
    %7 = vector.load %arg4[%c0_5, %c0_6] : memref<32x128xf32, #tpu.memory_space<vmem>>, vector<32x128xf32>
    tpu.vector_store %arg4[%c0_5, %c0_6], %6 {strides = array<i32>} : memref<32x128xf32, #tpu.memory_space<vmem>>, vector<32x128xf32>,
    %8 = vector.extract_strided_slice %5 {offsets = [32, 0], sizes = [32, 128], strides = [1, 1]} : vector<64x128xf32> to vector<32x128xf32>
    %c0_7 = arith.constant 0 : index
    %c0_8 = arith.constant 0 : index
    %9 = vector.load %arg5[%c0_7, %c0_8] : memref<32x128xf32, #tpu.memory_space<vmem>>, vector<32x128xf32>
    tpu.vector_store %arg5[%c0_7, %c0_8], %8 {strides = array<i32>} : memref<32x128xf32, #tpu.memory_space<vmem>>, vector<32x128xf32>,
    return
  }
  func.func @transform_0(%arg0: i32) -> (i32, i32) {
    %c0_i32 = arith.constant 0 : i32
    %c0_i32_0 = arith.constant 0 : i32
    %c0_i32_1 = arith.constant 0 : i32
    return %c0_i32, %c0_i32_0 : i32, i32
  }
  func.func @transform_1(%arg0: i32) -> (i32, i32) {
    %c0_i32 = arith.constant 0 : i32
    %c0_i32_0 = arith.constant 0 : i32
    return %c0_i32, %arg0 : i32, i32
  }
  func.func @transform_2(%arg0: i32) -> (i32, i32) {
    %c0_i32 = arith.constant 0 : i32
    %c0_i32_0 = arith.constant 0 : i32
    %c0_i32_1 = arith.constant 0 : i32
    return %c0_i32, %c0_i32_0 : i32, i32
  }
  func.func @transform_3(%arg0: i32) -> (i32, i32) {
    %c0_i32 = arith.constant 0 : i32
    %c0_i32_0 = arith.constant 0 : i32
    return %c0_i32, %arg0 : i32, i32
  }
  func.func @transform_4(%arg0: i32) -> (i32, i32) {
    %c0_i32 = arith.constant 0 : i32
    %c0_i32_0 = arith.constant 0 : i32
    return %c0_i32, %arg0 : i32, i32
  }
}

module attributes {stable_mosaic.version = 11 : i64} {
  func.func @_bcmm_kernel(%arg0: i32, %arg1: memref<16x192xbf16, #tpu.memory_space<vmem>>, %arg2: memref<192x128xbf16, #tpu.memory_space<vmem>>, %arg3: memref<16x1xf32, #tpu.memory_space<vmem>>, %arg4: memref<8x128xf32, #tpu.memory_space<vmem>>, %arg5: memref<8x128xf32, #tpu.memory_space<vmem>>) attributes {dimension_semantics = [#tpu.dimension_semantics<parallel>], iteration_bounds = array<i64: 1>, scalar_prefetch = 0 : i64, scratch_operands = 0 : i64, tpu.core_type = #tpu.core_type<tc>, window_params = [{pipeline_mode = #tpu.pipeline_mode<synchronous>, transform_indices = @transform_0, window_bounds = array<i64: 16, 192>}, {transform_indices = @transform_1, window_bounds = array<i64: 192, 128>}, {pipeline_mode = #tpu.pipeline_mode<synchronous>, transform_indices = @transform_2, window_bounds = array<i64: 16, 1>}, {transform_indices = @transform_3, window_bounds = array<i64: 8, 128>}, {transform_indices = @transform_4, window_bounds = array<i64: 8, 128>}]} {
    %c0 = arith.constant 0 : index
    %c0_0 = arith.constant 0 : index
    %0 = vector.load %arg1[%c0, %c0_0] : memref<16x192xbf16, #tpu.memory_space<vmem>>, vector<16x192xbf16>
    %c0_1 = arith.constant 0 : index
    %c0_2 = arith.constant 0 : index
    %1 = vector.load %arg2[%c0_1, %c0_2] : memref<192x128xbf16, #tpu.memory_space<vmem>>, vector<192x128xbf16>
    %cst = arith.constant dense<0.000000e+00> : vector<16x128xf32>
    %2 = tpu.matmul %0, %1, %cst {dimension_numbers = #tpu.dot_dimension_numbers<[1], [0], [0], [1], [0, 0, 1, 1], [], []>} : vector<16x192xbf16>, vector<192x128xbf16>, vector<16x128xf32> -> vector<16x128xf32>
    %c0_3 = arith.constant 0 : index
    %c0_4 = arith.constant 0 : index
    %3 = vector.load %arg3[%c0_3, %c0_4] : memref<16x1xf32, #tpu.memory_space<vmem>>, vector<16x1xf32>
    %4 = vector.broadcast %3 : vector<16x1xf32> to vector<16x128xf32>
    %5 = arith.addf %2, %4 : vector<16x128xf32>
    %6 = vector.extract_strided_slice %5 {offsets = [0, 0], sizes = [8, 128], strides = [1, 1]} : vector<16x128xf32> to vector<8x128xf32>
    %c0_5 = arith.constant 0 : index
    %c0_6 = arith.constant 0 : index
    %7 = vector.load %arg4[%c0_5, %c0_6] : memref<8x128xf32, #tpu.memory_space<vmem>>, vector<8x128xf32>
    tpu.vector_store %arg4[%c0_5, %c0_6], %6 {strides = array<i32>} : memref<8x128xf32, #tpu.memory_space<vmem>>, vector<8x128xf32>,
    %8 = vector.extract_strided_slice %5 {offsets = [8, 0], sizes = [8, 128], strides = [1, 1]} : vector<16x128xf32> to vector<8x128xf32>
    %c0_7 = arith.constant 0 : index
    %c0_8 = arith.constant 0 : index
    %9 = vector.load %arg5[%c0_7, %c0_8] : memref<8x128xf32, #tpu.memory_space<vmem>>, vector<8x128xf32>
    tpu.vector_store %arg5[%c0_7, %c0_8], %8 {strides = array<i32>} : memref<8x128xf32, #tpu.memory_space<vmem>>, vector<8x128xf32>,
    return
  }
  func.func @transform_0(%arg0: i32) -> (i32, i32) {
    %c0_i32 = arith.constant 0 : i32
    %c0_i32_0 = arith.constant 0 : i32
    %c0_i32_1 = arith.constant 0 : i32
    return %c0_i32, %c0_i32_0 : i32, i32
  }
  func.func @transform_1(%arg0: i32) -> (i32, i32) {
    %c0_i32 = arith.constant 0 : i32
    %c0_i32_0 = arith.constant 0 : i32
    return %c0_i32, %arg0 : i32, i32
  }
  func.func @transform_2(%arg0: i32) -> (i32, i32) {
    %c0_i32 = arith.constant 0 : i32
    %c0_i32_0 = arith.constant 0 : i32
    %c0_i32_1 = arith.constant 0 : i32
    return %c0_i32, %c0_i32_0 : i32, i32
  }
  func.func @transform_3(%arg0: i32) -> (i32, i32) {
    %c0_i32 = arith.constant 0 : i32
    %c0_i32_0 = arith.constant 0 : i32
    return %c0_i32, %arg0 : i32, i32
  }
  func.func @transform_4(%arg0: i32) -> (i32, i32) {
    %c0_i32 = arith.constant 0 : i32
    %c0_i32_0 = arith.constant 0 : i32
    return %c0_i32, %arg0 : i32, i32
  }
}

module attributes {stable_mosaic.version = 11 : i64} {
  func.func @_bcmm_kernel(%arg0: i32, %arg1: memref<16x192xbf16, #tpu.memory_space<vmem>>, %arg2: memref<192x256xbf16, #tpu.memory_space<vmem>>, %arg3: memref<16x1xf32, #tpu.memory_space<vmem>>, %arg4: memref<8x256xf32, #tpu.memory_space<vmem>>, %arg5: memref<8x256xf32, #tpu.memory_space<vmem>>) attributes {dimension_semantics = [#tpu.dimension_semantics<parallel>], iteration_bounds = array<i64: 1>, scalar_prefetch = 0 : i64, scratch_operands = 0 : i64, tpu.core_type = #tpu.core_type<tc>, window_params = [{pipeline_mode = #tpu.pipeline_mode<synchronous>, transform_indices = @transform_0, window_bounds = array<i64: 16, 192>}, {transform_indices = @transform_1, window_bounds = array<i64: 192, 256>}, {pipeline_mode = #tpu.pipeline_mode<synchronous>, transform_indices = @transform_2, window_bounds = array<i64: 16, 1>}, {transform_indices = @transform_3, window_bounds = array<i64: 8, 256>}, {transform_indices = @transform_4, window_bounds = array<i64: 8, 256>}]} {
    %c0 = arith.constant 0 : index
    %c0_0 = arith.constant 0 : index
    %0 = vector.load %arg1[%c0, %c0_0] : memref<16x192xbf16, #tpu.memory_space<vmem>>, vector<16x192xbf16>
    %c0_1 = arith.constant 0 : index
    %c0_2 = arith.constant 0 : index
    %1 = vector.load %arg2[%c0_1, %c0_2] : memref<192x256xbf16, #tpu.memory_space<vmem>>, vector<192x256xbf16>
    %cst = arith.constant dense<0.000000e+00> : vector<16x256xf32>
    %2 = tpu.matmul %0, %1, %cst {dimension_numbers = #tpu.dot_dimension_numbers<[1], [0], [0], [1], [0, 0, 1, 1], [], []>} : vector<16x192xbf16>, vector<192x256xbf16>, vector<16x256xf32> -> vector<16x256xf32>
    %c0_3 = arith.constant 0 : index
    %c0_4 = arith.constant 0 : index
    %3 = vector.load %arg3[%c0_3, %c0_4] : memref<16x1xf32, #tpu.memory_space<vmem>>, vector<16x1xf32>
    %4 = vector.broadcast %3 : vector<16x1xf32> to vector<16x256xf32>
    %5 = arith.addf %2, %4 : vector<16x256xf32>
    %6 = vector.extract_strided_slice %5 {offsets = [0, 0], sizes = [8, 256], strides = [1, 1]} : vector<16x256xf32> to vector<8x256xf32>
    %c0_5 = arith.constant 0 : index
    %c0_6 = arith.constant 0 : index
    %7 = vector.load %arg4[%c0_5, %c0_6] : memref<8x256xf32, #tpu.memory_space<vmem>>, vector<8x256xf32>
    tpu.vector_store %arg4[%c0_5, %c0_6], %6 {strides = array<i32>} : memref<8x256xf32, #tpu.memory_space<vmem>>, vector<8x256xf32>,
    %8 = vector.extract_strided_slice %5 {offsets = [8, 0], sizes = [8, 256], strides = [1, 1]} : vector<16x256xf32> to vector<8x256xf32>
    %c0_7 = arith.constant 0 : index
    %c0_8 = arith.constant 0 : index
    %9 = vector.load %arg5[%c0_7, %c0_8] : memref<8x256xf32, #tpu.memory_space<vmem>>, vector<8x256xf32>
    tpu.vector_store %arg5[%c0_7, %c0_8], %8 {strides = array<i32>} : memref<8x256xf32, #tpu.memory_space<vmem>>, vector<8x256xf32>,
    return
  }
  func.func @transform_0(%arg0: i32) -> (i32, i32) {
    %c0_i32 = arith.constant 0 : i32
    %c0_i32_0 = arith.constant 0 : i32
    %c0_i32_1 = arith.constant 0 : i32
    return %c0_i32, %c0_i32_0 : i32, i32
  }
  func.func @transform_1(%arg0: i32) -> (i32, i32) {
    %c0_i32 = arith.constant 0 : i32
    %c0_i32_0 = arith.constant 0 : i32
    return %c0_i32, %arg0 : i32, i32
  }
  func.func @transform_2(%arg0: i32) -> (i32, i32) {
    %c0_i32 = arith.constant 0 : i32
    %c0_i32_0 = arith.constant 0 : i32
    %c0_i32_1 = arith.constant 0 : i32
    return %c0_i32, %c0_i32_0 : i32, i32
  }
  func.func @transform_3(%arg0: i32) -> (i32, i32) {
    %c0_i32 = arith.constant 0 : i32
    %c0_i32_0 = arith.constant 0 : i32
    return %c0_i32, %arg0 : i32, i32
  }
  func.func @transform_4(%arg0: i32) -> (i32, i32) {
    %c0_i32 = arith.constant 0 : i32
    %c0_i32_0 = arith.constant 0 : i32
    return %c0_i32, %arg0 : i32, i32
  }
}

module attributes {stable_mosaic.version = 11 : i64} {
  func.func @_cbn_prelu_kernel(%arg0: i32, %arg1: memref<2x128xf32, #tpu.memory_space<vmem>>, %arg2: memref<2x128xf32, #tpu.memory_space<vmem>>, %arg3: memref<1x128xf32, #tpu.memory_space<vmem>>, %arg4: memref<1x128xf32, #tpu.memory_space<vmem>>, %arg5: memref<1x128xf32, #tpu.memory_space<vmem>>, %arg6: memref<1x128xf32, #tpu.memory_space<vmem>>, %arg7: memref<1x128xf32, #tpu.memory_space<vmem>>, %arg8: memref<1xf32, #tpu.memory_space<smem>>, %arg9: memref<2x128xf32, #tpu.memory_space<vmem>>, %arg10: memref<2x128xf32, #tpu.memory_space<vmem>>) attributes {dimension_semantics = [#tpu.dimension_semantics<parallel>], iteration_bounds = array<i64: 1>, scalar_prefetch = 0 : i64, scratch_operands = 0 : i64, tpu.core_type = #tpu.core_type<tc>, window_params = [{transform_indices = @transform_0, window_bounds = array<i64: 2, 128>}, {transform_indices = @transform_1, window_bounds = array<i64: 2, 128>}, {transform_indices = @transform_2, window_bounds = array<i64: 1, 128>}, {transform_indices = @transform_3, window_bounds = array<i64: 1, 128>}, {transform_indices = @transform_4, window_bounds = array<i64: 1, 128>}, {transform_indices = @transform_5, window_bounds = array<i64: 1, 128>}, {transform_indices = @transform_6, window_bounds = array<i64: 1, 128>}, {transform_indices = @transform_7, window_bounds = array<i64: 1>}, {transform_indices = @transform_8, window_bounds = array<i64: 2, 128>}, {transform_indices = @transform_9, window_bounds = array<i64: 2, 128>}]} {
    %c0 = arith.constant 0 : index
    %0 = memref.load %arg8[%c0] : memref<1xf32, #tpu.memory_space<smem>>
    %c0_0 = arith.constant 0 : index
    %c0_1 = arith.constant 0 : index
    %1 = vector.load %arg1[%c0_0, %c0_1] : memref<2x128xf32, #tpu.memory_space<vmem>>, vector<2x128xf32>
    %c0_2 = arith.constant 0 : index
    %c0_3 = arith.constant 0 : index
    %2 = vector.load %arg2[%c0_2, %c0_3] : memref<2x128xf32, #tpu.memory_space<vmem>>, vector<2x128xf32>
    %cst = arith.constant dense<0.000000e+00> : vector<128xf32>
    %3 = vector.multi_reduction <add>, %1, %cst [0] : vector<2x128xf32> to vector<128xf32>
    %4 = vector.shape_cast %3 : vector<128xf32> to vector<1x128xf32>
    %cst_4 = arith.constant 2.000000e+00 : f32
    %5 = vector.broadcast %cst_4 : f32 to vector<1x128xf32>
    %6 = arith.divf %4, %5 : vector<1x128xf32>
    %cst_5 = arith.constant dense<0.000000e+00> : vector<128xf32>
    %7 = vector.multi_reduction <add>, %2, %cst_5 [0] : vector<2x128xf32> to vector<128xf32>
    %8 = vector.shape_cast %7 : vector<128xf32> to vector<1x128xf32>
    %cst_6 = arith.constant 2.000000e+00 : f32
    %9 = vector.broadcast %cst_6 : f32 to vector<1x128xf32>
    %10 = arith.divf %8, %9 : vector<1x128xf32>
    %11 = vector.broadcast %6 : vector<1x128xf32> to vector<2x128xf32>
    %12 = arith.subf %1, %11 : vector<2x128xf32>
    %13 = vector.broadcast %10 : vector<1x128xf32> to vector<2x128xf32>
    %14 = arith.subf %2, %13 : vector<2x128xf32>
    %15 = arith.mulf %12, %12 : vector<2x128xf32>
    %cst_7 = arith.constant dense<0.000000e+00> : vector<128xf32>
    %16 = vector.multi_reduction <add>, %15, %cst_7 [0] : vector<2x128xf32> to vector<128xf32>
    %17 = vector.shape_cast %16 : vector<128xf32> to vector<1x128xf32>
    %cst_8 = arith.constant 2.000000e+00 : f32
    %18 = vector.broadcast %cst_8 : f32 to vector<1x128xf32>
    %19 = arith.divf %17, %18 : vector<1x128xf32>
    %cst_9 = arith.constant 9.99999974E-6 : f32
    %20 = vector.broadcast %cst_9 : f32 to vector<1x128xf32>
    %21 = arith.addf %19, %20 : vector<1x128xf32>
    %22 = arith.mulf %14, %14 : vector<2x128xf32>
    %cst_10 = arith.constant dense<0.000000e+00> : vector<128xf32>
    %23 = vector.multi_reduction <add>, %22, %cst_10 [0] : vector<2x128xf32> to vector<128xf32>
    %24 = vector.shape_cast %23 : vector<128xf32> to vector<1x128xf32>
    %cst_11 = arith.constant 2.000000e+00 : f32
    %25 = vector.broadcast %cst_11 : f32 to vector<1x128xf32>
    %26 = arith.divf %24, %25 : vector<1x128xf32>
    %cst_12 = arith.constant 9.99999974E-6 : f32
    %27 = vector.broadcast %cst_12 : f32 to vector<1x128xf32>
    %28 = arith.addf %26, %27 : vector<1x128xf32>
    %29 = arith.mulf %12, %14 : vector<2x128xf32>
    %cst_13 = arith.constant dense<0.000000e+00> : vector<128xf32>
    %30 = vector.multi_reduction <add>, %29, %cst_13 [0] : vector<2x128xf32> to vector<128xf32>
    %31 = vector.shape_cast %30 : vector<128xf32> to vector<1x128xf32>
    %cst_14 = arith.constant 2.000000e+00 : f32
    %32 = vector.broadcast %cst_14 : f32 to vector<1x128xf32>
    %33 = arith.divf %31, %32 : vector<1x128xf32>
    %34 = arith.addf %21, %28 : vector<1x128xf32>
    %35 = arith.mulf %21, %28 : vector<1x128xf32>
    %36 = arith.mulf %33, %33 : vector<1x128xf32>
    %37 = arith.subf %35, %36 : vector<1x128xf32>
    %38 = math.sqrt %37 : vector<1x128xf32>
    %cst_15 = arith.constant 2.000000e+00 : f32
    %39 = vector.broadcast %cst_15 : f32 to vector<1x128xf32>
    %40 = arith.mulf %39, %38 : vector<1x128xf32>
    %41 = arith.addf %34, %40 : vector<1x128xf32>
    %42 = arith.mulf %37, %41 : vector<1x128xf32>
    %43 = math.rsqrt %42 : vector<1x128xf32>
    %44 = arith.addf %28, %38 : vector<1x128xf32>
    %45 = arith.mulf %44, %43 : vector<1x128xf32>
    %46 = arith.addf %21, %38 : vector<1x128xf32>
    %47 = arith.mulf %46, %43 : vector<1x128xf32>
    %cst_16 = arith.constant 0.000000e+00 : f32
    %48 = vector.broadcast %cst_16 : f32 to vector<1x128xf32>
    %49 = arith.subf %48, %33 : vector<1x128xf32>
    %50 = arith.mulf %49, %43 : vector<1x128xf32>
    %51 = vector.broadcast %45 : vector<1x128xf32> to vector<2x128xf32>
    %52 = arith.mulf %51, %12 : vector<2x128xf32>
    %53 = vector.broadcast %50 : vector<1x128xf32> to vector<2x128xf32>
    %54 = arith.mulf %53, %14 : vector<2x128xf32>
    %55 = arith.addf %52, %54 : vector<2x128xf32>
    %56 = vector.broadcast %50 : vector<1x128xf32> to vector<2x128xf32>
    %57 = arith.mulf %56, %12 : vector<2x128xf32>
    %58 = vector.broadcast %47 : vector<1x128xf32> to vector<2x128xf32>
    %59 = arith.mulf %58, %14 : vector<2x128xf32>
    %60 = arith.addf %57, %59 : vector<2x128xf32>
    %c0_17 = arith.constant 0 : index
    %c0_18 = arith.constant 0 : index
    %61 = vector.load %arg3[%c0_17, %c0_18] : memref<1x128xf32, #tpu.memory_space<vmem>>, vector<1x128xf32>
    %62 = vector.broadcast %61 : vector<1x128xf32> to vector<2x128xf32>
    %63 = arith.mulf %62, %55 : vector<2x128xf32>
    %c0_19 = arith.constant 0 : index
    %c0_20 = arith.constant 0 : index
    %64 = vector.load %arg4[%c0_19, %c0_20] : memref<1x128xf32, #tpu.memory_space<vmem>>, vector<1x128xf32>
    %65 = vector.broadcast %64 : vector<1x128xf32> to vector<2x128xf32>
    %66 = arith.mulf %65, %60 : vector<2x128xf32>
    %67 = arith.addf %63, %66 : vector<2x128xf32>
    %c0_21 = arith.constant 0 : index
    %c0_22 = arith.constant 0 : index
    %68 = vector.load %arg6[%c0_21, %c0_22] : memref<1x128xf32, #tpu.memory_space<vmem>>, vector<1x128xf32>
    %69 = vector.broadcast %68 : vector<1x128xf32> to vector<2x128xf32>
    %70 = arith.addf %67, %69 : vector<2x128xf32>
    %c0_23 = arith.constant 0 : index
    %c0_24 = arith.constant 0 : index
    %71 = vector.load %arg4[%c0_23, %c0_24] : memref<1x128xf32, #tpu.memory_space<vmem>>, vector<1x128xf32>
    %72 = vector.broadcast %71 : vector<1x128xf32> to vector<2x128xf32>
    %73 = arith.mulf %72, %55 : vector<2x128xf32>
    %c0_25 = arith.constant 0 : index
    %c0_26 = arith.constant 0 : index
    %74 = vector.load %arg5[%c0_25, %c0_26] : memref<1x128xf32, #tpu.memory_space<vmem>>, vector<1x128xf32>
    %75 = vector.broadcast %74 : vector<1x128xf32> to vector<2x128xf32>
    %76 = arith.mulf %75, %60 : vector<2x128xf32>
    %77 = arith.addf %73, %76 : vector<2x128xf32>
    %c0_27 = arith.constant 0 : index
    %c0_28 = arith.constant 0 : index
    %78 = vector.load %arg7[%c0_27, %c0_28] : memref<1x128xf32, #tpu.memory_space<vmem>>, vector<1x128xf32>
    %79 = vector.broadcast %78 : vector<1x128xf32> to vector<2x128xf32>
    %80 = arith.addf %77, %79 : vector<2x128xf32>
    %cst_29 = arith.constant 0.000000e+00 : f32
    %81 = vector.broadcast %cst_29 : f32 to vector<2x128xf32>
    %82 = arith.cmpf oge, %70, %81 : vector<2x128xf32>
    %83 = vector.broadcast %0 : f32 to vector<2x128xf32>
    %84 = arith.mulf %83, %70 : vector<2x128xf32>
    %85 = arith.select %82, %70, %84 : vector<2x128xi1>, vector<2x128xf32>
    %c0_30 = arith.constant 0 : index
    %c0_31 = arith.constant 0 : index
    %86 = vector.load %arg9[%c0_30, %c0_31] : memref<2x128xf32, #tpu.memory_space<vmem>>, vector<2x128xf32>
    tpu.vector_store %arg9[%c0_30, %c0_31], %85 {strides = array<i32>} : memref<2x128xf32, #tpu.memory_space<vmem>>, vector<2x128xf32>,
    %cst_32 = arith.constant 0.000000e+00 : f32
    %87 = vector.broadcast %cst_32 : f32 to vector<2x128xf32>
    %88 = arith.cmpf oge, %80, %87 : vector<2x128xf32>
    %89 = vector.broadcast %0 : f32 to vector<2x128xf32>
    %90 = arith.mulf %89, %80 : vector<2x128xf32>
    %91 = arith.select %88, %80, %90 : vector<2x128xi1>, vector<2x128xf32>
    %c0_33 = arith.constant 0 : index
    %c0_34 = arith.constant 0 : index
    %92 = vector.load %arg10[%c0_33, %c0_34] : memref<2x128xf32, #tpu.memory_space<vmem>>, vector<2x128xf32>
    tpu.vector_store %arg10[%c0_33, %c0_34], %91 {strides = array<i32>} : memref<2x128xf32, #tpu.memory_space<vmem>>, vector<2x128xf32>,
    return
  }
  func.func @transform_0(%arg0: i32) -> (i32, i32) {
    %c0_i32 = arith.constant 0 : i32
    %c0_i32_0 = arith.constant 0 : i32
    return %c0_i32, %arg0 : i32, i32
  }
  func.func @transform_1(%arg0: i32) -> (i32, i32) {
    %c0_i32 = arith.constant 0 : i32
    %c0_i32_0 = arith.constant 0 : i32
    return %c0_i32, %arg0 : i32, i32
  }
  func.func @transform_2(%arg0: i32) -> (i32, i32) {
    %c0_i32 = arith.constant 0 : i32
    %c0_i32_0 = arith.constant 0 : i32
    return %c0_i32, %arg0 : i32, i32
  }
  func.func @transform_3(%arg0: i32) -> (i32, i32) {
    %c0_i32 = arith.constant 0 : i32
    %c0_i32_0 = arith.constant 0 : i32
    return %c0_i32, %arg0 : i32, i32
  }
  func.func @transform_4(%arg0: i32) -> (i32, i32) {
    %c0_i32 = arith.constant 0 : i32
    %c0_i32_0 = arith.constant 0 : i32
    return %c0_i32, %arg0 : i32, i32
  }
  func.func @transform_5(%arg0: i32) -> (i32, i32) {
    %c0_i32 = arith.constant 0 : i32
    %c0_i32_0 = arith.constant 0 : i32
    return %c0_i32, %arg0 : i32, i32
  }
  func.func @transform_6(%arg0: i32) -> (i32, i32) {
    %c0_i32 = arith.constant 0 : i32
    %c0_i32_0 = arith.constant 0 : i32
    return %c0_i32, %arg0 : i32, i32
  }
  func.func @transform_7(%arg0: i32) -> i32 {
    %c0_i32 = arith.constant 0 : i32
    %c0_i32_0 = arith.constant 0 : i32
    return %c0_i32 : i32
  }
  func.func @transform_8(%arg0: i32) -> (i32, i32) {
    %c0_i32 = arith.constant 0 : i32
    %c0_i32_0 = arith.constant 0 : i32
    return %c0_i32, %arg0 : i32, i32
  }
  func.func @transform_9(%arg0: i32) -> (i32, i32) {
    %c0_i32 = arith.constant 0 : i32
    %c0_i32_0 = arith.constant 0 : i32
    return %c0_i32, %arg0 : i32, i32
  }
}

module attributes {stable_mosaic.version = 11 : i64} {
  func.func @_bcmm_kernel(%arg0: i32, %arg1: memref<16x16xbf16, #tpu.memory_space<vmem>>, %arg2: memref<16x256xbf16, #tpu.memory_space<vmem>>, %arg3: memref<16x1xf32, #tpu.memory_space<vmem>>, %arg4: memref<8x256xf32, #tpu.memory_space<vmem>>, %arg5: memref<8x256xf32, #tpu.memory_space<vmem>>) attributes {dimension_semantics = [#tpu.dimension_semantics<parallel>], iteration_bounds = array<i64: 1>, scalar_prefetch = 0 : i64, scratch_operands = 0 : i64, tpu.core_type = #tpu.core_type<tc>, window_params = [{pipeline_mode = #tpu.pipeline_mode<synchronous>, transform_indices = @transform_0, window_bounds = array<i64: 16, 16>}, {transform_indices = @transform_1, window_bounds = array<i64: 16, 256>}, {pipeline_mode = #tpu.pipeline_mode<synchronous>, transform_indices = @transform_2, window_bounds = array<i64: 16, 1>}, {transform_indices = @transform_3, window_bounds = array<i64: 8, 256>}, {transform_indices = @transform_4, window_bounds = array<i64: 8, 256>}]} {
    %c0 = arith.constant 0 : index
    %c0_0 = arith.constant 0 : index
    %0 = vector.load %arg1[%c0, %c0_0] : memref<16x16xbf16, #tpu.memory_space<vmem>>, vector<16x16xbf16>
    %c0_1 = arith.constant 0 : index
    %c0_2 = arith.constant 0 : index
    %1 = vector.load %arg2[%c0_1, %c0_2] : memref<16x256xbf16, #tpu.memory_space<vmem>>, vector<16x256xbf16>
    %cst = arith.constant dense<0.000000e+00> : vector<16x256xf32>
    %2 = tpu.matmul %0, %1, %cst {dimension_numbers = #tpu.dot_dimension_numbers<[1], [0], [0], [1], [0, 0, 1, 1], [], []>} : vector<16x16xbf16>, vector<16x256xbf16>, vector<16x256xf32> -> vector<16x256xf32>
    %c0_3 = arith.constant 0 : index
    %c0_4 = arith.constant 0 : index
    %3 = vector.load %arg3[%c0_3, %c0_4] : memref<16x1xf32, #tpu.memory_space<vmem>>, vector<16x1xf32>
    %4 = vector.broadcast %3 : vector<16x1xf32> to vector<16x256xf32>
    %5 = arith.addf %2, %4 : vector<16x256xf32>
    %6 = math.tanh %5 : vector<16x256xf32>
    %7 = vector.extract_strided_slice %6 {offsets = [0, 0], sizes = [8, 256], strides = [1, 1]} : vector<16x256xf32> to vector<8x256xf32>
    %c0_5 = arith.constant 0 : index
    %c0_6 = arith.constant 0 : index
    %8 = vector.load %arg4[%c0_5, %c0_6] : memref<8x256xf32, #tpu.memory_space<vmem>>, vector<8x256xf32>
    tpu.vector_store %arg4[%c0_5, %c0_6], %7 {strides = array<i32>} : memref<8x256xf32, #tpu.memory_space<vmem>>, vector<8x256xf32>,
    %9 = vector.extract_strided_slice %6 {offsets = [8, 0], sizes = [8, 256], strides = [1, 1]} : vector<16x256xf32> to vector<8x256xf32>
    %c0_7 = arith.constant 0 : index
    %c0_8 = arith.constant 0 : index
    %10 = vector.load %arg5[%c0_7, %c0_8] : memref<8x256xf32, #tpu.memory_space<vmem>>, vector<8x256xf32>
    tpu.vector_store %arg5[%c0_7, %c0_8], %9 {strides = array<i32>} : memref<8x256xf32, #tpu.memory_space<vmem>>, vector<8x256xf32>,
    return
  }
  func.func @transform_0(%arg0: i32) -> (i32, i32) {
    %c0_i32 = arith.constant 0 : i32
    %c0_i32_0 = arith.constant 0 : i32
    %c0_i32_1 = arith.constant 0 : i32
    return %c0_i32, %c0_i32_0 : i32, i32
  }
  func.func @transform_1(%arg0: i32) -> (i32, i32) {
    %c0_i32 = arith.constant 0 : i32
    %c0_i32_0 = arith.constant 0 : i32
    return %c0_i32, %arg0 : i32, i32
  }
  func.func @transform_2(%arg0: i32) -> (i32, i32) {
    %c0_i32 = arith.constant 0 : i32
    %c0_i32_0 = arith.constant 0 : i32
    %c0_i32_1 = arith.constant 0 : i32
    return %c0_i32, %c0_i32_0 : i32, i32
  }
  func.func @transform_3(%arg0: i32) -> (i32, i32) {
    %c0_i32 = arith.constant 0 : i32
    %c0_i32_0 = arith.constant 0 : i32
    return %c0_i32, %arg0 : i32, i32
  }
  func.func @transform_4(%arg0: i32) -> (i32, i32) {
    %c0_i32 = arith.constant 0 : i32
    %c0_i32_0 = arith.constant 0 : i32
    return %c0_i32, %arg0 : i32, i32
  }
}

</mosaic_0001>

<llo_original>
// kernel: _lambda_.11
$region0: #{_lambda_.11}
  #allocation0 [shape = 'u32[]', space=smem, size = 0x4, offset = 0x4, fixed_abs, tag = 'smem constant byte address 0x4 - core index']
  #allocation1 [shape = 'u32[144,128]{1,0:T(1,128)}', space=vmem, size = 0x12000, scoped, tag = 'internal scratch']
  %s0 = inlined_call_operand.vmem [shape: bf16[16,32], index: 0, kind: input, shape index: {}]
  %s1 = inlined_call_operand.vmem [shape: bf16[32,128], index: 1, kind: input, shape index: {}]
  %s2 = inlined_call_operand.vmem [shape: f32[16,1], index: 2, kind: input, shape index: {}]
  %s3 = inlined_call_operand.vmem [shape: f32[8,128], index: 3, kind: output, shape index: {0}]
  %s4 = inlined_call_operand.vmem [shape: f32[8,128], index: 4, kind: output, shape index: {1}]
  %5 = xla_tuple %s3, %s4
  %s6 = sld [smem:[#allocation0]]
  $region30: #{_lambda_.11} parent=0
    _
  %s8 = ssub.s32 1, %s6
  %s9 = scalar_select 0, %s8, %s6
  // Predicated region
  $region2: #{_lambda_.11} parent=0 // pred_check
    _
  $region3: #{_lambda_.11} parent=0 // pred_check_branch
    %11 = sbr.rel (0) target = $region5
  $region4: #{_lambda_.11} parent=0 // pred_region
    _
  $region5: #{_lambda_.11} parent=0 // pred_fallthru
    _
  // Predicated region
  $region6: #{_lambda_.11} parent=0 // pred_check
    _
  $region7: #{_lambda_.11} parent=0 // pred_check_branch
    %13 = sbr.rel (0) target = $region9
  $region8: #{_lambda_.11} parent=0 // pred_region
    _
  $region9: #{_lambda_.11} parent=0 // pred_fallthru
    _
  // Predicated region
  $region10: #{_lambda_.11} parent=0 // pred_check
    _
  $region11: #{_lambda_.11} parent=0 // pred_check_branch
    %15 = sbr.rel (0) target = $region13
  $region12: #{_lambda_.11} parent=0 // pred_region
    _
  $region13: #{_lambda_.11} parent=0 // pred_fallthru
    _
  %v17 = vld [vmem:[%s0] sm:$0xf]
  %v18 = vld [vmem:[%s0 + $0x4] sm:$0xf]
  %v19 = vld [vmem:[%s1] sm:$0xf]
  %v20 = vld [vmem:[%s1 + $0x4] sm:$0xf]
  %v21 = vld [vmem:[%s1 + $0x8] sm:$0xf]
  %v22 = vld [vmem:[%s1 + $0xc] sm:$0xf]
  %v23 = vld [vmem:[%s2] sm:$0xff]
  %v24 = vld [vmem:[%s2 + $0x8] sm:$0xff]
  %26 = vset.pattern.permute.xlu0 0
  %27 = vperm.xlu0 %26, %v23
  %v28 = vpop.permute.xlu0 %27
  %31 = vset.pattern.permute.xlu0 0
  %32 = vperm.xlu0 %31, %v24
  %v33 = vpop.permute.xlu0 %32
  %v37 = vunpack.c.l.b16 %v17
  %v38 = vunpack.c.l.b16 %v18
  %v39 = vpack.c.b16 %v38, %v37
  %v44 = vunpack.c.l.b16 %v19
  %v45 = vunpack.c.l.b16 %v20
  %v46 = vunpack.c.l.b16 %v21
  %v47 = vunpack.c.l.b16 %v22
  %v48 = vpack.c.b16 %v45, %v44
  %v49 = vpack.c.b16 %v47, %v46
  %vm52 = vcmask 261120
  %v54 = vsel %vm52, %v39, 0
  %56 = vmatprep.subr.bf16.mxu0 0
  %57 = vmatpush1.bf16.msra.mxu0 0
  %58 = vmatprep.subr.bf16.mxu0 0
  %59 = vmatpush1.bf16.msra.mxu0 0
  %60 = vmatprep.subr.bf16.mxu0 0
  %61 = vmatpush1.bf16.msra.mxu0 0
  %62 = vmatprep.subr.bf16.mxu0 0
  %63 = vmatpush1.bf16.msra.mxu0 0
  %64 = vmatprep.subr.bf16.mxu0 0
  %65 = vmatpush1.bf16.msra.mxu0 0
  %66 = vmatprep.subr.bf16.mxu0 0
  %67 = vmatpush1.bf16.msra.mxu0 0
  %68 = vmatprep.subr.bf16.mxu0 0
  %69 = vmatpush1.bf16.msra.mxu0 %v49
  %70 = vmatprep.subr.bf16.mxu0 0
  %71 = vmatpush1.bf16.msra.mxu0 %v48
  %72 = vmatprep.subr.bf16.mxu0 0
  %73 = vmatpush2.bf16.msra.mxu0 0
  %74 = vmatprep.subr.bf16.mxu0 0
  %75 = vmatpush2.bf16.msra.mxu0 0
  %76 = vmatprep.subr.bf16.mxu0 0
  %77 = vmatpush2.bf16.msra.mxu0 0
  %78 = vmatprep.subr.bf16.mxu0 0
  %79 = vmatpush2.bf16.msra.mxu0 0
  %80 = vmatprep.subr.bf16.mxu0 0
  %81 = vmatpush2.bf16.msra.mxu0 0
  %82 = vmatprep.subr.bf16.mxu0 0
  %83 = vmatpush2.bf16.msra.mxu0 0
  %84 = vmatprep.subr.bf16.mxu0 0
  %85 = vmatpush2.bf16.msra.mxu0 0
  %86 = vmatprep.subr.bf16.mxu0 0
  %87 = vmatpush2.bf16.msra.mxu0 0
  %88 = vmatprep.mubr.bf16.mxu0 0
  %89 = vmatmul.mubr.bf16.gmra.mxu0 %v54
  %v90 = vpop.f32.mrf.mxu0
  %v91 = vadd.f32 %v28, %v90
  %v92 = vpop.f32.mrf.mxu0
  %v93 = vpop.f32.mrf.mxu0
  %v94 = vadd.f32 %v33, %v93
  %v95 = vpop.f32.mrf.mxu0
  %96 = vdwg.mxu0
  %97 = vst [vmem:[%s3] sm:$0xff] %v91
  %98 = vst [vmem:[%s4] sm:$0xff] %v94
  // Predicated region
  $region14: #{_lambda_.11} parent=0 // pred_check
    _
  $region15: #{_lambda_.11} parent=0 // pred_check_branch
    %100 = sbr.rel (0) target = $region17
  $region16: #{_lambda_.11} parent=0 // pred_region
    _
  $region17: #{_lambda_.11} parent=0 // pred_fallthru
    _
  // Predicated region
  $region18: #{_lambda_.11} parent=0 // pred_check
    _
  $region19: #{_lambda_.11} parent=0 // pred_check_branch
    %102 = sbr.rel (0) target = $region21
  $region20: #{_lambda_.11} parent=0 // pred_region
    _
  $region21: #{_lambda_.11} parent=0 // pred_fallthru
    _
  // Predicated region
  $region22: #{_lambda_.11} parent=0 // pred_check
    _
  $region23: #{_lambda_.11} parent=0 // pred_check_branch
    %104 = sbr.rel (0) target = $region25
  $region24: #{_lambda_.11} parent=0 // pred_region
    _
  $region25: #{_lambda_.11} parent=0 // pred_fallthru
    _
  // Predicated region
  $region26: #{_lambda_.11} parent=0 // pred_check
    _
  $region27: #{_lambda_.11} parent=0 // pred_check_branch
    %106 = sbr.rel (0) target = $region29
  $region28: #{_lambda_.11} parent=0 // pred_region
    _
  $region29: #{_lambda_.11} parent=0 // pred_fallthru
    _

// kernel: _lambda_.12
$region0: #{_lambda_.12}
  #allocation0 [shape = 'u32[]', space=smem, size = 0x4, offset = 0x4, fixed_abs, tag = 'smem constant byte address 0x4 - core index']
  #allocation1 [shape = 'u32[144,128]{1,0:T(1,128)}', space=vmem, size = 0x12000, scoped, tag = 'internal scratch']
  #allocation2 [shape = 'f32[1]{0:T(128)S(6)}', space=smem, size = 0x200, scoped, tag = 'scoped memory for _lambda_.12']
  %s0 = inlined_call_operand.vmem [shape: f32[2,256], index: 0, kind: input, shape index: {}]
  %s1 = inlined_call_operand.vmem [shape: f32[2,256], index: 1, kind: input, shape index: {}]
  %s2 = inlined_call_operand.vmem [shape: f32[1,256], index: 2, kind: input, shape index: {}, may-alias: {2,4}]
  %s3 = inlined_call_operand.vmem [shape: f32[1,256], index: 3, kind: input, shape index: {}, may-alias: {3,5,6}]
  %s4 = inlined_call_operand.vmem [shape: f32[1,256], index: 4, kind: input, shape index: {}, may-alias: {2,4}]
  %s5 = inlined_call_operand.vmem [shape: f32[1,256], index: 5, kind: input, shape index: {}, may-alias: {3,5,6}]
  %s6 = inlined_call_operand.vmem [shape: f32[1,256], index: 6, kind: input, shape index: {}, may-alias: {3,5,6}]
  %s7 = inlined_call_operand.<no memory space> [shape: f32[1], index: 7, kind: input, shape index: {}]
  %s8 = inlined_call_operand.vmem [shape: f32[2,256], index: 8, kind: output, shape index: {0}]
  %s9 = inlined_call_operand.vmem [shape: f32[2,256], index: 9, kind: output, shape index: {1}]
  %10 = xla_tuple %s8, %s9
  %s11 = sld [smem:[#allocation0]]
  $region50: #{_lambda_.12} parent=0
    _
  %s13 = ssub.s32 1, %s11
  %s14 = scalar_select 0, %s13, %s11
  %15 = sst [smem:[#allocation2]] %s7
  // Predicated region
  $region2: #{_lambda_.12} parent=0 // pred_check
    _
  $region3: #{_lambda_.12} parent=0 // pred_check_branch
    %17 = sbr.rel (0) target = $region5
  $region4: #{_lambda_.12} parent=0 // pred_region
    _
  $region5: #{_lambda_.12} parent=0 // pred_fallthru
    _
  // Predicated region
  $region6: #{_lambda_.12} parent=0 // pred_check
    _
  $region7: #{_lambda_.12} parent=0 // pred_check_branch
    %19 = sbr.rel (0) target = $region9
  $region8: #{_lambda_.12} parent=0 // pred_region
    _
  $region9: #{_lambda_.12} parent=0 // pred_fallthru
    _
  // Predicated region
  $region10: #{_lambda_.12} parent=0 // pred_check
    _
  $region11: #{_lambda_.12} parent=0 // pred_check_branch
    %21 = sbr.rel (0) target = $region13
  $region12: #{_lambda_.12} parent=0 // pred_region
    _
  $region13: #{_lambda_.12} parent=0 // pred_fallthru
    _
  // Predicated region
  $region14: #{_lambda_.12} parent=0 // pred_check
    _
  $region15: #{_lambda_.12} parent=0 // pred_check_branch
    %23 = sbr.rel (0) target = $region17
  $region16: #{_lambda_.12} parent=0 // pred_region
    _
  $region17: #{_lambda_.12} parent=0 // pred_fallthru
    _
  // Predicated region
  $region18: #{_lambda_.12} parent=0 // pred_check
    _
  $region19: #{_lambda_.12} parent=0 // pred_check_branch
    %25 = sbr.rel (0) target = $region21
  $region20: #{_lambda_.12} parent=0 // pred_region
    _
  $region21: #{_lambda_.12} parent=0 // pred_fallthru
    _
  // Predicated region
  $region22: #{_lambda_.12} parent=0 // pred_check
    _
  $region23: #{_lambda_.12} parent=0 // pred_check_branch
    %27 = sbr.rel (0) target = $region25
  $region24: #{_lambda_.12} parent=0 // pred_region
    _
  $region25: #{_lambda_.12} parent=0 // pred_fallthru
    _
  // Predicated region
  $region26: #{_lambda_.12} parent=0 // pred_check
    _
  $region27: #{_lambda_.12} parent=0 // pred_check_branch
    %29 = sbr.rel (0) target = $region29
  $region28: #{_lambda_.12} parent=0 // pred_region
    _
  $region29: #{_lambda_.12} parent=0 // pred_fallthru
    _
  // Predicated region
  $region30: #{_lambda_.12} parent=0 // pred_check
    _
  $region31: #{_lambda_.12} parent=0 // pred_check_branch
    %31 = sbr.rel (0) target = $region33
  $region32: #{_lambda_.12} parent=0 // pred_region
    _
  $region33: #{_lambda_.12} parent=0 // pred_fallthru
    _
  %s32 = sld [smem:[#allocation2]]
  %v33 = vld [vmem:[%s0] sm:$0xf]
  %v34 = vld [vmem:[%s1] sm:$0xf]
  %v37 = vunpack.c.l.s4 1983009808
  %v38 = vunpack.c.0.s8 %v37
  %v39 = vlaneseq
  %v40 = vshrl.u32 %v39, 7
  %v41 = vsub.s32 %v38, %v40
  %v42 = vrot.slane %v33, %v41
  %v43 = vcombine.high %v42, %v42
  %vm46 = vcmask 1041408
  %v47 = vsel %vm46, %v42, 0.0
  %v48 = vrot.slane %v47, 4
  %v49 = vadd.f32 %v47, %v48
  %v50 = vrot.slane %v49, 2
  %v51 = vadd.f32 %v49, %v50
  %v52 = vrot.slane %v51, 1
  %v53 = vadd.f32 %v51, %v52
  %v54 = vsel %vm46, %v43, 0.0
  %v55 = vrot.slane %v54, 4
  %v56 = vadd.f32 %v54, %v55
  %v57 = vrot.slane %v56, 2
  %v58 = vadd.f32 %v56, %v57
  %v59 = vrot.slane %v58, 1
  %v60 = vadd.f32 %v58, %v59
  %v61 = vrcp.pop 2.0
  %v62 = vmul.f32 %v53, %v61
  %v63 = vmul.f32 %v60, %v61
  %v66 = vunpack.c.l.s4 1983009808
  %v67 = vunpack.c.0.s8 %v66
  %v68 = vlaneseq
  %v69 = vshrl.u32 %v68, 7
  %v70 = vsub.s32 %v67, %v69
  %v71 = vrot.slane %v34, %v70
  %v72 = vcombine.high %v71, %v71
  %v75 = vsel %vm46, %v71, 0.0
  %v76 = vrot.slane %v75, 4
  %v77 = vadd.f32 %v75, %v76
  %v78 = vrot.slane %v77, 2
  %v79 = vadd.f32 %v77, %v78
  %v80 = vrot.slane %v79, 1
  %v81 = vadd.f32 %v79, %v80
  %v82 = vsel %vm46, %v72, 0.0
  %v83 = vrot.slane %v82, 4
  %v84 = vadd.f32 %v82, %v83
  %v85 = vrot.slane %v84, 2
  %v86 = vadd.f32 %v84, %v85
  %v87 = vrot.slane %v86, 1
  %v88 = vadd.f32 %v86, %v87
  %v89 = vmul.f32 %v81, %v61
  %v90 = vmul.f32 %v88, %v61
  %v93 = vcombine.low %v62, %v63
  %v95 = vunpack.c.l.s4 1983009808
  %v96 = vunpack.c.0.s8 %v95
  %v97 = vlaneseq
  %v98 = vshrl.u32 %v97, 7
  %v99 = vsub.s32 %v96, %v98
  %v100 = vrot.slane %v93, %v99
  %v102 = vsub.f32 %v33, %v100
  %v105 = vcombine.low %v89, %v90
  %v107 = vunpack.c.l.s4 1983009808
  %v108 = vunpack.c.0.s8 %v107
  %v109 = vlaneseq
  %v110 = vshrl.u32 %v109, 7
  %v111 = vsub.s32 %v108, %v110
  %v112 = vrot.slane %v105, %v111
  %v114 = vsub.f32 %v34, %v112
  %v115 = vmul.f32 %v102, %v102
  %v118 = vunpack.c.l.s4 1983009808
  %v119 = vunpack.c.0.s8 %v118
  %v120 = vlaneseq
  %v121 = vshrl.u32 %v120, 7
  %v122 = vsub.s32 %v119, %v121
  %v123 = vrot.slane %v115, %v122
  %v124 = vcombine.high %v123, %v123
  %v127 = vsel %vm46, %v123, 0.0
  %v128 = vrot.slane %v127, 4
  %v129 = vadd.f32 %v127, %v128
  %v130 = vrot.slane %v129, 2
  %v131 = vadd.f32 %v129, %v130
  %v132 = vrot.slane %v131, 1
  %v133 = vadd.f32 %v131, %v132
  %v134 = vsel %vm46, %v124, 0.0
  %v135 = vrot.slane %v134, 4
  %v136 = vadd.f32 %v134, %v135
  %v137 = vrot.slane %v136, 2
  %v138 = vadd.f32 %v136, %v137
  %v139 = vrot.slane %v138, 1
  %v140 = vadd.f32 %v138, %v139
  %v141 = vmul.f32 %v133, %v61
  %v142 = vmul.f32 %v140, %v61
  %v143 = vadd.f32 %v141, 1e-05
  %v144 = vadd.f32 %v142, 1e-05
  %v145 = vmul.f32 %v114, %v114
  %v148 = vunpack.c.l.s4 1983009808
  %v149 = vunpack.c.0.s8 %v148
  %v150 = vlaneseq
  %v151 = vshrl.u32 %v150, 7
  %v152 = vsub.s32 %v149, %v151
  %v153 = vrot.slane %v145, %v152
  %v154 = vcombine.high %v153, %v153
  %v157 = vsel %vm46, %v153, 0.0
  %v158 = vrot.slane %v157, 4
  %v159 = vadd.f32 %v157, %v158
  %v160 = vrot.slane %v159, 2
  %v161 = vadd.f32 %v159, %v160
  %v162 = vrot.slane %v161, 1
  %v163 = vadd.f32 %v161, %v162
  %v164 = vsel %vm46, %v154, 0.0
  %v165 = vrot.slane %v164, 4
  %v166 = vadd.f32 %v164, %v165
  %v167 = vrot.slane %v166, 2
  %v168 = vadd.f32 %v166, %v167
  %v169 = vrot.slane %v168, 1
  %v170 = vadd.f32 %v168, %v169
  %v171 = vmul.f32 %v163, %v61
  %v172 = vmul.f32 %v170, %v61
  %v173 = vadd.f32 %v171, 1e-05
  %v174 = vadd.f32 %v172, 1e-05
  %v175 = vmul.f32 %v102, %v114
  %v178 = vunpack.c.l.s4 1983009808
  %v179 = vunpack.c.0.s8 %v178
  %v180 = vlaneseq
  %v181 = vshrl.u32 %v180, 7
  %v182 = vsub.s32 %v179, %v181
  %v183 = vrot.slane %v175, %v182
  %v184 = vcombine.high %v183, %v183
  %v187 = vsel %vm46, %v183, 0.0
  %v188 = vrot.slane %v187, 4
  %v189 = vadd.f32 %v187, %v188
  %v190 = vrot.slane %v189, 2
  %v191 = vadd.f32 %v189, %v190
  %v192 = vrot.slane %v191, 1
  %v193 = vadd.f32 %v191, %v192
  %v194 = vsel %vm46, %v184, 0.0
  %v195 = vrot.slane %v194, 4
  %v196 = vadd.f32 %v194, %v195
  %v197 = vrot.slane %v196, 2
  %v198 = vadd.f32 %v196, %v197
  %v199 = vrot.slane %v198, 1
  %v200 = vadd.f32 %v198, %v199
  %v201 = vmul.f32 %v193, %v61
  %v202 = vmul.f32 %v200, %v61
  %v203 = vadd.f32 %v143, %v173
  %v204 = vadd.f32 %v144, %v174
  %v205 = vmul.f32 %v143, %v173
  %v206 = vmul.f32 %v144, %v174
  %v207 = vmul.f32 %v201, %v201
  %v208 = vmul.f32 %v202, %v202
  %v209 = vsub.f32 %v205, %v207
  %v210 = vsub.f32 %v206, %v208
  %v211 = vrsqrt.pop %v209
  %v212 = vmul.f32 %v209, %v211
  %vm213 = vcmp.eq.f32.partialorder %v209, inf
  %v214 = vsel %vm213, %v209, %v212
  %vm215 = vcmp.eq.f32.partialorder %v209, 0.0
  %v216 = vand.u32 %v209, 2147483648
  %v217 = vsel %vm215, %v216, %v214
  %v218 = vrsqrt.pop %v210
  %v219 = vmul.f32 %v210, %v218
  %vm220 = vcmp.eq.f32.partialorder %v210, inf
  %v221 = vsel %vm220, %v210, %v219
  %vm222 = vcmp.eq.f32.partialorder %v210, 0.0
  %v223 = vand.u32 %v210, 2147483648
  %v224 = vsel %vm222, %v223, %v221
  %v225 = vmul.f32 %v217, 2.0
  %v226 = vmul.f32 %v224, 2.0
  %v227 = vadd.f32 %v203, %v225
  %v228 = vadd.f32 %v204, %v226
  %v229 = vmul.f32 %v209, %v227
  %v230 = vmul.f32 %v210, %v228
  %v231 = vrsqrt.pop %v229
  %v232 = vrsqrt.pop %v230
  %v233 = vadd.f32 %v173, %v217
  %v234 = vadd.f32 %v174, %v224
  %v235 = vmul.f32 %v233, %v231
  %v236 = vmul.f32 %v234, %v232
  %v237 = vadd.f32 %v143, %v217
  %v238 = vadd.f32 %v144, %v224
  %v239 = vmul.f32 %v237, %v231
  %v240 = vmul.f32 %v238, %v232
  %v241 = vsub.f32 0.0, %v201
  %v242 = vsub.f32 0.0, %v202
  %v243 = vmul.f32 %v241, %v231
  %v244 = vmul.f32 %v242, %v232
  %v247 = vunpack.c.l.s4 1983009808
  %v248 = vunpack.c.0.s8 %v247
  %v249 = vlaneseq
  %v250 = vshrl.u32 %v249, 7
  %v251 = vsub.s32 %v248, %v250
  %v252 = vrot.slane %v102, %v251
  %v253 = vcombine.high %v252, %v252
  %v256 = vmul.f32 %v235, %v252
  %v257 = vmul.f32 %v236, %v253
  %v260 = vunpack.c.l.s4 1983009808
  %v261 = vunpack.c.0.s8 %v260
  %v262 = vlaneseq
  %v263 = vshrl.u32 %v262, 7
  %v264 = vsub.s32 %v261, %v263
  %v265 = vrot.slane %v114, %v264
  %v266 = vcombine.high %v265, %v265
  %v269 = vmul.f32 %v243, %v265
  %v270 = vmul.f32 %v244, %v266
  %v271 = vadd.f32 %v256, %v269
  %v272 = vadd.f32 %v257, %v270
  %v273 = vmul.f32 %v243, %v252
  %v274 = vmul.f32 %v244, %v253
  %v275 = vmul.f32 %v239, %v265
  %v276 = vmul.f32 %v240, %v266
  %v277 = vadd.f32 %v273, %v275
  %v278 = vadd.f32 %v274, %v276
  %v279 = vld [vmem:[%s2] sm:$0x3]
  %v281 = vlaneseq
  %v282 = vshrl.u32 %v281, 7
  %v283 = vsub.s32 0, %v282
  %v284 = vrot.slane %v279, %v283
  %v285 = vlaneseq
  %v286 = vshrl.u32 %v285, 7
  %v287 = vsub.s32 1, %v286
  %v288 = vrot.slane %v279, %v287
  %v291 = vmul.f32 %v284, %v271
  %v292 = vmul.f32 %v288, %v272
  %v293 = vld [vmem:[%s3] sm:$0x3]
  %v295 = vlaneseq
  %v296 = vshrl.u32 %v295, 7
  %v297 = vsub.s32 0, %v296
  %v298 = vrot.slane %v293, %v297
  %v299 = vlaneseq
  %v300 = vshrl.u32 %v299, 7
  %v301 = vsub.s32 1, %v300
  %v302 = vrot.slane %v293, %v301
  %v305 = vmul.f32 %v298, %v277
  %v306 = vmul.f32 %v302, %v278
  %v307 = vadd.f32 %v291, %v305
  %v308 = vadd.f32 %v292, %v306
  %v309 = vld [vmem:[%s5] sm:$0x3]
  %v311 = vlaneseq
  %v312 = vshrl.u32 %v311, 7
  %v313 = vsub.s32 0, %v312
  %v314 = vrot.slane %v309, %v313
  %v315 = vlaneseq
  %v316 = vshrl.u32 %v315, 7
  %v317 = vsub.s32 1, %v316
  %v318 = vrot.slane %v309, %v317
  %v321 = vadd.f32 %v307, %v314
  %v322 = vadd.f32 %v308, %v318
  %v323 = vmul.f32 %v298, %v271
  %v324 = vmul.f32 %v302, %v272
  %v325 = vld [vmem:[%s4] sm:$0x3]
  %v327 = vlaneseq
  %v328 = vshrl.u32 %v327, 7
  %v329 = vsub.s32 0, %v328
  %v330 = vrot.slane %v325, %v329
  %v331 = vlaneseq
  %v332 = vshrl.u32 %v331, 7
  %v333 = vsub.s32 1, %v332
  %v334 = vrot.slane %v325, %v333
  %v337 = vmul.f32 %v330, %v277
  %v338 = vmul.f32 %v334, %v278
  %v339 = vadd.f32 %v323, %v337
  %v340 = vadd.f32 %v324, %v338
  %v341 = vld [vmem:[%s6] sm:$0x3]
  %v343 = vlaneseq
  %v344 = vshrl.u32 %v343, 7
  %v345 = vsub.s32 0, %v344
  %v346 = vrot.slane %v341, %v345
  %v347 = vlaneseq
  %v348 = vshrl.u32 %v347, 7
  %v349 = vsub.s32 1, %v348
  %v350 = vrot.slane %v341, %v349
  %v353 = vadd.f32 %v339, %v346
  %v354 = vadd.f32 %v340, %v350
  %vm355 = vcmp.ge.f32.partialorder %v321, 0.0
  %vm356 = vcmp.ge.f32.partialorder %v322, 0.0
  %v357 = vstv %s32
  %v358 = vmul.f32 %v357, %v321
  %v359 = vmul.f32 %v357, %v322
  %v360 = vsel %vm355, %v321, %v358
  %v361 = vsel %vm356, %v322, %v359
  %v364 = vcombine.low %v360, %v361
  %v366 = vunpack.c.l.s4 1983009808
  %v367 = vunpack.c.0.s8 %v366
  %v368 = vlaneseq
  %v369 = vshrl.u32 %v368, 7
  %v370 = vsub.s32 %v367, %v369
  %v371 = vrot.slane %v364, %v370
  %373 = vst [vmem:[%s8] sm:$0xf] %v371
  %vm374 = vcmp.ge.f32.partialorder %v353, 0.0
  %vm375 = vcmp.ge.f32.partialorder %v354, 0.0
  %v376 = vmul.f32 %v357, %v353
  %v377 = vmul.f32 %v357, %v354
  %v378 = vsel %vm374, %v353, %v376
  %v379 = vsel %vm375, %v354, %v377
  %v382 = vcombine.low %v378, %v379
  %v384 = vunpack.c.l.s4 1983009808
  %v385 = vunpack.c.0.s8 %v384
  %v386 = vlaneseq
  %v387 = vshrl.u32 %v386, 7
  %v388 = vsub.s32 %v385, %v387
  %v389 = vrot.slane %v382, %v388
  %391 = vst [vmem:[%s9] sm:$0xf] %v389
  // Predicated region
  $region34: #{_lambda_.12} parent=0 // pred_check
    _
  $region35: #{_lambda_.12} parent=0 // pred_check_branch
    %393 = sbr.rel (0) target = $region37
  $region36: #{_lambda_.12} parent=0 // pred_region
    _
  $region37: #{_lambda_.12} parent=0 // pred_fallthru
    _
  // Predicated region
  $region38: #{_lambda_.12} parent=0 // pred_check
    _
  $region39: #{_lambda_.12} parent=0 // pred_check_branch
    %395 = sbr.rel (0) target = $region41
  $region40: #{_lambda_.12} parent=0 // pred_region
    _
  $region41: #{_lambda_.12} parent=0 // pred_fallthru
    _
  // Predicated region
  $region42: #{_lambda_.12} parent=0 // pred_check
    _
  $region43: #{_lambda_.12} parent=0 // pred_check_branch
    %397 = sbr.rel (0) target = $region45
  $region44: #{_lambda_.12} parent=0 // pred_region
    _
  $region45: #{_lambda_.12} parent=0 // pred_fallthru
    _
  // Predicated region
  $region46: #{_lambda_.12} parent=0 // pred_check
    _
  $region47: #{_lambda_.12} parent=0 // pred_check_branch
    %399 = sbr.rel (0) target = $region49
  $region48: #{_lambda_.12} parent=0 // pred_region
    _
  $region49: #{_lambda_.12} parent=0 // pred_fallthru
    _

// kernel: _lambda_.13
$region0: #{_lambda_.13}
  #allocation0 [shape = 'u32[]', space=smem, size = 0x4, offset = 0x4, fixed_abs, tag = 'smem constant byte address 0x4 - core index']
  #allocation1 [shape = 'u32[144,128]{1,0:T(1,128)}', space=vmem, size = 0x12000, scoped, tag = 'internal scratch']
  %s0 = inlined_call_operand.vmem [shape: bf16[16,80], index: 0, kind: input, shape index: {}]
  %s1 = inlined_call_operand.vmem [shape: bf16[80,128], index: 1, kind: input, shape index: {}]
  %s2 = inlined_call_operand.vmem [shape: f32[16,1], index: 2, kind: input, shape index: {}]
  %s3 = inlined_call_operand.vmem [shape: f32[8,128], index: 3, kind: output, shape index: {0}]
  %s4 = inlined_call_operand.vmem [shape: f32[8,128], index: 4, kind: output, shape index: {1}]
  %5 = xla_tuple %s3, %s4
  %s6 = sld [smem:[#allocation0]]
  $region30: #{_lambda_.13} parent=0
    _
  %s8 = ssub.s32 1, %s6
  %s9 = scalar_select 0, %s8, %s6
  // Predicated region
  $region2: #{_lambda_.13} parent=0 // pred_check
    _
  $region3: #{_lambda_.13} parent=0 // pred_check_branch
    %11 = sbr.rel (0) target = $region5
  $region4: #{_lambda_.13} parent=0 // pred_region
    _
  $region5: #{_lambda_.13} parent=0 // pred_fallthru
    _
  // Predicated region
  $region6: #{_lambda_.13} parent=0 // pred_check
    _
  $region7: #{_lambda_.13} parent=0 // pred_check_branch
    %13 = sbr.rel (0) target = $region9
  $region8: #{_lambda_.13} parent=0 // pred_region
    _
  $region9: #{_lambda_.13} parent=0 // pred_fallthru
    _
  // Predicated region
  $region10: #{_lambda_.13} parent=0 // pred_check
    _
  $region11: #{_lambda_.13} parent=0 // pred_check_branch
    %15 = sbr.rel (0) target = $region13
  $region12: #{_lambda_.13} parent=0 // pred_region
    _
  $region13: #{_lambda_.13} parent=0 // pred_fallthru
    _
  %v17 = vld [vmem:[%s0] sm:$0xf]
  %v18 = vld [vmem:[%s0 + $0x4] sm:$0xf]
  %v19 = vld [vmem:[%s1] sm:$0xf]
  %v20 = vld [vmem:[%s1 + $0x4] sm:$0xf]
  %v21 = vld [vmem:[%s1 + $0x8] sm:$0xf]
  %v22 = vld [vmem:[%s1 + $0xc] sm:$0xf]
  %v23 = vld [vmem:[%s1 + $0x10] sm:$0xf]
  %v24 = vld [vmem:[%s1 + $0x14] sm:$0xf]
  %v25 = vld [vmem:[%s1 + $0x18] sm:$0xf]
  %v26 = vld [vmem:[%s1 + $0x1c] sm:$0xf]
  %v27 = vld [vmem:[%s1 + $0x20] sm:$0xf]
  %v28 = vld [vmem:[%s1 + $0x24] sm:$0xf]
  %v29 = vld [vmem:[%s2] sm:$0xff]
  %v30 = vld [vmem:[%s2 + $0x8] sm:$0xff]
  %32 = vset.pattern.permute.xlu0 0
  %33 = vperm.xlu0 %32, %v29
  %v34 = vpop.permute.xlu0 %33
  %37 = vset.pattern.permute.xlu0 0
  %38 = vperm.xlu0 %37, %v30
  %v39 = vpop.permute.xlu0 %38
  %v43 = vunpack.c.l.b16 %v17
  %v44 = vunpack.c.l.b16 %v18
  %v45 = vpack.c.b16 %v44, %v43
  %v56 = vunpack.c.l.b16 %v19
  %v57 = vunpack.c.l.b16 %v20
  %v58 = vunpack.c.l.b16 %v21
  %v59 = vunpack.c.l.b16 %v22
  %v60 = vunpack.c.l.b16 %v23
  %v61 = vunpack.c.l.b16 %v24
  %v62 = vunpack.c.l.b16 %v25
  %v63 = vunpack.c.l.b16 %v26
  %v64 = vunpack.c.l.b16 %v27
  %v65 = vunpack.c.l.b16 %v28
  %v66 = vpack.c.b16 %v57, %v56
  %v67 = vpack.c.b16 %v59, %v58
  %v68 = vpack.c.b16 %v61, %v60
  %v69 = vpack.c.b16 %v63, %v62
  %v70 = vpack.c.b16 %v65, %v64
  %vm76 = vcmask 654336
  %v78 = vsel %vm76, %v45, 0
  %80 = vmatprep.subr.bf16.mxu0 0
  %81 = vmatpush1.bf16.msra.mxu0 0
  %82 = vmatprep.subr.bf16.mxu0 0
  %83 = vmatpush1.bf16.msra.mxu0 0
  %84 = vmatprep.subr.bf16.mxu0 0
  %85 = vmatpush1.bf16.msra.mxu0 0
  %86 = vmatprep.subr.bf16.mxu0 0
  %87 = vmatpush1.bf16.msra.mxu0 %v70
  %88 = vmatprep.subr.bf16.mxu0 0
  %89 = vmatpush1.bf16.msra.mxu0 %v69
  %90 = vmatprep.subr.bf16.mxu0 0
  %91 = vmatpush1.bf16.msra.mxu0 %v68
  %92 = vmatprep.subr.bf16.mxu0 0
  %93 = vmatpush1.bf16.msra.mxu0 %v67
  %94 = vmatprep.subr.bf16.mxu0 0
  %95 = vmatpush1.bf16.msra.mxu0 %v66
  %96 = vmatprep.subr.bf16.mxu0 0
  %97 = vmatpush2.bf16.msra.mxu0 0
  %98 = vmatprep.subr.bf16.mxu0 0
  %99 = vmatpush2.bf16.msra.mxu0 0
  %100 = vmatprep.subr.bf16.mxu0 0
  %101 = vmatpush2.bf16.msra.mxu0 0
  %102 = vmatprep.subr.bf16.mxu0 0
  %103 = vmatpush2.bf16.msra.mxu0 0
  %104 = vmatprep.subr.bf16.mxu0 0
  %105 = vmatpush2.bf16.msra.mxu0 0
  %106 = vmatprep.subr.bf16.mxu0 0
  %107 = vmatpush2.bf16.msra.mxu0 0
  %108 = vmatprep.subr.bf16.mxu0 0
  %109 = vmatpush2.bf16.msra.mxu0 0
  %110 = vmatprep.subr.bf16.mxu0 0
  %111 = vmatpush2.bf16.msra.mxu0 0
  %112 = vmatprep.mubr.bf16.mxu0 0
  %113 = vmatmul.mubr.bf16.gmra.mxu0 %v78
  %v114 = vpop.f32.mrf.mxu0
  %v115 = vadd.f32 %v34, %v114
  %v116 = vpop.f32.mrf.mxu0
  %v117 = vpop.f32.mrf.mxu0
  %v118 = vadd.f32 %v39, %v117
  %v119 = vpop.f32.mrf.mxu0
  %120 = vdwg.mxu0
  %121 = vst [vmem:[%s3] sm:$0xff] %v115
  %122 = vst [vmem:[%s4] sm:$0xff] %v118
  // Predicated region
  $region14: #{_lambda_.13} parent=0 // pred_check
    _
  $region15: #{_lambda_.13} parent=0 // pred_check_branch
    %124 = sbr.rel (0) target = $region17
  $region16: #{_lambda_.13} parent=0 // pred_region
    _
  $region17: #{_lambda_.13} parent=0 // pred_fallthru
    _
  // Predicated region
  $region18: #{_lambda_.13} parent=0 // pred_check
    _
  $region19: #{_lambda_.13} parent=0 // pred_check_branch
    %126 = sbr.rel (0) target = $region21
  $region20: #{_lambda_.13} parent=0 // pred_region
    _
  $region21: #{_lambda_.13} parent=0 // pred_fallthru
    _
  // Predicated region
  $region22: #{_lambda_.13} parent=0 // pred_check
    _
  $region23: #{_lambda_.13} parent=0 // pred_check_branch
    %128 = sbr.rel (0) target = $region25
  $region24: #{_lambda_.13} parent=0 // pred_region
    _
  $region25: #{_lambda_.13} parent=0 // pred_fallthru
    _
  // Predicated region
  $region26: #{_lambda_.13} parent=0 // pred_check
    _
  $region27: #{_lambda_.13} parent=0 // pred_check_branch
    %130 = sbr.rel (0) target = $region29
  $region28: #{_lambda_.13} parent=0 // pred_region
    _
  $region29: #{_lambda_.13} parent=0 // pred_fallthru
    _

// kernel: _lambda_.16
$region0: #{_lambda_.16}
  #allocation0 [shape = 'u32[]', space=smem, size = 0x4, offset = 0x4, fixed_abs, tag = 'smem constant byte address 0x4 - core index']
  #allocation1 [shape = 'u32[144,128]{1,0:T(1,128)}', space=vmem, size = 0x12000, scoped, tag = 'internal scratch']
  %s0 = inlined_call_operand.vmem [shape: bf16[64,64], index: 0, kind: input, shape index: {}]
  %s1 = inlined_call_operand.vmem [shape: bf16[64,128], index: 1, kind: input, shape index: {}]
  %s2 = inlined_call_operand.vmem [shape: f32[64,1], index: 2, kind: input, shape index: {}]
  %s3 = inlined_call_operand.vmem [shape: f32[32,128], index: 3, kind: output, shape index: {0}]
  %s4 = inlined_call_operand.vmem [shape: f32[32,128], index: 4, kind: output, shape index: {1}]
  %5 = xla_tuple %s3, %s4
  %s6 = sld [smem:[#allocation0]]
  $region30: #{_lambda_.16} parent=0
    _
  %s8 = ssub.s32 1, %s6
  %s9 = scalar_select 0, %s8, %s6
  // Predicated region
  $region2: #{_lambda_.16} parent=0 // pred_check
    _
  $region3: #{_lambda_.16} parent=0 // pred_check_branch
    %11 = sbr.rel (0) target = $region5
  $region4: #{_lambda_.16} parent=0 // pred_region
    _
  $region5: #{_lambda_.16} parent=0 // pred_fallthru
    _
  // Predicated region
  $region6: #{_lambda_.16} parent=0 // pred_check
    _
  $region7: #{_lambda_.16} parent=0 // pred_check_branch
    %13 = sbr.rel (0) target = $region9
  $region8: #{_lambda_.16} parent=0 // pred_region
    _
  $region9: #{_lambda_.16} parent=0 // pred_fallthru
    _
  // Predicated region
  $region10: #{_lambda_.16} parent=0 // pred_check
    _
  $region11: #{_lambda_.16} parent=0 // pred_check_branch
    %15 = sbr.rel (0) target = $region13
  $region12: #{_lambda_.16} parent=0 // pred_region
    _
  $region13: #{_lambda_.16} parent=0 // pred_fallthru
    _
  %v17 = vld [vmem:[%s0] sm:$0xf]
  %v18 = vld [vmem:[%s0 + $0x4] sm:$0xf]
  %v19 = vld [vmem:[%s0 + $0x8] sm:$0xf]
  %v20 = vld [vmem:[%s0 + $0xc] sm:$0xf]
  %v21 = vld [vmem:[%s0 + $0x10] sm:$0xf]
  %v22 = vld [vmem:[%s0 + $0x14] sm:$0xf]
  %v23 = vld [vmem:[%s0 + $0x18] sm:$0xf]
  %v24 = vld [vmem:[%s0 + $0x1c] sm:$0xf]
  %v25 = vld [vmem:[%s1] sm:$0xf]
  %v26 = vld [vmem:[%s1 + $0x4] sm:$0xf]
  %v27 = vld [vmem:[%s1 + $0x8] sm:$0xf]
  %v28 = vld [vmem:[%s1 + $0xc] sm:$0xf]
  %v29 = vld [vmem:[%s1 + $0x10] sm:$0xf]
  %v30 = vld [vmem:[%s1 + $0x14] sm:$0xf]
  %v31 = vld [vmem:[%s1 + $0x18] sm:$0xf]
  %v32 = vld [vmem:[%s1 + $0x1c] sm:$0xf]
  %v33 = vld [vmem:[%s2] sm:$0xff]
  %v34 = vld [vmem:[%s2 + $0x8] sm:$0xff]
  %v35 = vld [vmem:[%s2 + $0x10] sm:$0xff]
  %v36 = vld [vmem:[%s2 + $0x18] sm:$0xff]
  %v37 = vld [vmem:[%s2 + $0x20] sm:$0xff]
  %v38 = vld [vmem:[%s2 + $0x28] sm:$0xff]
  %v39 = vld [vmem:[%s2 + $0x30] sm:$0xff]
  %v40 = vld [vmem:[%s2 + $0x38] sm:$0xff]
  %42 = vset.pattern.permute.xlu0 0
  %43 = vperm.xlu0 %42, %v33
  %v44 = vpop.permute.xlu0 %43
  %47 = vset.pattern.permute.xlu0 0
  %48 = vperm.xlu0 %47, %v34
  %v49 = vpop.permute.xlu0 %48
  %52 = vset.pattern.permute.xlu0 0
  %53 = vperm.xlu0 %52, %v35
  %v54 = vpop.permute.xlu0 %53
  %57 = vset.pattern.permute.xlu0 0
  %58 = vperm.xlu0 %57, %v36
  %v59 = vpop.permute.xlu0 %58
  %62 = vset.pattern.permute.xlu0 0
  %63 = vperm.xlu0 %62, %v37
  %v64 = vpop.permute.xlu0 %63
  %67 = vset.pattern.permute.xlu0 0
  %68 = vperm.xlu0 %67, %v38
  %v69 = vpop.permute.xlu0 %68
  %72 = vset.pattern.permute.xlu0 0
  %73 = vperm.xlu0 %72, %v39
  %v74 = vpop.permute.xlu0 %73
  %77 = vset.pattern.permute.xlu0 0
  %78 = vperm.xlu0 %77, %v40
  %v79 = vpop.permute.xlu0 %78
  %v89 = vunpack.c.l.b16 %v17
  %v90 = vunpack.c.l.b16 %v18
  %v91 = vunpack.c.l.b16 %v19
  %v92 = vunpack.c.l.b16 %v20
  %v93 = vunpack.c.l.b16 %v21
  %v94 = vunpack.c.l.b16 %v22
  %v95 = vunpack.c.l.b16 %v23
  %v96 = vunpack.c.l.b16 %v24
  %v97 = vpack.c.b16 %v90, %v89
  %v98 = vpack.c.b16 %v92, %v91
  %v99 = vpack.c.b16 %v94, %v93
  %v100 = vpack.c.b16 %v96, %v95
  %v109 = vunpack.c.l.b16 %v25
  %v110 = vunpack.c.l.b16 %v26
  %v111 = vunpack.c.l.b16 %v27
  %v112 = vunpack.c.l.b16 %v28
  %v113 = vunpack.c.l.b16 %v29
  %v114 = vunpack.c.l.b16 %v30
  %v115 = vunpack.c.l.b16 %v31
  %v116 = vunpack.c.l.b16 %v32
  %v117 = vpack.c.b16 %v110, %v109
  %v118 = vpack.c.b16 %v112, %v111
  %v119 = vpack.c.b16 %v114, %v113
  %v120 = vpack.c.b16 %v116, %v115
  %vm125 = vcmask 523264
  %v127 = vsel %vm125, %v97, 0
  %v130 = vsel %vm125, %v98, 0
  %v133 = vsel %vm125, %v99, 0
  %v136 = vsel %vm125, %v100, 0
  %138 = vmatprep.subr.bf16.mxu0 0
  %139 = vmatpush1.bf16.msra.mxu0 0
  %140 = vmatprep.subr.bf16.mxu0 0
  %141 = vmatpush1.bf16.msra.mxu0 0
  %142 = vmatprep.subr.bf16.mxu0 0
  %143 = vmatpush1.bf16.msra.mxu0 0
  %144 = vmatprep.subr.bf16.mxu0 0
  %145 = vmatpush1.bf16.msra.mxu0 0
  %146 = vmatprep.subr.bf16.mxu0 0
  %147 = vmatpush1.bf16.msra.mxu0 %v120
  %148 = vmatprep.subr.bf16.mxu0 0
  %149 = vmatpush1.bf16.msra.mxu0 %v119
  %150 = vmatprep.subr.bf16.mxu0 0
  %151 = vmatpush1.bf16.msra.mxu0 %v118
  %152 = vmatprep.subr.bf16.mxu0 0
  %153 = vmatpush1.bf16.msra.mxu0 %v117
  %154 = vmatprep.subr.bf16.mxu0 0
  %155 = vmatpush2.bf16.msra.mxu0 0
  %156 = vmatprep.subr.bf16.mxu0 0
  %157 = vmatpush2.bf16.msra.mxu0 0
  %158 = vmatprep.subr.bf16.mxu0 0
  %159 = vmatpush2.bf16.msra.mxu0 0
  %160 = vmatprep.subr.bf16.mxu0 0
  %161 = vmatpush2.bf16.msra.mxu0 0
  %162 = vmatprep.subr.bf16.mxu0 0
  %163 = vmatpush2.bf16.msra.mxu0 0
  %164 = vmatprep.subr.bf16.mxu0 0
  %165 = vmatpush2.bf16.msra.mxu0 0
  %166 = vmatprep.subr.bf16.mxu0 0
  %167 = vmatpush2.bf16.msra.mxu0 0
  %168 = vmatprep.subr.bf16.mxu0 0
  %169 = vmatpush2.bf16.msra.mxu0 0
  %170 = vmatprep.mubr.bf16.mxu0 0
  %171 = vmatmul.mubr.bf16.gmra.mxu0 %v127
  %v172 = vpop.f32.mrf.mxu0
  %v173 = vadd.f32 %v44, %v172
  %v174 = vpop.f32.mrf.mxu0
  %v175 = vpop.f32.mrf.mxu0
  %v176 = vadd.f32 %v49, %v175
  %v177 = vpop.f32.mrf.mxu0
  %178 = vmatprep.mubr.bf16.mxu0 0
  %179 = vmatmul.mubr.bf16.gmra.mxu0 %v130
  %v180 = vpop.f32.mrf.mxu0
  %v181 = vadd.f32 %v54, %v180
  %v182 = vpop.f32.mrf.mxu0
  %v183 = vpop.f32.mrf.mxu0
  %v184 = vadd.f32 %v59, %v183
  %v185 = vpop.f32.mrf.mxu0
  %186 = vmatprep.mubr.bf16.mxu0 0
  %187 = vmatmul.mubr.bf16.gmra.mxu0 %v133
  %v188 = vpop.f32.mrf.mxu0
  %v189 = vadd.f32 %v64, %v188
  %v190 = vpop.f32.mrf.mxu0
  %v191 = vpop.f32.mrf.mxu0
  %v192 = vadd.f32 %v69, %v191
  %v193 = vpop.f32.mrf.mxu0
  %194 = vmatprep.mubr.bf16.mxu0 0
  %195 = vmatmul.mubr.bf16.gmra.mxu0 %v136
  %v196 = vpop.f32.mrf.mxu0
  %v197 = vadd.f32 %v74, %v196
  %v198 = vpop.f32.mrf.mxu0
  %v199 = vpop.f32.mrf.mxu0
  %v200 = vadd.f32 %v79, %v199
  %v201 = vpop.f32.mrf.mxu0
  %202 = vdwg.mxu0
  %203 = vst [vmem:[%s3] sm:$0xff] %v173
  %204 = vst [vmem:[%s3 + $0x8] sm:$0xff] %v176
  %205 = vst [vmem:[%s3 + $0x10] sm:$0xff] %v181
  %206 = vst [vmem:[%s3 + $0x18] sm:$0xff] %v184
  %207 = vst [vmem:[%s4] sm:$0xff] %v189
  %208 = vst [vmem:[%s4 + $0x8] sm:$0xff] %v192
  %209 = vst [vmem:[%s4 + $0x10] sm:$0xff] %v197
  %210 = vst [vmem:[%s4 + $0x18] sm:$0xff] %v200
  // Predicated region
  $region14: #{_lambda_.16} parent=0 // pred_check
    _
  $region15: #{_lambda_.16} parent=0 // pred_check_branch
    %212 = sbr.rel (0) target = $region17
  $region16: #{_lambda_.16} parent=0 // pred_region
    _
  $region17: #{_lambda_.16} parent=0 // pred_fallthru
    _
  // Predicated region
  $region18: #{_lambda_.16} parent=0 // pred_check
    _
  $region19: #{_lambda_.16} parent=0 // pred_check_branch
    %214 = sbr.rel (0) target = $region21
  $region20: #{_lambda_.16} parent=0 // pred_region
    _
  $region21: #{_lambda_.16} parent=0 // pred_fallthru
    _
  // Predicated region
  $region22: #{_lambda_.16} parent=0 // pred_check
    _
  $region23: #{_lambda_.16} parent=0 // pred_check_branch
    %216 = sbr.rel (0) target = $region25
  $region24: #{_lambda_.16} parent=0 // pred_region
    _
  $region25: #{_lambda_.16} parent=0 // pred_fallthru
    _
  // Predicated region
  $region26: #{_lambda_.16} parent=0 // pred_check
    _
  $region27: #{_lambda_.16} parent=0 // pred_check_branch
    %218 = sbr.rel (0) target = $region29
  $region28: #{_lambda_.16} parent=0 // pred_region
    _
  $region29: #{_lambda_.16} parent=0 // pred_fallthru
    _

// kernel: _lambda_.15
$region0: #{_lambda_.15}
  #allocation0 [shape = 'u32[]', space=smem, size = 0x4, offset = 0x4, fixed_abs, tag = 'smem constant byte address 0x4 - core index']
  #allocation1 [shape = 'u32[144,128]{1,0:T(1,128)}', space=vmem, size = 0x12000, scoped, tag = 'internal scratch']
  #allocation2 [shape = 'f32[64,512]{1,0:T(8,128)}', space=vmem, size = 0x20000, scoped, tag = 'scratch operand']
  #allocation3 [shape = 'f32[64,512]{1,0:T(8,128)}', space=vmem, size = 0x20000, scoped, tag = 'scratch operand']
  #allocation4 [shape = 'f32[8,128]{1,0:T(8,128)}', space=vmem, size = 0x1000, scoped, tag = 'scratch operand']
  #allocation5 [shape = 'f32[8,128]{1,0:T(8,128)}', space=vmem, size = 0x1000, scoped, tag = 'scratch operand']
  #allocation6 [shape = 'f32[8,128]{1,0:T(8,128)}', space=vmem, size = 0x1000, scoped, tag = 'scratch operand']
  #allocation7 [shape = 'f32[8,128]{1,0:T(8,128)}', space=vmem, size = 0x1000, scoped, tag = 'scratch operand']
  %s0 = inlined_call_operand.vmem [shape: f32[64,128], index: 0, kind: input, shape index: {}]
  %s1 = inlined_call_operand.vmem [shape: f32[128,512], index: 1, kind: input, shape index: {}]
  %s2 = inlined_call_operand.vmem [shape: f32[128,512], index: 2, kind: input, shape index: {}]
  %s3 = inlined_call_operand.vmem [shape: f32[1,512], index: 3, kind: input, shape index: {}]
  %s4 = inlined_call_operand.vmem [shape: f32[128,512], index: 4, kind: input, shape index: {}]
  %s5 = inlined_call_operand.vmem [shape: f32[128,512], index: 5, kind: input, shape index: {}]
  %s6 = inlined_call_operand.vmem [shape: f32[1,512], index: 6, kind: input, shape index: {}]
  %s7 = inlined_call_operand.vmem [shape: f32[8,8,128], index: 7, kind: output, shape index: {0}]
  %s8 = inlined_call_operand.vmem [shape: f32[8,8,128], index: 8, kind: output, shape index: {1}]
  %9 = xla_tuple %s7, %s8
  %s10 = sld [smem:[#allocation0]]
  $region53: #{_lambda_.15} parent=0
    _
  %s12 = ssub.s32 1, %s10
  %s13 = scalar_select 0, %s12, %s10
  // Predicated region
  $region2: #{_lambda_.15} parent=0 // pred_check
    _
  $region3: #{_lambda_.15} parent=0 // pred_check_branch
    %15 = sbr.rel (0) target = $region5
  $region4: #{_lambda_.15} parent=0 // pred_region
    _
  $region5: #{_lambda_.15} parent=0 // pred_fallthru
    _
  // Predicated region
  $region6: #{_lambda_.15} parent=0 // pred_check
    _
  $region7: #{_lambda_.15} parent=0 // pred_check_branch
    %17 = sbr.rel (0) target = $region9
  $region8: #{_lambda_.15} parent=0 // pred_region
    _
  $region9: #{_lambda_.15} parent=0 // pred_fallthru
    _
  // Predicated region
  $region10: #{_lambda_.15} parent=0 // pred_check
    _
  $region11: #{_lambda_.15} parent=0 // pred_check_branch
    %19 = sbr.rel (0) target = $region13
  $region12: #{_lambda_.15} parent=0 // pred_region
    _
  $region13: #{_lambda_.15} parent=0 // pred_fallthru
    _
  // Predicated region
  $region14: #{_lambda_.15} parent=0 // pred_check
    _
  $region15: #{_lambda_.15} parent=0 // pred_check_branch
    %21 = sbr.rel (0) target = $region17
  $region16: #{_lambda_.15} parent=0 // pred_region
    _
  $region17: #{_lambda_.15} parent=0 // pred_fallthru
    _
  // Predicated region
  $region18: #{_lambda_.15} parent=0 // pred_check
    _
  $region19: #{_lambda_.15} parent=0 // pred_check_branch
    %23 = sbr.rel (0) target = $region21
  $region20: #{_lambda_.15} parent=0 // pred_region
    _
  $region21: #{_lambda_.15} parent=0 // pred_fallthru
    _
  // Predicated region
  $region22: #{_lambda_.15} parent=0 // pred_check
    _
  $region23: #{_lambda_.15} parent=0 // pred_check_branch
    %25 = sbr.rel (0) target = $region25
  $region24: #{_lambda_.15} parent=0 // pred_region
    _
  $region25: #{_lambda_.15} parent=0 // pred_fallthru
    _
  // Predicated region
  $region26: #{_lambda_.15} parent=0 // pred_check
    _
  $region27: #{_lambda_.15} parent=0 // pred_check_branch
    %27 = sbr.rel (0) target = $region29
  $region28: #{_lambda_.15} parent=0 // pred_region
    _
  $region29: #{_lambda_.15} parent=0 // pred_fallthru
    _
  %v28 = vld [vmem:[%s0] sm:$0xff]
  %v29 = vld [vmem:[%s0 + $0x8] sm:$0xff]
  %v30 = vld [vmem:[%s0 + $0x10] sm:$0xff]
  %v31 = vld [vmem:[%s0 + $0x18] sm:$0xff]
  %v32 = vld [vmem:[%s0 + $0x20] sm:$0xff]
  %v33 = vld [vmem:[%s0 + $0x28] sm:$0xff]
  %v34 = vld [vmem:[%s0 + $0x30] sm:$0xff]
  %v35 = vld [vmem:[%s0 + $0x38] sm:$0xff]
  %v36 = vld [vmem:[%s1] sm:$0xff]
  %v37 = vld [vmem:[%s1 + $0x8] sm:$0xff]
  %v38 = vld [vmem:[%s1 + $0x10] sm:$0xff]
  %v39 = vld [vmem:[%s1 + $0x18] sm:$0xff]
  %v40 = vld [vmem:[%s1 + $0x20] sm:$0xff]
  %v41 = vld [vmem:[%s1 + $0x28] sm:$0xff]
  %v42 = vld [vmem:[%s1 + $0x30] sm:$0xff]
  %v43 = vld [vmem:[%s1 + $0x38] sm:$0xff]
  %v44 = vld [vmem:[%s1 + $0x40] sm:$0xff]
  %v45 = vld [vmem:[%s1 + $0x48] sm:$0xff]
  %v46 = vld [vmem:[%s1 + $0x50] sm:$0xff]
  %v47 = vld [vmem:[%s1 + $0x58] sm:$0xff]
  %v48 = vld [vmem:[%s1 + $0x60] sm:$0xff]
  %v49 = vld [vmem:[%s1 + $0x68] sm:$0xff]
  %v50 = vld [vmem:[%s1 + $0x70] sm:$0xff]
  %v51 = vld [vmem:[%s1 + $0x78] sm:$0xff]
  %v52 = vld [vmem:[%s1 + $0x80] sm:$0xff]
  %v53 = vld [vmem:[%s1 + $0x88] sm:$0xff]
  %v54 = vld [vmem:[%s1 + $0x90] sm:$0xff]
  %v55 = vld [vmem:[%s1 + $0x98] sm:$0xff]
  %v56 = vld [vmem:[%s1 + $0xa0] sm:$0xff]
  %v57 = vld [vmem:[%s1 + $0xa8] sm:$0xff]
  %v58 = vld [vmem:[%s1 + $0xb0] sm:$0xff]
  %v59 = vld [vmem:[%s1 + $0xb8] sm:$0xff]
  %v60 = vld [vmem:[%s1 + $0xc0] sm:$0xff]
  %v61 = vld [vmem:[%s1 + $0xc8] sm:$0xff]
  %v62 = vld [vmem:[%s1 + $0xd0] sm:$0xff]
  %v63 = vld [vmem:[%s1 + $0xd8] sm:$0xff]
  %v64 = vld [vmem:[%s1 + $0xe0] sm:$0xff]
  %v65 = vld [vmem:[%s1 + $0xe8] sm:$0xff]
  %v66 = vld [vmem:[%s1 + $0xf0] sm:$0xff]
  %v67 = vld [vmem:[%s1 + $0xf8] sm:$0xff]
  %v68 = vld [vmem:[%s1 + $0x100] sm:$0xff]
  %v69 = vld [vmem:[%s1 + $0x108] sm:$0xff]
  %v70 = vld [vmem:[%s1 + $0x110] sm:$0xff]
  %v71 = vld [vmem:[%s1 + $0x118] sm:$0xff]
  %v72 = vld [vmem:[%s1 + $0x120] sm:$0xff]
  %v73 = vld [vmem:[%s1 + $0x128] sm:$0xff]
  %v74 = vld [vmem:[%s1 + $0x130] sm:$0xff]
  %v75 = vld [vmem:[%s1 + $0x138] sm:$0xff]
  %v76 = vld [vmem:[%s1 + $0x140] sm:$0xff]
  %v77 = vld [vmem:[%s1 + $0x148] sm:$0xff]
  %v78 = vld [vmem:[%s1 + $0x150] sm:$0xff]
  %v79 = vld [vmem:[%s1 + $0x158] sm:$0xff]
  %v80 = vld [vmem:[%s1 + $0x160] sm:$0xff]
  %v81 = vld [vmem:[%s1 + $0x168] sm:$0xff]
  %v82 = vld [vmem:[%s1 + $0x170] sm:$0xff]
  %v83 = vld [vmem:[%s1 + $0x178] sm:$0xff]
  %v84 = vld [vmem:[%s1 + $0x180] sm:$0xff]
  %v85 = vld [vmem:[%s1 + $0x188] sm:$0xff]
  %v86 = vld [vmem:[%s1 + $0x190] sm:$0xff]
  %v87 = vld [vmem:[%s1 + $0x198] sm:$0xff]
  %v88 = vld [vmem:[%s1 + $0x1a0] sm:$0xff]
  %v89 = vld [vmem:[%s1 + $0x1a8] sm:$0xff]
  %v90 = vld [vmem:[%s1 + $0x1b0] sm:$0xff]
  %v91 = vld [vmem:[%s1 + $0x1b8] sm:$0xff]
  %v92 = vld [vmem:[%s1 + $0x1c0] sm:$0xff]
  %v93 = vld [vmem:[%s1 + $0x1c8] sm:$0xff]
  %v94 = vld [vmem:[%s1 + $0x1d0] sm:$0xff]
  %v95 = vld [vmem:[%s1 + $0x1d8] sm:$0xff]
  %v96 = vld [vmem:[%s1 + $0x1e0] sm:$0xff]
  %v97 = vld [vmem:[%s1 + $0x1e8] sm:$0xff]
  %v98 = vld [vmem:[%s1 + $0x1f0] sm:$0xff]
  %v99 = vld [vmem:[%s1 + $0x1f8] sm:$0xff]
  %v100 = vld [vmem:[%s3] sm:$0xf]
  %v102 = vlaneseq
  %v103 = vshrl.u32 %v102, 7
  %v104 = vsub.s32 0, %v103
  %v105 = vrot.slane %v100, %v104
  %v106 = vlaneseq
  %v107 = vshrl.u32 %v106, 7
  %v108 = vsub.s32 1, %v107
  %v109 = vrot.slane %v100, %v108
  %v110 = vlaneseq
  %v111 = vshrl.u32 %v110, 7
  %v112 = vsub.s32 2, %v111
  %v113 = vrot.slane %v100, %v112
  %v114 = vlaneseq
  %v115 = vshrl.u32 %v114, 7
  %v116 = vsub.s32 3, %v115
  %v117 = vrot.slane %v100, %v116
  %122 = vmatprep.subr.mxu0 %v97
  %123 = vmatpush1.msra.mxu0 %v96
  %124 = vmatprep.subr.mxu0 %v93
  %125 = vmatpush1.msra.mxu0 %v92
  %126 = vmatprep.subr.mxu0 %v89
  %127 = vmatpush1.msra.mxu0 %v88
  %128 = vmatprep.subr.mxu0 %v85
  %129 = vmatpush1.msra.mxu0 %v84
  %130 = vmatprep.subr.mxu0 %v81
  %131 = vmatpush1.msra.mxu0 %v80
  %132 = vmatprep.subr.mxu0 %v77
  %133 = vmatpush1.msra.mxu0 %v76
  %134 = vmatprep.subr.mxu0 %v73
  %135 = vmatpush1.msra.mxu0 %v72
  %136 = vmatprep.subr.mxu0 %v69
  %137 = vmatpush1.msra.mxu0 %v68
  %138 = vmatprep.subr.mxu0 %v65
  %139 = vmatpush1.msra.mxu0 %v64
  %140 = vmatprep.subr.mxu0 %v61
  %141 = vmatpush1.msra.mxu0 %v60
  %142 = vmatprep.subr.mxu0 %v57
  %143 = vmatpush1.msra.mxu0 %v56
  %144 = vmatprep.subr.mxu0 %v53
  %145 = vmatpush1.msra.mxu0 %v52
  %146 = vmatprep.subr.mxu0 %v49
  %147 = vmatpush1.msra.mxu0 %v48
  %148 = vmatprep.subr.mxu0 %v45
  %149 = vmatpush1.msra.mxu0 %v44
  %150 = vmatprep.subr.mxu0 %v41
  %151 = vmatpush1.msra.mxu0 %v40
  %152 = vmatprep.subr.mxu0 %v37
  %153 = vmatpush1.msra.mxu0 %v36
  %154 = vmatprep.subr.mxu0 0.0
  %155 = vmatpush2.msra.mxu0 0.0
  %156 = vmatprep.subr.mxu0 0.0
  %157 = vmatpush2.msra.mxu0 0.0
  %158 = vmatprep.subr.mxu0 0.0
  %159 = vmatpush2.msra.mxu0 0.0
  %160 = vmatprep.subr.mxu0 0.0
  %161 = vmatpush2.msra.mxu0 0.0
  %162 = vmatprep.subr.mxu0 0.0
  %163 = vmatpush2.msra.mxu0 0.0
  %164 = vmatprep.subr.mxu0 0.0
  %165 = vmatpush2.msra.mxu0 0.0
  %166 = vmatprep.subr.mxu0 0.0
  %167 = vmatpush2.msra.mxu0 0.0
  %168 = vmatprep.subr.mxu0 0.0
  %169 = vmatpush2.msra.mxu0 0.0
  %170 = vmatprep.subr.mxu0 0.0
  %171 = vmatpush2.msra.mxu0 0.0
  %172 = vmatprep.subr.mxu0 0.0
  %173 = vmatpush2.msra.mxu0 0.0
  %174 = vmatprep.subr.mxu0 0.0
  %175 = vmatpush2.msra.mxu0 0.0
  %176 = vmatprep.subr.mxu0 0.0
  %177 = vmatpush2.msra.mxu0 0.0
  %178 = vmatprep.subr.mxu0 0.0
  %179 = vmatpush2.msra.mxu0 0.0
  %180 = vmatprep.subr.mxu0 0.0
  %181 = vmatpush2.msra.mxu0 0.0
  %182 = vmatprep.subr.mxu0 0.0
  %183 = vmatpush2.msra.mxu0 0.0
  %184 = vmatprep.subr.mxu0 0.0
  %185 = vmatpush2.msra.mxu0 0.0
  %186 = vmatprep.mubr.f32.mxu0 0.0
  %187 = vmatmul.mubr.f32.gmra.mxu0 %v28
  %v188 = vpop.f32.mrf.mxu0
  %v189 = vadd.f32 %v105, %v188
  %v190 = vpop.f32.mrf.mxu0
  %v191 = vadd.f32 %v109, %v190
  %192 = vmatprep.mubr.f32.mxu0 0.0
  %193 = vmatmul.mubr.f32.gmra.mxu0 %v29
  %v194 = vpop.f32.mrf.mxu0
  %v195 = vadd.f32 %v105, %v194
  %v196 = vpop.f32.mrf.mxu0
  %v197 = vadd.f32 %v109, %v196
  %198 = vmatprep.mubr.f32.mxu0 0.0
  %199 = vmatmul.mubr.f32.gmra.mxu0 %v30
  %v200 = vpop.f32.mrf.mxu0
  %v201 = vadd.f32 %v105, %v200
  %v202 = vpop.f32.mrf.mxu0
  %v203 = vadd.f32 %v109, %v202
  %204 = vmatprep.mubr.f32.mxu0 0.0
  %205 = vmatmul.mubr.f32.gmra.mxu0 %v31
  %v206 = vpop.f32.mrf.mxu0
  %v207 = vadd.f32 %v105, %v206
  %v208 = vpop.f32.mrf.mxu0
  %v209 = vadd.f32 %v109, %v208
  %210 = vmatprep.mubr.f32.mxu0 0.0
  %211 = vmatmul.mubr.f32.gmra.mxu0 %v32
  %v212 = vpop.f32.mrf.mxu0
  %v213 = vadd.f32 %v105, %v212
  %v214 = vpop.f32.mrf.mxu0
  %v215 = vadd.f32 %v109, %v214
  %216 = vmatprep.mubr.f32.mxu0 0.0
  %217 = vmatmul.mubr.f32.gmra.mxu0 %v33
  %v218 = vpop.f32.mrf.mxu0
  %v219 = vadd.f32 %v105, %v218
  %v220 = vpop.f32.mrf.mxu0
  %v221 = vadd.f32 %v109, %v220
  %222 = vmatprep.mubr.f32.mxu0 0.0
  %223 = vmatmul.mubr.f32.gmra.mxu0 %v34
  %v224 = vpop.f32.mrf.mxu0
  %v225 = vadd.f32 %v105, %v224
  %v226 = vpop.f32.mrf.mxu0
  %v227 = vadd.f32 %v109, %v226
  %228 = vmatprep.mubr.f32.mxu0 0.0
  %229 = vmatmul.mubr.f32.gmra.mxu0 %v35
  %v230 = vpop.f32.mrf.mxu0
  %v231 = vadd.f32 %v105, %v230
  %v232 = vpop.f32.mrf.mxu0
  %v233 = vadd.f32 %v109, %v232
  %234 = vdwg.mxu0
  %235 = vmatprep.subr.mxu0 %v99
  %236 = vmatpush1.msra.mxu0 %v98
  %237 = vmatprep.subr.mxu0 %v95
  %238 = vmatpush1.msra.mxu0 %v94
  %239 = vmatprep.subr.mxu0 %v91
  %240 = vmatpush1.msra.mxu0 %v90
  %241 = vmatprep.subr.mxu0 %v87
  %242 = vmatpush1.msra.mxu0 %v86
  %243 = vmatprep.subr.mxu0 %v83
  %244 = vmatpush1.msra.mxu0 %v82
  %245 = vmatprep.subr.mxu0 %v79
  %246 = vmatpush1.msra.mxu0 %v78
  %247 = vmatprep.subr.mxu0 %v75
  %248 = vmatpush1.msra.mxu0 %v74
  %249 = vmatprep.subr.mxu0 %v71
  %250 = vmatpush1.msra.mxu0 %v70
  %251 = vmatprep.subr.mxu0 %v67
  %252 = vmatpush1.msra.mxu0 %v66
  %253 = vmatprep.subr.mxu0 %v63
  %254 = vmatpush1.msra.mxu0 %v62
  %255 = vmatprep.subr.mxu0 %v59
  %256 = vmatpush1.msra.mxu0 %v58
  %257 = vmatprep.subr.mxu0 %v55
  %258 = vmatpush1.msra.mxu0 %v54
  %259 = vmatprep.subr.mxu0 %v51
  %260 = vmatpush1.msra.mxu0 %v50
  %261 = vmatprep.subr.mxu0 %v47
  %262 = vmatpush1.msra.mxu0 %v46
  %263 = vmatprep.subr.mxu0 %v43
  %264 = vmatpush1.msra.mxu0 %v42
  %265 = vmatprep.subr.mxu0 %v39
  %266 = vmatpush1.msra.mxu0 %v38
  %267 = vmatprep.subr.mxu0 0.0
  %268 = vmatpush2.msra.mxu0 0.0
  %269 = vmatprep.subr.mxu0 0.0
  %270 = vmatpush2.msra.mxu0 0.0
  %271 = vmatprep.subr.mxu0 0.0
  %272 = vmatpush2.msra.mxu0 0.0
  %273 = vmatprep.subr.mxu0 0.0
  %274 = vmatpush2.msra.mxu0 0.0
  %275 = vmatprep.subr.mxu0 0.0
  %276 = vmatpush2.msra.mxu0 0.0
  %277 = vmatprep.subr.mxu0 0.0
  %278 = vmatpush2.msra.mxu0 0.0
  %279 = vmatprep.subr.mxu0 0.0
  %280 = vmatpush2.msra.mxu0 0.0
  %281 = vmatprep.subr.mxu0 0.0
  %282 = vmatpush2.msra.mxu0 0.0
  %283 = vmatprep.subr.mxu0 0.0
  %284 = vmatpush2.msra.mxu0 0.0
  %285 = vmatprep.subr.mxu0 0.0
  %286 = vmatpush2.msra.mxu0 0.0
  %287 = vmatprep.subr.mxu0 0.0
  %288 = vmatpush2.msra.mxu0 0.0
  %289 = vmatprep.subr.mxu0 0.0
  %290 = vmatpush2.msra.mxu0 0.0
  %291 = vmatprep.subr.mxu0 0.0
  %292 = vmatpush2.msra.mxu0 0.0
  %293 = vmatprep.subr.mxu0 0.0
  %294 = vmatpush2.msra.mxu0 0.0
  %295 = vmatprep.subr.mxu0 0.0
  %296 = vmatpush2.msra.mxu0 0.0
  %297 = vmatprep.subr.mxu0 0.0
  %298 = vmatpush2.msra.mxu0 0.0
  %299 = vmatprep.mubr.f32.mxu0 0.0
  %300 = vmatmul.mubr.f32.gmra.mxu0 %v28
  %v301 = vpop.f32.mrf.mxu0
  %v302 = vadd.f32 %v113, %v301
  %v303 = vpop.f32.mrf.mxu0
  %v304 = vadd.f32 %v117, %v303
  %305 = vmatprep.mubr.f32.mxu0 0.0
  %306 = vmatmul.mubr.f32.gmra.mxu0 %v29
  %v307 = vpop.f32.mrf.mxu0
  %v308 = vadd.f32 %v113, %v307
  %v309 = vpop.f32.mrf.mxu0
  %v310 = vadd.f32 %v117, %v309
  %311 = vmatprep.mubr.f32.mxu0 0.0
  %312 = vmatmul.mubr.f32.gmra.mxu0 %v30
  %v313 = vpop.f32.mrf.mxu0
  %v314 = vadd.f32 %v113, %v313
  %v315 = vpop.f32.mrf.mxu0
  %v316 = vadd.f32 %v117, %v315
  %317 = vmatprep.mubr.f32.mxu0 0.0
  %318 = vmatmul.mubr.f32.gmra.mxu0 %v31
  %v319 = vpop.f32.mrf.mxu0
  %v320 = vadd.f32 %v113, %v319
  %v321 = vpop.f32.mrf.mxu0
  %v322 = vadd.f32 %v117, %v321
  %323 = vmatprep.mubr.f32.mxu0 0.0
  %324 = vmatmul.mubr.f32.gmra.mxu0 %v32
  %v325 = vpop.f32.mrf.mxu0
  %v326 = vadd.f32 %v113, %v325
  %v327 = vpop.f32.mrf.mxu0
  %v328 = vadd.f32 %v117, %v327
  %329 = vmatprep.mubr.f32.mxu0 0.0
  %330 = vmatmul.mubr.f32.gmra.mxu0 %v33
  %v331 = vpop.f32.mrf.mxu0
  %v332 = vadd.f32 %v113, %v331
  %v333 = vpop.f32.mrf.mxu0
  %v334 = vadd.f32 %v117, %v333
  %335 = vmatprep.mubr.f32.mxu0 0.0
  %336 = vmatmul.mubr.f32.gmra.mxu0 %v34
  %v337 = vpop.f32.mrf.mxu0
  %v338 = vadd.f32 %v113, %v337
  %v339 = vpop.f32.mrf.mxu0
  %v340 = vadd.f32 %v117, %v339
  %341 = vmatprep.mubr.f32.mxu0 0.0
  %342 = vmatmul.mubr.f32.gmra.mxu0 %v35
  %v343 = vpop.f32.mrf.mxu0
  %v344 = vadd.f32 %v113, %v343
  %v345 = vpop.f32.mrf.mxu0
  %v346 = vadd.f32 %v117, %v345
  %347 = vdwg.mxu0
  %348 = vst [vmem:[#allocation2] sm:$0xff] %v189
  %349 = vst [vmem:[#allocation2 + $0x8] sm:$0xff] %v191
  %350 = vst [vmem:[#allocation2 + $0x10] sm:$0xff] %v302
  %351 = vst [vmem:[#allocation2 + $0x18] sm:$0xff] %v304
  %352 = vst [vmem:[#allocation2 + $0x20] sm:$0xff] %v195
  %353 = vst [vmem:[#allocation2 + $0x28] sm:$0xff] %v197
  %354 = vst [vmem:[#allocation2 + $0x30] sm:$0xff] %v308
  %355 = vst [vmem:[#allocation2 + $0x38] sm:$0xff] %v310
  %356 = vst [vmem:[#allocation2 + $0x40] sm:$0xff] %v201
  %357 = vst [vmem:[#allocation2 + $0x48] sm:$0xff] %v203
  %358 = vst [vmem:[#allocation2 + $0x50] sm:$0xff] %v314
  %359 = vst [vmem:[#allocation2 + $0x58] sm:$0xff] %v316
  %360 = vst [vmem:[#allocation2 + $0x60] sm:$0xff] %v207
  %361 = vst [vmem:[#allocation2 + $0x68] sm:$0xff] %v209
  %362 = vst [vmem:[#allocation2 + $0x70] sm:$0xff] %v320
  %363 = vst [vmem:[#allocation2 + $0x78] sm:$0xff] %v322
  %364 = vst [vmem:[#allocation2 + $0x80] sm:$0xff] %v213
  %365 = vst [vmem:[#allocation2 + $0x88] sm:$0xff] %v215
  %366 = vst [vmem:[#allocation2 + $0x90] sm:$0xff] %v326
  %367 = vst [vmem:[#allocation2 + $0x98] sm:$0xff] %v328
  %368 = vst [vmem:[#allocation2 + $0xa0] sm:$0xff] %v219
  %369 = vst [vmem:[#allocation2 + $0xa8] sm:$0xff] %v221
  %370 = vst [vmem:[#allocation2 + $0xb0] sm:$0xff] %v332
  %371 = vst [vmem:[#allocation2 + $0xb8] sm:$0xff] %v334
  %372 = vst [vmem:[#allocation2 + $0xc0] sm:$0xff] %v225
  %373 = vst [vmem:[#allocation2 + $0xc8] sm:$0xff] %v227
  %374 = vst [vmem:[#allocation2 + $0xd0] sm:$0xff] %v338
  %375 = vst [vmem:[#allocation2 + $0xd8] sm:$0xff] %v340
  %376 = vst [vmem:[#allocation2 + $0xe0] sm:$0xff] %v231
  %377 = vst [vmem:[#allocation2 + $0xe8] sm:$0xff] %v233
  %378 = vst [vmem:[#allocation2 + $0xf0] sm:$0xff] %v344
  %379 = vst [vmem:[#allocation2 + $0xf8] sm:$0xff] %v346
  %v380 = vld [vmem:[%s4] sm:$0xff]
  %v381 = vld [vmem:[%s4 + $0x8] sm:$0xff]
  %v382 = vld [vmem:[%s4 + $0x10] sm:$0xff]
  %v383 = vld [vmem:[%s4 + $0x18] sm:$0xff]
  %v384 = vld [vmem:[%s4 + $0x20] sm:$0xff]
  %v385 = vld [vmem:[%s4 + $0x28] sm:$0xff]
  %v386 = vld [vmem:[%s4 + $0x30] sm:$0xff]
  %v387 = vld [vmem:[%s4 + $0x38] sm:$0xff]
  %v388 = vld [vmem:[%s4 + $0x40] sm:$0xff]
  %v389 = vld [vmem:[%s4 + $0x48] sm:$0xff]
  %v390 = vld [vmem:[%s4 + $0x50] sm:$0xff]
  %v391 = vld [vmem:[%s4 + $0x58] sm:$0xff]
  %v392 = vld [vmem:[%s4 + $0x60] sm:$0xff]
  %v393 = vld [vmem:[%s4 + $0x68] sm:$0xff]
  %v394 = vld [vmem:[%s4 + $0x70] sm:$0xff]
  %v395 = vld [vmem:[%s4 + $0x78] sm:$0xff]
  %v396 = vld [vmem:[%s4 + $0x80] sm:$0xff]
  %v397 = vld [vmem:[%s4 + $0x88] sm:$0xff]
  %v398 = vld [vmem:[%s4 + $0x90] sm:$0xff]
  %v399 = vld [vmem:[%s4 + $0x98] sm:$0xff]
  %v400 = vld [vmem:[%s4 + $0xa0] sm:$0xff]
  %v401 = vld [vmem:[%s4 + $0xa8] sm:$0xff]
  %v402 = vld [vmem:[%s4 + $0xb0] sm:$0xff]
  %v403 = vld [vmem:[%s4 + $0xb8] sm:$0xff]
  %v404 = vld [vmem:[%s4 + $0xc0] sm:$0xff]
  %v405 = vld [vmem:[%s4 + $0xc8] sm:$0xff]
  %v406 = vld [vmem:[%s4 + $0xd0] sm:$0xff]
  %v407 = vld [vmem:[%s4 + $0xd8] sm:$0xff]
  %v408 = vld [vmem:[%s4 + $0xe0] sm:$0xff]
  %v409 = vld [vmem:[%s4 + $0xe8] sm:$0xff]
  %v410 = vld [vmem:[%s4 + $0xf0] sm:$0xff]
  %v411 = vld [vmem:[%s4 + $0xf8] sm:$0xff]
  %v412 = vld [vmem:[%s4 + $0x100] sm:$0xff]
  %v413 = vld [vmem:[%s4 + $0x108] sm:$0xff]
  %v414 = vld [vmem:[%s4 + $0x110] sm:$0xff]
  %v415 = vld [vmem:[%s4 + $0x118] sm:$0xff]
  %v416 = vld [vmem:[%s4 + $0x120] sm:$0xff]
  %v417 = vld [vmem:[%s4 + $0x128] sm:$0xff]
  %v418 = vld [vmem:[%s4 + $0x130] sm:$0xff]
  %v419 = vld [vmem:[%s4 + $0x138] sm:$0xff]
  %v420 = vld [vmem:[%s4 + $0x140] sm:$0xff]
  %v421 = vld [vmem:[%s4 + $0x148] sm:$0xff]
  %v422 = vld [vmem:[%s4 + $0x150] sm:$0xff]
  %v423 = vld [vmem:[%s4 + $0x158] sm:$0xff]
  %v424 = vld [vmem:[%s4 + $0x160] sm:$0xff]
  %v425 = vld [vmem:[%s4 + $0x168] sm:$0xff]
  %v426 = vld [vmem:[%s4 + $0x170] sm:$0xff]
  %v427 = vld [vmem:[%s4 + $0x178] sm:$0xff]
  %v428 = vld [vmem:[%s4 + $0x180] sm:$0xff]
  %v429 = vld [vmem:[%s4 + $0x188] sm:$0xff]
  %v430 = vld [vmem:[%s4 + $0x190] sm:$0xff]
  %v431 = vld [vmem:[%s4 + $0x198] sm:$0xff]
  %v432 = vld [vmem:[%s4 + $0x1a0] sm:$0xff]
  %v433 = vld [vmem:[%s4 + $0x1a8] sm:$0xff]
  %v434 = vld [vmem:[%s4 + $0x1b0] sm:$0xff]
  %v435 = vld [vmem:[%s4 + $0x1b8] sm:$0xff]
  %v436 = vld [vmem:[%s4 + $0x1c0] sm:$0xff]
  %v437 = vld [vmem:[%s4 + $0x1c8] sm:$0xff]
  %v438 = vld [vmem:[%s4 + $0x1d0] sm:$0xff]
  %v439 = vld [vmem:[%s4 + $0x1d8] sm:$0xff]
  %v440 = vld [vmem:[%s4 + $0x1e0] sm:$0xff]
  %v441 = vld [vmem:[%s4 + $0x1e8] sm:$0xff]
  %v442 = vld [vmem:[%s4 + $0x1f0] sm:$0xff]
  %v443 = vld [vmem:[%s4 + $0x1f8] sm:$0xff]
  %v444 = vld [vmem:[%s6] sm:$0xf]
  %v446 = vlaneseq
  %v447 = vshrl.u32 %v446, 7
  %v448 = vsub.s32 0, %v447
  %v449 = vrot.slane %v444, %v448
  %v450 = vlaneseq
  %v451 = vshrl.u32 %v450, 7
  %v452 = vsub.s32 1, %v451
  %v453 = vrot.slane %v444, %v452
  %v454 = vlaneseq
  %v455 = vshrl.u32 %v454, 7
  %v456 = vsub.s32 2, %v455
  %v457 = vrot.slane %v444, %v456
  %v458 = vlaneseq
  %v459 = vshrl.u32 %v458, 7
  %v460 = vsub.s32 3, %v459
  %v461 = vrot.slane %v444, %v460
  %466 = vmatprep.subr.mxu0 %v441
  %467 = vmatpush1.msra.mxu0 %v440
  %468 = vmatprep.subr.mxu0 %v437
  %469 = vmatpush1.msra.mxu0 %v436
  %470 = vmatprep.subr.mxu0 %v433
  %471 = vmatpush1.msra.mxu0 %v432
  %472 = vmatprep.subr.mxu0 %v429
  %473 = vmatpush1.msra.mxu0 %v428
  %474 = vmatprep.subr.mxu0 %v425
  %475 = vmatpush1.msra.mxu0 %v424
  %476 = vmatprep.subr.mxu0 %v421
  %477 = vmatpush1.msra.mxu0 %v420
  %478 = vmatprep.subr.mxu0 %v417
  %479 = vmatpush1.msra.mxu0 %v416
  %480 = vmatprep.subr.mxu0 %v413
  %481 = vmatpush1.msra.mxu0 %v412
  %482 = vmatprep.subr.mxu0 %v409
  %483 = vmatpush1.msra.mxu0 %v408
  %484 = vmatprep.subr.mxu0 %v405
  %485 = vmatpush1.msra.mxu0 %v404
  %486 = vmatprep.subr.mxu0 %v401
  %487 = vmatpush1.msra.mxu0 %v400
  %488 = vmatprep.subr.mxu0 %v397
  %489 = vmatpush1.msra.mxu0 %v396
  %490 = vmatprep.subr.mxu0 %v393
  %491 = vmatpush1.msra.mxu0 %v392
  %492 = vmatprep.subr.mxu0 %v389
  %493 = vmatpush1.msra.mxu0 %v388
  %494 = vmatprep.subr.mxu0 %v385
  %495 = vmatpush1.msra.mxu0 %v384
  %496 = vmatprep.subr.mxu0 %v381
  %497 = vmatpush1.msra.mxu0 %v380
  %498 = vmatprep.subr.mxu0 0.0
  %499 = vmatpush2.msra.mxu0 0.0
  %500 = vmatprep.subr.mxu0 0.0
  %501 = vmatpush2.msra.mxu0 0.0
  %502 = vmatprep.subr.mxu0 0.0
  %503 = vmatpush2.msra.mxu0 0.0
  %504 = vmatprep.subr.mxu0 0.0
  %505 = vmatpush2.msra.mxu0 0.0
  %506 = vmatprep.subr.mxu0 0.0
  %507 = vmatpush2.msra.mxu0 0.0
  %508 = vmatprep.subr.mxu0 0.0
  %509 = vmatpush2.msra.mxu0 0.0
  %510 = vmatprep.subr.mxu0 0.0
  %511 = vmatpush2.msra.mxu0 0.0
  %512 = vmatprep.subr.mxu0 0.0
  %513 = vmatpush2.msra.mxu0 0.0
  %514 = vmatprep.subr.mxu0 0.0
  %515 = vmatpush2.msra.mxu0 0.0
  %516 = vmatprep.subr.mxu0 0.0
  %517 = vmatpush2.msra.mxu0 0.0
  %518 = vmatprep.subr.mxu0 0.0
  %519 = vmatpush2.msra.mxu0 0.0
  %520 = vmatprep.subr.mxu0 0.0
  %521 = vmatpush2.msra.mxu0 0.0
  %522 = vmatprep.subr.mxu0 0.0
  %523 = vmatpush2.msra.mxu0 0.0
  %524 = vmatprep.subr.mxu0 0.0
  %525 = vmatpush2.msra.mxu0 0.0
  %526 = vmatprep.subr.mxu0 0.0
  %527 = vmatpush2.msra.mxu0 0.0
  %528 = vmatprep.subr.mxu0 0.0
  %529 = vmatpush2.msra.mxu0 0.0
  %530 = vmatprep.mubr.f32.mxu0 0.0
  %531 = vmatmul.mubr.f32.gmra.mxu0 %v28
  %v532 = vpop.f32.mrf.mxu0
  %v533 = vadd.f32 %v449, %v532
  %v534 = vpop.f32.mrf.mxu0
  %v535 = vadd.f32 %v453, %v534
  %536 = vmatprep.mubr.f32.mxu0 0.0
  %537 = vmatmul.mubr.f32.gmra.mxu0 %v29
  %v538 = vpop.f32.mrf.mxu0
  %v539 = vadd.f32 %v449, %v538
  %v540 = vpop.f32.mrf.mxu0
  %v541 = vadd.f32 %v453, %v540
  %542 = vmatprep.mubr.f32.mxu0 0.0
  %543 = vmatmul.mubr.f32.gmra.mxu0 %v30
  %v544 = vpop.f32.mrf.mxu0
  %v545 = vadd.f32 %v449, %v544
  %v546 = vpop.f32.mrf.mxu0
  %v547 = vadd.f32 %v453, %v546
  %548 = vmatprep.mubr.f32.mxu0 0.0
  %549 = vmatmul.mubr.f32.gmra.mxu0 %v31
  %v550 = vpop.f32.mrf.mxu0
  %v551 = vadd.f32 %v449, %v550
  %v552 = vpop.f32.mrf.mxu0
  %v553 = vadd.f32 %v453, %v552
  %554 = vmatprep.mubr.f32.mxu0 0.0
  %555 = vmatmul.mubr.f32.gmra.mxu0 %v32
  %v556 = vpop.f32.mrf.mxu0
  %v557 = vadd.f32 %v449, %v556
  %v558 = vpop.f32.mrf.mxu0
  %v559 = vadd.f32 %v453, %v558
  %560 = vmatprep.mubr.f32.mxu0 0.0
  %561 = vmatmul.mubr.f32.gmra.mxu0 %v33
  %v562 = vpop.f32.mrf.mxu0
  %v563 = vadd.f32 %v449, %v562
  %v564 = vpop.f32.mrf.mxu0
  %v565 = vadd.f32 %v453, %v564
  %566 = vmatprep.mubr.f32.mxu0 0.0
  %567 = vmatmul.mubr.f32.gmra.mxu0 %v34
  %v568 = vpop.f32.mrf.mxu0
  %v569 = vadd.f32 %v449, %v568
  %v570 = vpop.f32.mrf.mxu0
  %v571 = vadd.f32 %v453, %v570
  %572 = vmatprep.mubr.f32.mxu0 0.0
  %573 = vmatmul.mubr.f32.gmra.mxu0 %v35
  %v574 = vpop.f32.mrf.mxu0
  %v575 = vadd.f32 %v449, %v574
  %v576 = vpop.f32.mrf.mxu0
  %v577 = vadd.f32 %v453, %v576
  %578 = vdwg.mxu0
  %579 = vmatprep.subr.mxu0 %v443
  %580 = vmatpush1.msra.mxu0 %v442
  %581 = vmatprep.subr.mxu0 %v439
  %582 = vmatpush1.msra.mxu0 %v438
  %583 = vmatprep.subr.mxu0 %v435
  %584 = vmatpush1.msra.mxu0 %v434
  %585 = vmatprep.subr.mxu0 %v431
  %586 = vmatpush1.msra.mxu0 %v430
  %587 = vmatprep.subr.mxu0 %v427
  %588 = vmatpush1.msra.mxu0 %v426
  %589 = vmatprep.subr.mxu0 %v423
  %590 = vmatpush1.msra.mxu0 %v422
  %591 = vmatprep.subr.mxu0 %v419
  %592 = vmatpush1.msra.mxu0 %v418
  %593 = vmatprep.subr.mxu0 %v415
  %594 = vmatpush1.msra.mxu0 %v414
  %595 = vmatprep.subr.mxu0 %v411
  %596 = vmatpush1.msra.mxu0 %v410
  %597 = vmatprep.subr.mxu0 %v407
  %598 = vmatpush1.msra.mxu0 %v406
  %599 = vmatprep.subr.mxu0 %v403
  %600 = vmatpush1.msra.mxu0 %v402
  %601 = vmatprep.subr.mxu0 %v399
  %602 = vmatpush1.msra.mxu0 %v398
  %603 = vmatprep.subr.mxu0 %v395
  %604 = vmatpush1.msra.mxu0 %v394
  %605 = vmatprep.subr.mxu0 %v391
  %606 = vmatpush1.msra.mxu0 %v390
  %607 = vmatprep.subr.mxu0 %v387
  %608 = vmatpush1.msra.mxu0 %v386
  %609 = vmatprep.subr.mxu0 %v383
  %610 = vmatpush1.msra.mxu0 %v382
  %611 = vmatprep.subr.mxu0 0.0
  %612 = vmatpush2.msra.mxu0 0.0
  %613 = vmatprep.subr.mxu0 0.0
  %614 = vmatpush2.msra.mxu0 0.0
  %615 = vmatprep.subr.mxu0 0.0
  %616 = vmatpush2.msra.mxu0 0.0
  %617 = vmatprep.subr.mxu0 0.0
  %618 = vmatpush2.msra.mxu0 0.0
  %619 = vmatprep.subr.mxu0 0.0
  %620 = vmatpush2.msra.mxu0 0.0
  %621 = vmatprep.subr.mxu0 0.0
  %622 = vmatpush2.msra.mxu0 0.0
  %623 = vmatprep.subr.mxu0 0.0
  %624 = vmatpush2.msra.mxu0 0.0
  %625 = vmatprep.subr.mxu0 0.0
  %626 = vmatpush2.msra.mxu0 0.0
  %627 = vmatprep.subr.mxu0 0.0
  %628 = vmatpush2.msra.mxu0 0.0
  %629 = vmatprep.subr.mxu0 0.0
  %630 = vmatpush2.msra.mxu0 0.0
  %631 = vmatprep.subr.mxu0 0.0
  %632 = vmatpush2.msra.mxu0 0.0
  %633 = vmatprep.subr.mxu0 0.0
  %634 = vmatpush2.msra.mxu0 0.0
  %635 = vmatprep.subr.mxu0 0.0
  %636 = vmatpush2.msra.mxu0 0.0
  %637 = vmatprep.subr.mxu0 0.0
  %638 = vmatpush2.msra.mxu0 0.0
  %639 = vmatprep.subr.mxu0 0.0
  %640 = vmatpush2.msra.mxu0 0.0
  %641 = vmatprep.subr.mxu0 0.0
  %642 = vmatpush2.msra.mxu0 0.0
  %643 = vmatprep.mubr.f32.mxu0 0.0
  %644 = vmatmul.mubr.f32.gmra.mxu0 %v28
  %v645 = vpop.f32.mrf.mxu0
  %v646 = vadd.f32 %v457, %v645
  %v647 = vpop.f32.mrf.mxu0
  %v648 = vadd.f32 %v461, %v647
  %649 = vmatprep.mubr.f32.mxu0 0.0
  %650 = vmatmul.mubr.f32.gmra.mxu0 %v29
  %v651 = vpop.f32.mrf.mxu0
  %v652 = vadd.f32 %v457, %v651
  %v653 = vpop.f32.mrf.mxu0
  %v654 = vadd.f32 %v461, %v653
  %655 = vmatprep.mubr.f32.mxu0 0.0
  %656 = vmatmul.mubr.f32.gmra.mxu0 %v30
  %v657 = vpop.f32.mrf.mxu0
  %v658 = vadd.f32 %v457, %v657
  %v659 = vpop.f32.mrf.mxu0
  %v660 = vadd.f32 %v461, %v659
  %661 = vmatprep.mubr.f32.mxu0 0.0
  %662 = vmatmul.mubr.f32.gmra.mxu0 %v31
  %v663 = vpop.f32.mrf.mxu0
  %v664 = vadd.f32 %v457, %v663
  %v665 = vpop.f32.mrf.mxu0
  %v666 = vadd.f32 %v461, %v665
  %667 = vmatprep.mubr.f32.mxu0 0.0
  %668 = vmatmul.mubr.f32.gmra.mxu0 %v32
  %v669 = vpop.f32.mrf.mxu0
  %v670 = vadd.f32 %v457, %v669
  %v671 = vpop.f32.mrf.mxu0
  %v672 = vadd.f32 %v461, %v671
  %673 = vmatprep.mubr.f32.mxu0 0.0
  %674 = vmatmul.mubr.f32.gmra.mxu0 %v33
  %v675 = vpop.f32.mrf.mxu0
  %v676 = vadd.f32 %v457, %v675
  %v677 = vpop.f32.mrf.mxu0
  %v678 = vadd.f32 %v461, %v677
  %679 = vmatprep.mubr.f32.mxu0 0.0
  %680 = vmatmul.mubr.f32.gmra.mxu0 %v34
  %v681 = vpop.f32.mrf.mxu0
  %v682 = vadd.f32 %v457, %v681
  %v683 = vpop.f32.mrf.mxu0
  %v684 = vadd.f32 %v461, %v683
  %685 = vmatprep.mubr.f32.mxu0 0.0
  %686 = vmatmul.mubr.f32.gmra.mxu0 %v35
  %v687 = vpop.f32.mrf.mxu0
  %v688 = vadd.f32 %v457, %v687
  %v689 = vpop.f32.mrf.mxu0
  %v690 = vadd.f32 %v461, %v689
  %691 = vdwg.mxu0
  %692 = vst [vmem:[#allocation3] sm:$0xff] %v533
  %693 = vst [vmem:[#allocation3 + $0x8] sm:$0xff] %v535
  %694 = vst [vmem:[#allocation3 + $0x10] sm:$0xff] %v646
  %695 = vst [vmem:[#allocation3 + $0x18] sm:$0xff] %v648
  %696 = vst [vmem:[#allocation3 + $0x20] sm:$0xff] %v539
  %697 = vst [vmem:[#allocation3 + $0x28] sm:$0xff] %v541
  %698 = vst [vmem:[#allocation3 + $0x30] sm:$0xff] %v652
  %699 = vst [vmem:[#allocation3 + $0x38] sm:$0xff] %v654
  %700 = vst [vmem:[#allocation3 + $0x40] sm:$0xff] %v545
  %701 = vst [vmem:[#allocation3 + $0x48] sm:$0xff] %v547
  %702 = vst [vmem:[#allocation3 + $0x50] sm:$0xff] %v658
  %703 = vst [vmem:[#allocation3 + $0x58] sm:$0xff] %v660
  %704 = vst [vmem:[#allocation3 + $0x60] sm:$0xff] %v551
  %705 = vst [vmem:[#allocation3 + $0x68] sm:$0xff] %v553
  %706 = vst [vmem:[#allocation3 + $0x70] sm:$0xff] %v664
  %707 = vst [vmem:[#allocation3 + $0x78] sm:$0xff] %v666
  %708 = vst [vmem:[#allocation3 + $0x80] sm:$0xff] %v557
  %709 = vst [vmem:[#allocation3 + $0x88] sm:$0xff] %v559
  %710 = vst [vmem:[#allocation3 + $0x90] sm:$0xff] %v670
  %711 = vst [vmem:[#allocation3 + $0x98] sm:$0xff] %v672
  %712 = vst [vmem:[#allocation3 + $0xa0] sm:$0xff] %v563
  %713 = vst [vmem:[#allocation3 + $0xa8] sm:$0xff] %v565
  %714 = vst [vmem:[#allocation3 + $0xb0] sm:$0xff] %v676
  %715 = vst [vmem:[#allocation3 + $0xb8] sm:$0xff] %v678
  %716 = vst [vmem:[#allocation3 + $0xc0] sm:$0xff] %v569
  %717 = vst [vmem:[#allocation3 + $0xc8] sm:$0xff] %v571
  %718 = vst [vmem:[#allocation3 + $0xd0] sm:$0xff] %v682
  %719 = vst [vmem:[#allocation3 + $0xd8] sm:$0xff] %v684
  %720 = vst [vmem:[#allocation3 + $0xe0] sm:$0xff] %v575
  %721 = vst [vmem:[#allocation3 + $0xe8] sm:$0xff] %v577
  %722 = vst [vmem:[#allocation3 + $0xf0] sm:$0xff] %v688
  %723 = vst [vmem:[#allocation3 + $0xf8] sm:$0xff] %v690
  %724 = vst [vmem:[#allocation4] sm:$0xff] 0.0
  %725 = vst [vmem:[#allocation5] sm:$0xff] 0.0
  %726 = vst [vmem:[#allocation6] sm:$0xff] 0.0
  %727 = vst [vmem:[#allocation7] sm:$0xff] 0.0
  loop: start=0, step=1, limit=8
  $region30: #{_lambda_.15} parent=0 // loop_pre_header
    _
  $region31: #{_lambda_.15} parent=0 // loop_header
    %s729 = sphi 0, %s733
    %p730 = scmp.ge.s32.totalorder %s729, 8
  $region32: #{_lambda_.15} parent=0 // loop_header_branch
    %732 = sbr.rel (%p730) target = $region36
  $region33: #{_lambda_.15} parent=0 // loop_body
    %s734 = smul.u32 %s729, 8
    %s735 = sshra.s32 %s734, 3
    %s736 = sand.u32 %s734, 7
    %s737 = smul.u32 %s735, 4
    %s738 = smul.addr %s737, 8
    %s739 = scalar_lea.vmem [#allocation2], %s738
    %v740 = vld [vmem:[%s739] sm:$0xff]
    %v741 = vld [vmem:[%s739 + $0x8] sm:$0xff]
    %v742 = vld [vmem:[%s739 + $0x10] sm:$0xff]
    %v743 = vld [vmem:[%s739 + $0x18] sm:$0xff]
    %v744 = vld [vmem:[#allocation4] sm:$0xff]
    %v745 = vld [vmem:[%s2] sm:$0xff]
    %v746 = vld [vmem:[%s2 + $0x8] sm:$0xff]
    %v747 = vld [vmem:[%s2 + $0x10] sm:$0xff]
    %v748 = vld [vmem:[%s2 + $0x18] sm:$0xff]
    %v749 = vld [vmem:[%s2 + $0x20] sm:$0xff]
    %v750 = vld [vmem:[%s2 + $0x28] sm:$0xff]
    %v751 = vld [vmem:[%s2 + $0x30] sm:$0xff]
    %v752 = vld [vmem:[%s2 + $0x38] sm:$0xff]
    %v753 = vld [vmem:[%s2 + $0x40] sm:$0xff]
    %v754 = vld [vmem:[%s2 + $0x48] sm:$0xff]
    %v755 = vld [vmem:[%s2 + $0x50] sm:$0xff]
    %v756 = vld [vmem:[%s2 + $0x58] sm:$0xff]
    %v757 = vld [vmem:[%s2 + $0x60] sm:$0xff]
    %v758 = vld [vmem:[%s2 + $0x68] sm:$0xff]
    %v759 = vld [vmem:[%s2 + $0x70] sm:$0xff]
    %v760 = vld [vmem:[%s2 + $0x78] sm:$0xff]
    %v761 = vld [vmem:[%s2 + $0x80] sm:$0xff]
    %v762 = vld [vmem:[%s2 + $0x88] sm:$0xff]
    %v763 = vld [vmem:[%s2 + $0x90] sm:$0xff]
    %v764 = vld [vmem:[%s2 + $0x98] sm:$0xff]
    %v765 = vld [vmem:[%s2 + $0xa0] sm:$0xff]
    %v766 = vld [vmem:[%s2 + $0xa8] sm:$0xff]
    %v767 = vld [vmem:[%s2 + $0xb0] sm:$0xff]
    %v768 = vld [vmem:[%s2 + $0xb8] sm:$0xff]
    %v769 = vld [vmem:[%s2 + $0xc0] sm:$0xff]
    %v770 = vld [vmem:[%s2 + $0xc8] sm:$0xff]
    %v771 = vld [vmem:[%s2 + $0xd0] sm:$0xff]
    %v772 = vld [vmem:[%s2 + $0xd8] sm:$0xff]
    %v773 = vld [vmem:[%s2 + $0xe0] sm:$0xff]
    %v774 = vld [vmem:[%s2 + $0xe8] sm:$0xff]
    %v775 = vld [vmem:[%s2 + $0xf0] sm:$0xff]
    %v776 = vld [vmem:[%s2 + $0xf8] sm:$0xff]
    %v777 = vld [vmem:[%s2 + $0x100] sm:$0xff]
    %v778 = vld [vmem:[%s2 + $0x108] sm:$0xff]
    %v779 = vld [vmem:[%s2 + $0x110] sm:$0xff]
    %v780 = vld [vmem:[%s2 + $0x118] sm:$0xff]
    %v781 = vld [vmem:[%s2 + $0x120] sm:$0xff]
    %v782 = vld [vmem:[%s2 + $0x128] sm:$0xff]
    %v783 = vld [vmem:[%s2 + $0x130] sm:$0xff]
    %v784 = vld [vmem:[%s2 + $0x138] sm:$0xff]
    %v785 = vld [vmem:[%s2 + $0x140] sm:$0xff]
    %v786 = vld [vmem:[%s2 + $0x148] sm:$0xff]
    %v787 = vld [vmem:[%s2 + $0x150] sm:$0xff]
    %v788 = vld [vmem:[%s2 + $0x158] sm:$0xff]
    %v789 = vld [vmem:[%s2 + $0x160] sm:$0xff]
    %v790 = vld [vmem:[%s2 + $0x168] sm:$0xff]
    %v791 = vld [vmem:[%s2 + $0x170] sm:$0xff]
    %v792 = vld [vmem:[%s2 + $0x178] sm:$0xff]
    %v793 = vld [vmem:[%s2 + $0x180] sm:$0xff]
    %v794 = vld [vmem:[%s2 + $0x188] sm:$0xff]
    %v795 = vld [vmem:[%s2 + $0x190] sm:$0xff]
    %v796 = vld [vmem:[%s2 + $0x198] sm:$0xff]
    %v797 = vld [vmem:[%s2 + $0x1a0] sm:$0xff]
    %v798 = vld [vmem:[%s2 + $0x1a8] sm:$0xff]
    %v799 = vld [vmem:[%s2 + $0x1b0] sm:$0xff]
    %v800 = vld [vmem:[%s2 + $0x1b8] sm:$0xff]
    %v801 = vld [vmem:[%s2 + $0x1c0] sm:$0xff]
    %v802 = vld [vmem:[%s2 + $0x1c8] sm:$0xff]
    %v803 = vld [vmem:[%s2 + $0x1d0] sm:$0xff]
    %v804 = vld [vmem:[%s2 + $0x1d8] sm:$0xff]
    %v805 = vld [vmem:[%s2 + $0x1e0] sm:$0xff]
    %v806 = vld [vmem:[%s2 + $0x1e8] sm:$0xff]
    %v807 = vld [vmem:[%s2 + $0x1f0] sm:$0xff]
    %v808 = vld [vmem:[%s2 + $0x1f8] sm:$0xff]
    %809 = vmatprep.subr.mxu0 %v806
    %810 = vmatpush1.msra.mxu0 %v805
    %811 = vmatprep.subr.mxu0 %v802
    %812 = vmatpush1.msra.mxu0 %v801
    %813 = vmatprep.subr.mxu0 %v798
    %814 = vmatpush1.msra.mxu0 %v797
    %815 = vmatprep.subr.mxu0 %v794
    %816 = vmatpush1.msra.mxu0 %v793
    %817 = vmatprep.subr.mxu0 %v790
    %818 = vmatpush1.msra.mxu0 %v789
    %819 = vmatprep.subr.mxu0 %v786
    %820 = vmatpush1.msra.mxu0 %v785
    %821 = vmatprep.subr.mxu0 %v782
    %822 = vmatpush1.msra.mxu0 %v781
    %823 = vmatprep.subr.mxu0 %v778
    %824 = vmatpush1.msra.mxu0 %v777
    %825 = vmatprep.subr.mxu0 %v774
    %826 = vmatpush1.msra.mxu0 %v773
    %827 = vmatprep.subr.mxu0 %v770
    %828 = vmatpush1.msra.mxu0 %v769
    %829 = vmatprep.subr.mxu0 %v766
    %830 = vmatpush1.msra.mxu0 %v765
    %831 = vmatprep.subr.mxu0 %v762
    %832 = vmatpush1.msra.mxu0 %v761
    %833 = vmatprep.subr.mxu0 %v758
    %834 = vmatpush1.msra.mxu0 %v757
    %835 = vmatprep.subr.mxu0 %v754
    %836 = vmatpush1.msra.mxu0 %v753
    %837 = vmatprep.subr.mxu0 %v750
    %838 = vmatpush1.msra.mxu0 %v749
    %839 = vmatprep.subr.mxu0 %v746
    %840 = vmatpush1.msra.mxu0 %v745
    %841 = vmatprep.subr.mxu0 0.0
    %842 = vmatpush2.msra.mxu0 0.0
    %843 = vmatprep.subr.mxu0 0.0
    %844 = vmatpush2.msra.mxu0 0.0
    %845 = vmatprep.subr.mxu0 0.0
    %846 = vmatpush2.msra.mxu0 0.0
    %847 = vmatprep.subr.mxu0 0.0
    %848 = vmatpush2.msra.mxu0 0.0
    %849 = vmatprep.subr.mxu0 0.0
    %850 = vmatpush2.msra.mxu0 0.0
    %851 = vmatprep.subr.mxu0 0.0
    %852 = vmatpush2.msra.mxu0 0.0
    %853 = vmatprep.subr.mxu0 0.0
    %854 = vmatpush2.msra.mxu0 0.0
    %855 = vmatprep.subr.mxu0 0.0
    %856 = vmatpush2.msra.mxu0 0.0
    %857 = vmatprep.subr.mxu0 0.0
    %858 = vmatpush2.msra.mxu0 0.0
    %859 = vmatprep.subr.mxu0 0.0
    %860 = vmatpush2.msra.mxu0 0.0
    %861 = vmatprep.subr.mxu0 0.0
    %862 = vmatpush2.msra.mxu0 0.0
    %863 = vmatprep.subr.mxu0 0.0
    %864 = vmatpush2.msra.mxu0 0.0
    %865 = vmatprep.subr.mxu0 0.0
    %866 = vmatpush2.msra.mxu0 0.0
    %867 = vmatprep.subr.mxu0 0.0
    %868 = vmatpush2.msra.mxu0 0.0
    %869 = vmatprep.subr.mxu0 0.0
    %870 = vmatpush2.msra.mxu0 0.0
    %871 = vmatprep.subr.mxu0 0.0
    %872 = vmatpush2.msra.mxu0 0.0
    %873 = vmatprep.mubr.f32.mxu0 0.0
    %874 = vmatmul.mubr.f32.gmra.mxu0 %v744
    %v875 = vpop.f32.mrf.mxu0
    %v876 = vadd.f32 0.0, %v875
    %v877 = vpop.f32.mrf.mxu0
    %v878 = vadd.f32 0.0, %v877
    %879 = vdwg.mxu0
    %880 = vmatprep.subr.mxu0 %v808
    %881 = vmatpush1.msra.mxu0 %v807
    %882 = vmatprep.subr.mxu0 %v804
    %883 = vmatpush1.msra.mxu0 %v803
    %884 = vmatprep.subr.mxu0 %v800
    %885 = vmatpush1.msra.mxu0 %v799
    %886 = vmatprep.subr.mxu0 %v796
    %887 = vmatpush1.msra.mxu0 %v795
    %888 = vmatprep.subr.mxu0 %v792
    %889 = vmatpush1.msra.mxu0 %v791
    %890 = vmatprep.subr.mxu0 %v788
    %891 = vmatpush1.msra.mxu0 %v787
    %892 = vmatprep.subr.mxu0 %v784
    %893 = vmatpush1.msra.mxu0 %v783
    %894 = vmatprep.subr.mxu0 %v780
    %895 = vmatpush1.msra.mxu0 %v779
    %896 = vmatprep.subr.mxu0 %v776
    %897 = vmatpush1.msra.mxu0 %v775
    %898 = vmatprep.subr.mxu0 %v772
    %899 = vmatpush1.msra.mxu0 %v771
    %900 = vmatprep.subr.mxu0 %v768
    %901 = vmatpush1.msra.mxu0 %v767
    %902 = vmatprep.subr.mxu0 %v764
    %903 = vmatpush1.msra.mxu0 %v763
    %904 = vmatprep.subr.mxu0 %v760
    %905 = vmatpush1.msra.mxu0 %v759
    %906 = vmatprep.subr.mxu0 %v756
    %907 = vmatpush1.msra.mxu0 %v755
    %908 = vmatprep.subr.mxu0 %v752
    %909 = vmatpush1.msra.mxu0 %v751
    %910 = vmatprep.subr.mxu0 %v748
    %911 = vmatpush1.msra.mxu0 %v747
    %912 = vmatprep.subr.mxu0 0.0
    %913 = vmatpush2.msra.mxu0 0.0
    %914 = vmatprep.subr.mxu0 0.0
    %915 = vmatpush2.msra.mxu0 0.0
    %916 = vmatprep.subr.mxu0 0.0
    %917 = vmatpush2.msra.mxu0 0.0
    %918 = vmatprep.subr.mxu0 0.0
    %919 = vmatpush2.msra.mxu0 0.0
    %920 = vmatprep.subr.mxu0 0.0
    %921 = vmatpush2.msra.mxu0 0.0
    %922 = vmatprep.subr.mxu0 0.0
    %923 = vmatpush2.msra.mxu0 0.0
    %924 = vmatprep.subr.mxu0 0.0
    %925 = vmatpush2.msra.mxu0 0.0
    %926 = vmatprep.subr.mxu0 0.0
    %927 = vmatpush2.msra.mxu0 0.0
    %928 = vmatprep.subr.mxu0 0.0
    %929 = vmatpush2.msra.mxu0 0.0
    %930 = vmatprep.subr.mxu0 0.0
    %931 = vmatpush2.msra.mxu0 0.0
    %932 = vmatprep.subr.mxu0 0.0
    %933 = vmatpush2.msra.mxu0 0.0
    %934 = vmatprep.subr.mxu0 0.0
    %935 = vmatpush2.msra.mxu0 0.0
    %936 = vmatprep.subr.mxu0 0.0
    %937 = vmatpush2.msra.mxu0 0.0
    %938 = vmatprep.subr.mxu0 0.0
    %939 = vmatpush2.msra.mxu0 0.0
    %940 = vmatprep.subr.mxu0 0.0
    %941 = vmatpush2.msra.mxu0 0.0
    %942 = vmatprep.subr.mxu0 0.0
    %943 = vmatpush2.msra.mxu0 0.0
    %944 = vmatprep.mubr.f32.mxu0 0.0
    %945 = vmatmul.mubr.f32.gmra.mxu0 %v744
    %v946 = vpop.f32.mrf.mxu0
    %v947 = vadd.f32 0.0, %v946
    %v948 = vpop.f32.mrf.mxu0
    %v949 = vadd.f32 0.0, %v948
    %950 = vdwg.mxu0
    %v951 = vadd.f32 %v740, %v876
    %v952 = vadd.f32 %v741, %v878
    %v953 = vadd.f32 %v742, %v947
    %v954 = vadd.f32 %v743, %v949
    %s955 = smul.addr %s737, 8
    %s956 = scalar_lea.vmem [#allocation3], %s955
    %v957 = vld [vmem:[%s956] sm:$0xff]
    %v958 = vld [vmem:[%s956 + $0x8] sm:$0xff]
    %v959 = vld [vmem:[%s956 + $0x10] sm:$0xff]
    %v960 = vld [vmem:[%s956 + $0x18] sm:$0xff]
    %v961 = vld [vmem:[#allocation6] sm:$0xff]
    %v962 = vld [vmem:[%s5] sm:$0xff]
    %v963 = vld [vmem:[%s5 + $0x8] sm:$0xff]
    %v964 = vld [vmem:[%s5 + $0x10] sm:$0xff]
    %v965 = vld [vmem:[%s5 + $0x18] sm:$0xff]
    %v966 = vld [vmem:[%s5 + $0x20] sm:$0xff]
    %v967 = vld [vmem:[%s5 + $0x28] sm:$0xff]
    %v968 = vld [vmem:[%s5 + $0x30] sm:$0xff]
    %v969 = vld [vmem:[%s5 + $0x38] sm:$0xff]
    %v970 = vld [vmem:[%s5 + $0x40] sm:$0xff]
    %v971 = vld [vmem:[%s5 + $0x48] sm:$0xff]
    %v972 = vld [vmem:[%s5 + $0x50] sm:$0xff]
    %v973 = vld [vmem:[%s5 + $0x58] sm:$0xff]
    %v974 = vld [vmem:[%s5 + $0x60] sm:$0xff]
    %v975 = vld [vmem:[%s5 + $0x68] sm:$0xff]
    %v976 = vld [vmem:[%s5 + $0x70] sm:$0xff]
    %v977 = vld [vmem:[%s5 + $0x78] sm:$0xff]
    %v978 = vld [vmem:[%s5 + $0x80] sm:$0xff]
    %v979 = vld [vmem:[%s5 + $0x88] sm:$0xff]
    %v980 = vld [vmem:[%s5 + $0x90] sm:$0xff]
    %v981 = vld [vmem:[%s5 + $0x98] sm:$0xff]
    %v982 = vld [vmem:[%s5 + $0xa0] sm:$0xff]
    %v983 = vld [vmem:[%s5 + $0xa8] sm:$0xff]
    %v984 = vld [vmem:[%s5 + $0xb0] sm:$0xff]
    %v985 = vld [vmem:[%s5 + $0xb8] sm:$0xff]
    %v986 = vld [vmem:[%s5 + $0xc0] sm:$0xff]
    %v987 = vld [vmem:[%s5 + $0xc8] sm:$0xff]
    %v988 = vld [vmem:[%s5 + $0xd0] sm:$0xff]
    %v989 = vld [vmem:[%s5 + $0xd8] sm:$0xff]
    %v990 = vld [vmem:[%s5 + $0xe0] sm:$0xff]
    %v991 = vld [vmem:[%s5 + $0xe8] sm:$0xff]
    %v992 = vld [vmem:[%s5 + $0xf0] sm:$0xff]
    %v993 = vld [vmem:[%s5 + $0xf8] sm:$0xff]
    %v994 = vld [vmem:[%s5 + $0x100] sm:$0xff]
    %v995 = vld [vmem:[%s5 + $0x108] sm:$0xff]
    %v996 = vld [vmem:[%s5 + $0x110] sm:$0xff]
    %v997 = vld [vmem:[%s5 + $0x118] sm:$0xff]
    %v998 = vld [vmem:[%s5 + $0x120] sm:$0xff]
    %v999 = vld [vmem:[%s5 + $0x128] sm:$0xff]
    %v1000 = vld [vmem:[%s5 + $0x130] sm:$0xff]
    %v1001 = vld [vmem:[%s5 + $0x138] sm:$0xff]
    %v1002 = vld [vmem:[%s5 + $0x140] sm:$0xff]
    %v1003 = vld [vmem:[%s5 + $0x148] sm:$0xff]
    %v1004 = vld [vmem:[%s5 + $0x150] sm:$0xff]
    %v1005 = vld [vmem:[%s5 + $0x158] sm:$0xff]
    %v1006 = vld [vmem:[%s5 + $0x160] sm:$0xff]
    %v1007 = vld [vmem:[%s5 + $0x168] sm:$0xff]
    %v1008 = vld [vmem:[%s5 + $0x170] sm:$0xff]
    %v1009 = vld [vmem:[%s5 + $0x178] sm:$0xff]
    %v1010 = vld [vmem:[%s5 + $0x180] sm:$0xff]
    %v1011 = vld [vmem:[%s5 + $0x188] sm:$0xff]
    %v1012 = vld [vmem:[%s5 + $0x190] sm:$0xff]
    %v1013 = vld [vmem:[%s5 + $0x198] sm:$0xff]
    %v1014 = vld [vmem:[%s5 + $0x1a0] sm:$0xff]
    %v1015 = vld [vmem:[%s5 + $0x1a8] sm:$0xff]
    %v1016 = vld [vmem:[%s5 + $0x1b0] sm:$0xff]
    %v1017 = vld [vmem:[%s5 + $0x1b8] sm:$0xff]
    %v1018 = vld [vmem:[%s5 + $0x1c0] sm:$0xff]
    %v1019 = vld [vmem:[%s5 + $0x1c8] sm:$0xff]
    %v1020 = vld [vmem:[%s5 + $0x1d0] sm:$0xff]
    %v1021 = vld [vmem:[%s5 + $0x1d8] sm:$0xff]
    %v1022 = vld [vmem:[%s5 + $0x1e0] sm:$0xff]
    %v1023 = vld [vmem:[%s5 + $0x1e8] sm:$0xff]
    %v1024 = vld [vmem:[%s5 + $0x1f0] sm:$0xff]
    %v1025 = vld [vmem:[%s5 + $0x1f8] sm:$0xff]
    %1026 = vmatprep.subr.mxu0 %v1023
    %1027 = vmatpush1.msra.mxu0 %v1022
    %1028 = vmatprep.subr.mxu0 %v1019
    %1029 = vmatpush1.msra.mxu0 %v1018
    %1030 = vmatprep.subr.mxu0 %v1015
    %1031 = vmatpush1.msra.mxu0 %v1014
    %1032 = vmatprep.subr.mxu0 %v1011
    %1033 = vmatpush1.msra.mxu0 %v1010
    %1034 = vmatprep.subr.mxu0 %v1007
    %1035 = vmatpush1.msra.mxu0 %v1006
    %1036 = vmatprep.subr.mxu0 %v1003
    %1037 = vmatpush1.msra.mxu0 %v1002
    %1038 = vmatprep.subr.mxu0 %v999
    %1039 = vmatpush1.msra.mxu0 %v998
    %1040 = vmatprep.subr.mxu0 %v995
    %1041 = vmatpush1.msra.mxu0 %v994
    %1042 = vmatprep.subr.mxu0 %v991
    %1043 = vmatpush1.msra.mxu0 %v990
    %1044 = vmatprep.subr.mxu0 %v987
    %1045 = vmatpush1.msra.mxu0 %v986
    %1046 = vmatprep.subr.mxu0 %v983
    %1047 = vmatpush1.msra.mxu0 %v982
    %1048 = vmatprep.subr.mxu0 %v979
    %1049 = vmatpush1.msra.mxu0 %v978
    %1050 = vmatprep.subr.mxu0 %v975
    %1051 = vmatpush1.msra.mxu0 %v974
    %1052 = vmatprep.subr.mxu0 %v971
    %1053 = vmatpush1.msra.mxu0 %v970
    %1054 = vmatprep.subr.mxu0 %v967
    %1055 = vmatpush1.msra.mxu0 %v966
    %1056 = vmatprep.subr.mxu0 %v963
    %1057 = vmatpush1.msra.mxu0 %v962
    %1058 = vmatprep.subr.mxu0 0.0
    %1059 = vmatpush2.msra.mxu0 0.0
    %1060 = vmatprep.subr.mxu0 0.0
    %1061 = vmatpush2.msra.mxu0 0.0
    %1062 = vmatprep.subr.mxu0 0.0
    %1063 = vmatpush2.msra.mxu0 0.0
    %1064 = vmatprep.subr.mxu0 0.0
    %1065 = vmatpush2.msra.mxu0 0.0
    %1066 = vmatprep.subr.mxu0 0.0
    %1067 = vmatpush2.msra.mxu0 0.0
    %1068 = vmatprep.subr.mxu0 0.0
    %1069 = vmatpush2.msra.mxu0 0.0
    %1070 = vmatprep.subr.mxu0 0.0
    %1071 = vmatpush2.msra.mxu0 0.0
    %1072 = vmatprep.subr.mxu0 0.0
    %1073 = vmatpush2.msra.mxu0 0.0
    %1074 = vmatprep.subr.mxu0 0.0
    %1075 = vmatpush2.msra.mxu0 0.0
    %1076 = vmatprep.subr.mxu0 0.0
    %1077 = vmatpush2.msra.mxu0 0.0
    %1078 = vmatprep.subr.mxu0 0.0
    %1079 = vmatpush2.msra.mxu0 0.0
    %1080 = vmatprep.subr.mxu0 0.0
    %1081 = vmatpush2.msra.mxu0 0.0
    %1082 = vmatprep.subr.mxu0 0.0
    %1083 = vmatpush2.msra.mxu0 0.0
    %1084 = vmatprep.subr.mxu0 0.0
    %1085 = vmatpush2.msra.mxu0 0.0
    %1086 = vmatprep.subr.mxu0 0.0
    %1087 = vmatpush2.msra.mxu0 0.0
    %1088 = vmatprep.subr.mxu0 0.0
    %1089 = vmatpush2.msra.mxu0 0.0
    %1090 = vmatprep.mubr.f32.mxu0 0.0
    %1091 = vmatmul.mubr.f32.gmra.mxu0 %v961
    %v1092 = vpop.f32.mrf.mxu0
    %v1093 = vadd.f32 0.0, %v1092
    %v1094 = vpop.f32.mrf.mxu0
    %v1095 = vadd.f32 0.0, %v1094
    %1096 = vdwg.mxu0
    %1097 = vmatprep.subr.mxu0 %v1025
    %1098 = vmatpush1.msra.mxu0 %v1024
    %1099 = vmatprep.subr.mxu0 %v1021
    %1100 = vmatpush1.msra.mxu0 %v1020
    %1101 = vmatprep.subr.mxu0 %v1017
    %1102 = vmatpush1.msra.mxu0 %v1016
    %1103 = vmatprep.subr.mxu0 %v1013
    %1104 = vmatpush1.msra.mxu0 %v1012
    %1105 = vmatprep.subr.mxu0 %v1009
    %1106 = vmatpush1.msra.mxu0 %v1008
    %1107 = vmatprep.subr.mxu0 %v1005
    %1108 = vmatpush1.msra.mxu0 %v1004
    %1109 = vmatprep.subr.mxu0 %v1001
    %1110 = vmatpush1.msra.mxu0 %v1000
    %1111 = vmatprep.subr.mxu0 %v997
    %1112 = vmatpush1.msra.mxu0 %v996
    %1113 = vmatprep.subr.mxu0 %v993
    %1114 = vmatpush1.msra.mxu0 %v992
    %1115 = vmatprep.subr.mxu0 %v989
    %1116 = vmatpush1.msra.mxu0 %v988
    %1117 = vmatprep.subr.mxu0 %v985
    %1118 = vmatpush1.msra.mxu0 %v984
    %1119 = vmatprep.subr.mxu0 %v981
    %1120 = vmatpush1.msra.mxu0 %v980
    %1121 = vmatprep.subr.mxu0 %v977
    %1122 = vmatpush1.msra.mxu0 %v976
    %1123 = vmatprep.subr.mxu0 %v973
    %1124 = vmatpush1.msra.mxu0 %v972
    %1125 = vmatprep.subr.mxu0 %v969
    %1126 = vmatpush1.msra.mxu0 %v968
    %1127 = vmatprep.subr.mxu0 %v965
    %1128 = vmatpush1.msra.mxu0 %v964
    %1129 = vmatprep.subr.mxu0 0.0
    %1130 = vmatpush2.msra.mxu0 0.0
    %1131 = vmatprep.subr.mxu0 0.0
    %1132 = vmatpush2.msra.mxu0 0.0
    %1133 = vmatprep.subr.mxu0 0.0
    %1134 = vmatpush2.msra.mxu0 0.0
    %1135 = vmatprep.subr.mxu0 0.0
    %1136 = vmatpush2.msra.mxu0 0.0
    %1137 = vmatprep.subr.mxu0 0.0
    %1138 = vmatpush2.msra.mxu0 0.0
    %1139 = vmatprep.subr.mxu0 0.0
    %1140 = vmatpush2.msra.mxu0 0.0
    %1141 = vmatprep.subr.mxu0 0.0
    %1142 = vmatpush2.msra.mxu0 0.0
    %1143 = vmatprep.subr.mxu0 0.0
    %1144 = vmatpush2.msra.mxu0 0.0
    %1145 = vmatprep.subr.mxu0 0.0
    %1146 = vmatpush2.msra.mxu0 0.0
    %1147 = vmatprep.subr.mxu0 0.0
    %1148 = vmatpush2.msra.mxu0 0.0
    %1149 = vmatprep.subr.mxu0 0.0
    %1150 = vmatpush2.msra.mxu0 0.0
    %1151 = vmatprep.subr.mxu0 0.0
    %1152 = vmatpush2.msra.mxu0 0.0
    %1153 = vmatprep.subr.mxu0 0.0
    %1154 = vmatpush2.msra.mxu0 0.0
    %1155 = vmatprep.subr.mxu0 0.0
    %1156 = vmatpush2.msra.mxu0 0.0
    %1157 = vmatprep.subr.mxu0 0.0
    %1158 = vmatpush2.msra.mxu0 0.0
    %1159 = vmatprep.subr.mxu0 0.0
    %1160 = vmatpush2.msra.mxu0 0.0
    %1161 = vmatprep.mubr.f32.mxu0 0.0
    %1162 = vmatmul.mubr.f32.gmra.mxu0 %v961
    %v1163 = vpop.f32.mrf.mxu0
    %v1164 = vadd.f32 0.0, %v1163
    %v1165 = vpop.f32.mrf.mxu0
    %v1166 = vadd.f32 0.0, %v1165
    %1167 = vdwg.mxu0
    %v1168 = vadd.f32 %v957, %v1093
    %v1169 = vadd.f32 %v958, %v1095
    %v1170 = vadd.f32 %v959, %v1164
    %v1171 = vadd.f32 %v960, %v1166
    %v1172 = vld [vmem:[#allocation5] sm:$0xff]
    %v1173 = vxor.u32 %v951, 2147483648
    %v1174 = vmul.f32 %v1173, 1.442695
    %v1175 = vpow.pop %v1174
    %v1176 = vadd.f32 %v1175, 1.0
    %v1177 = vrcp.pop %v1176
    %v1178 = vmul.f32 1.0, %v1177
    %v1179 = vxor.u32 %v952, 2147483648
    %v1180 = vmul.f32 %v1179, 1.442695
    %v1181 = vpow.pop %v1180
    %v1182 = vadd.f32 %v1181, 1.0
    %v1183 = vrcp.pop %v1182
    %v1184 = vmul.f32 1.0, %v1183
    %v1185 = vtanh.pop %v953
    %v1186 = vxor.u32 %v954, 2147483648
    %v1187 = vmul.f32 %v1186, 1.442695
    %v1188 = vpow.pop %v1187
    %v1189 = vadd.f32 %v1188, 1.0
    %v1190 = vrcp.pop %v1189
    %v1191 = vmul.f32 1.0, %v1190
    %v1192 = vmul.f32 %v1184, %v1172
    %v1193 = vmul.f32 %v1178, %v1185
    %v1194 = vadd.f32 %v1192, %v1193
    %v1195 = vtanh.pop %v1194
    %v1196 = vmul.f32 %v1191, %v1195
    %v1197 = vld [vmem:[#allocation7] sm:$0xff]
    %v1198 = vxor.u32 %v1168, 2147483648
    %v1199 = vmul.f32 %v1198, 1.442695
    %v1200 = vpow.pop %v1199
    %v1201 = vadd.f32 %v1200, 1.0
    %v1202 = vrcp.pop %v1201
    %v1203 = vmul.f32 1.0, %v1202
    %v1204 = vxor.u32 %v1169, 2147483648
    %v1205 = vmul.f32 %v1204, 1.442695
    %v1206 = vpow.pop %v1205
    %v1207 = vadd.f32 %v1206, 1.0
    %v1208 = vrcp.pop %v1207
    %v1209 = vmul.f32 1.0, %v1208
    %v1210 = vtanh.pop %v1170
    %v1211 = vxor.u32 %v1171, 2147483648
    %v1212 = vmul.f32 %v1211, 1.442695
    %v1213 = vpow.pop %v1212
    %v1214 = vadd.f32 %v1213, 1.0
    %v1215 = vrcp.pop %v1214
    %v1216 = vmul.f32 1.0, %v1215
    %v1217 = vmul.f32 %v1209, %v1197
    %v1218 = vmul.f32 %v1203, %v1210
    %v1219 = vadd.f32 %v1217, %v1218
    %v1220 = vtanh.pop %v1219
    %v1221 = vmul.f32 %v1216, %v1220
    %1222 = vst [vmem:[#allocation4] sm:$0xff] %v1196
    %1223 = vst [vmem:[#allocation5] sm:$0xff] %v1194
    %1224 = vst [vmem:[#allocation6] sm:$0xff] %v1221
    %1225 = vst [vmem:[#allocation7] sm:$0xff] %v1219
    %s1226 = scalar_lea.vmem %s7, %s734
    %1227 = vst [vmem:[%s1226] sm:$0xff] %v1196
    %s1228 = scalar_lea.vmem %s8, %s734
    %1229 = vst [vmem:[%s1228] sm:$0xff] %v1221
  $region34: #{_lambda_.15} parent=0 // loop_footer
    %s733 = sadd.s32 1, %s729
  $region35: #{_lambda_.15} parent=0 // loop_footer_branch
    %728 = sbr.rel target = $region31
  $region36: #{_lambda_.15} parent=0 // loop_exit
    _
  // Predicated region
  $region37: #{_lambda_.15} parent=0 // pred_check
    _
  $region38: #{_lambda_.15} parent=0 // pred_check_branch
    %1231 = sbr.rel (0) target = $region40
  $region39: #{_lambda_.15} parent=0 // pred_region
    _
  $region40: #{_lambda_.15} parent=0 // pred_fallthru
    _
  // Predicated region
  $region41: #{_lambda_.15} parent=0 // pred_check
    _
  $region42: #{_lambda_.15} parent=0 // pred_check_branch
    %1233 = sbr.rel (0) target = $region44
  $region43: #{_lambda_.15} parent=0 // pred_region
    _
  $region44: #{_lambda_.15} parent=0 // pred_fallthru
    _
  // Predicated region
  $region45: #{_lambda_.15} parent=0 // pred_check
    _
  $region46: #{_lambda_.15} parent=0 // pred_check_branch
    %1235 = sbr.rel (0) target = $region48
  $region47: #{_lambda_.15} parent=0 // pred_region
    _
  $region48: #{_lambda_.15} parent=0 // pred_fallthru
    _
  // Predicated region
  $region49: #{_lambda_.15} parent=0 // pred_check
    _
  $region50: #{_lambda_.15} parent=0 // pred_check_branch
    %1237 = sbr.rel (0) target = $region52
  $region51: #{_lambda_.15} parent=0 // pred_region
    _
  $region52: #{_lambda_.15} parent=0 // pred_fallthru
    _

// kernel: _lambda_.17
$region0: #{_lambda_.17}
  #allocation0 [shape = 'u32[]', space=smem, size = 0x4, offset = 0x4, fixed_abs, tag = 'smem constant byte address 0x4 - core index']
  #allocation1 [shape = 'u32[144,128]{1,0:T(1,128)}', space=vmem, size = 0x12000, scoped, tag = 'internal scratch']
  %s0 = inlined_call_operand.vmem [shape: bf16[16,192], index: 0, kind: input, shape index: {}]
  %s1 = inlined_call_operand.vmem [shape: bf16[192,128], index: 1, kind: input, shape index: {}]
  %s2 = inlined_call_operand.vmem [shape: f32[16,1], index: 2, kind: input, shape index: {}]
  %s3 = inlined_call_operand.vmem [shape: f32[8,128], index: 3, kind: output, shape index: {0}]
  %s4 = inlined_call_operand.vmem [shape: f32[8,128], index: 4, kind: output, shape index: {1}]
  %5 = xla_tuple %s3, %s4
  %s6 = sld [smem:[#allocation0]]
  $region30: #{_lambda_.17} parent=0
    _
  %s8 = ssub.s32 1, %s6
  %s9 = scalar_select 0, %s8, %s6
  // Predicated region
  $region2: #{_lambda_.17} parent=0 // pred_check
    _
  $region3: #{_lambda_.17} parent=0 // pred_check_branch
    %11 = sbr.rel (0) target = $region5
  $region4: #{_lambda_.17} parent=0 // pred_region
    _
  $region5: #{_lambda_.17} parent=0 // pred_fallthru
    _
  // Predicated region
  $region6: #{_lambda_.17} parent=0 // pred_check
    _
  $region7: #{_lambda_.17} parent=0 // pred_check_branch
    %13 = sbr.rel (0) target = $region9
  $region8: #{_lambda_.17} parent=0 // pred_region
    _
  $region9: #{_lambda_.17} parent=0 // pred_fallthru
    _
  // Predicated region
  $region10: #{_lambda_.17} parent=0 // pred_check
    _
  $region11: #{_lambda_.17} parent=0 // pred_check_branch
    %15 = sbr.rel (0) target = $region13
  $region12: #{_lambda_.17} parent=0 // pred_region
    _
  $region13: #{_lambda_.17} parent=0 // pred_fallthru
    _
  %v17 = vld [vmem:[%s0] sm:$0xff]
  %v18 = vld [vmem:[%s0 + $0x8] sm:$0xff]
  %v19 = vld [vmem:[%s1] sm:$0xf]
  %v20 = vld [vmem:[%s1 + $0x4] sm:$0xf]
  %v21 = vld [vmem:[%s1 + $0x8] sm:$0xf]
  %v22 = vld [vmem:[%s1 + $0xc] sm:$0xf]
  %v23 = vld [vmem:[%s1 + $0x10] sm:$0xf]
  %v24 = vld [vmem:[%s1 + $0x14] sm:$0xf]
  %v25 = vld [vmem:[%s1 + $0x18] sm:$0xf]
  %v26 = vld [vmem:[%s1 + $0x1c] sm:$0xf]
  %v27 = vld [vmem:[%s1 + $0x20] sm:$0xf]
  %v28 = vld [vmem:[%s1 + $0x24] sm:$0xf]
  %v29 = vld [vmem:[%s1 + $0x28] sm:$0xf]
  %v30 = vld [vmem:[%s1 + $0x2c] sm:$0xf]
  %v31 = vld [vmem:[%s1 + $0x30] sm:$0xf]
  %v32 = vld [vmem:[%s1 + $0x34] sm:$0xf]
  %v33 = vld [vmem:[%s1 + $0x38] sm:$0xf]
  %v34 = vld [vmem:[%s1 + $0x3c] sm:$0xf]
  %v35 = vld [vmem:[%s1 + $0x40] sm:$0xf]
  %v36 = vld [vmem:[%s1 + $0x44] sm:$0xf]
  %v37 = vld [vmem:[%s1 + $0x48] sm:$0xf]
  %v38 = vld [vmem:[%s1 + $0x4c] sm:$0xf]
  %v39 = vld [vmem:[%s1 + $0x50] sm:$0xf]
  %v40 = vld [vmem:[%s1 + $0x54] sm:$0xf]
  %v41 = vld [vmem:[%s1 + $0x58] sm:$0xf]
  %v42 = vld [vmem:[%s1 + $0x5c] sm:$0xf]
  %v43 = vld [vmem:[%s2] sm:$0xff]
  %v44 = vld [vmem:[%s2 + $0x8] sm:$0xff]
  %46 = vset.pattern.permute.xlu0 0
  %47 = vperm.xlu0 %46, %v43
  %v48 = vpop.permute.xlu0 %47
  %51 = vset.pattern.permute.xlu0 0
  %52 = vperm.xlu0 %51, %v44
  %v53 = vpop.permute.xlu0 %52
  %v57 = vunpack.c.l.b16 %v17
  %v58 = vunpack.c.h.b16 %v17
  %v59 = vunpack.c.l.b16 %v18
  %v60 = vunpack.c.h.b16 %v18
  %v61 = vpack.c.b16 %v59, %v57
  %v62 = vpack.c.b16 %v60, %v58
  %v88 = vunpack.c.l.b16 %v19
  %v89 = vunpack.c.l.b16 %v20
  %v90 = vunpack.c.l.b16 %v21
  %v91 = vunpack.c.l.b16 %v22
  %v92 = vunpack.c.l.b16 %v23
  %v93 = vunpack.c.l.b16 %v24
  %v94 = vunpack.c.l.b16 %v25
  %v95 = vunpack.c.l.b16 %v26
  %v96 = vunpack.c.l.b16 %v27
  %v97 = vunpack.c.l.b16 %v28
  %v98 = vunpack.c.l.b16 %v29
  %v99 = vunpack.c.l.b16 %v30
  %v100 = vunpack.c.l.b16 %v31
  %v101 = vunpack.c.l.b16 %v32
  %v102 = vunpack.c.l.b16 %v33
  %v103 = vunpack.c.l.b16 %v34
  %v104 = vunpack.c.l.b16 %v35
  %v105 = vunpack.c.l.b16 %v36
  %v106 = vunpack.c.l.b16 %v37
  %v107 = vunpack.c.l.b16 %v38
  %v108 = vunpack.c.l.b16 %v39
  %v109 = vunpack.c.l.b16 %v40
  %v110 = vunpack.c.l.b16 %v41
  %v111 = vunpack.c.l.b16 %v42
  %v112 = vpack.c.b16 %v89, %v88
  %v113 = vpack.c.b16 %v91, %v90
  %v114 = vpack.c.b16 %v93, %v92
  %v115 = vpack.c.b16 %v95, %v94
  %v116 = vpack.c.b16 %v97, %v96
  %v117 = vpack.c.b16 %v99, %v98
  %v118 = vpack.c.b16 %v101, %v100
  %v119 = vpack.c.b16 %v103, %v102
  %v120 = vpack.c.b16 %v105, %v104
  %v121 = vpack.c.b16 %v107, %v106
  %v122 = vpack.c.b16 %v109, %v108
  %v123 = vpack.c.b16 %v111, %v110
  %vm136 = vcmask 523264
  %v138 = vsel %vm136, %v62, 0
  %140 = vmatprep.subr.bf16.mxu0 0
  %141 = vmatpush1.bf16.msra.mxu0 %v119
  %142 = vmatprep.subr.bf16.mxu0 0
  %143 = vmatpush1.bf16.msra.mxu0 %v118
  %144 = vmatprep.subr.bf16.mxu0 0
  %145 = vmatpush1.bf16.msra.mxu0 %v117
  %146 = vmatprep.subr.bf16.mxu0 0
  %147 = vmatpush1.bf16.msra.mxu0 %v116
  %148 = vmatprep.subr.bf16.mxu0 0
  %149 = vmatpush1.bf16.msra.mxu0 %v115
  %150 = vmatprep.subr.bf16.mxu0 0
  %151 = vmatpush1.bf16.msra.mxu0 %v114
  %152 = vmatprep.subr.bf16.mxu0 0
  %153 = vmatpush1.bf16.msra.mxu0 %v113
  %154 = vmatprep.subr.bf16.mxu0 0
  %155 = vmatpush1.bf16.msra.mxu0 %v112
  %156 = vmatprep.subr.bf16.mxu0 0
  %157 = vmatpush2.bf16.msra.mxu0 0
  %158 = vmatprep.subr.bf16.mxu0 0
  %159 = vmatpush2.bf16.msra.mxu0 0
  %160 = vmatprep.subr.bf16.mxu0 0
  %161 = vmatpush2.bf16.msra.mxu0 0
  %162 = vmatprep.subr.bf16.mxu0 0
  %163 = vmatpush2.bf16.msra.mxu0 0
  %164 = vmatprep.subr.bf16.mxu0 0
  %165 = vmatpush2.bf16.msra.mxu0 %v123
  %166 = vmatprep.subr.bf16.mxu0 0
  %167 = vmatpush2.bf16.msra.mxu0 %v122
  %168 = vmatprep.subr.bf16.mxu0 0
  %169 = vmatpush2.bf16.msra.mxu0 %v121
  %170 = vmatprep.subr.bf16.mxu0 0
  %171 = vmatpush2.bf16.msra.mxu0 %v120
  %172 = vmatprep.mubr.bf16.mxu0 %v138
  %173 = vmatmul.mubr.bf16.gmra.mxu0 %v61
  %v174 = vpop.f32.mrf.mxu0
  %v175 = vadd.f32 %v48, %v174
  %v176 = vpop.f32.mrf.mxu0
  %v177 = vpop.f32.mrf.mxu0
  %v178 = vadd.f32 %v53, %v177
  %v179 = vpop.f32.mrf.mxu0
  %180 = vdwg.mxu0
  %181 = vst [vmem:[%s3] sm:$0xff] %v175
  %182 = vst [vmem:[%s4] sm:$0xff] %v178
  // Predicated region
  $region14: #{_lambda_.17} parent=0 // pred_check
    _
  $region15: #{_lambda_.17} parent=0 // pred_check_branch
    %184 = sbr.rel (0) target = $region17
  $region16: #{_lambda_.17} parent=0 // pred_region
    _
  $region17: #{_lambda_.17} parent=0 // pred_fallthru
    _
  // Predicated region
  $region18: #{_lambda_.17} parent=0 // pred_check
    _
  $region19: #{_lambda_.17} parent=0 // pred_check_branch
    %186 = sbr.rel (0) target = $region21
  $region20: #{_lambda_.17} parent=0 // pred_region
    _
  $region21: #{_lambda_.17} parent=0 // pred_fallthru
    _
  // Predicated region
  $region22: #{_lambda_.17} parent=0 // pred_check
    _
  $region23: #{_lambda_.17} parent=0 // pred_check_branch
    %188 = sbr.rel (0) target = $region25
  $region24: #{_lambda_.17} parent=0 // pred_region
    _
  $region25: #{_lambda_.17} parent=0 // pred_fallthru
    _
  // Predicated region
  $region26: #{_lambda_.17} parent=0 // pred_check
    _
  $region27: #{_lambda_.17} parent=0 // pred_check_branch
    %190 = sbr.rel (0) target = $region29
  $region28: #{_lambda_.17} parent=0 // pred_region
    _
  $region29: #{_lambda_.17} parent=0 // pred_fallthru
    _

// kernel: _lambda_.19
$region0: #{_lambda_.19}
  #allocation0 [shape = 'u32[]', space=smem, size = 0x4, offset = 0x4, fixed_abs, tag = 'smem constant byte address 0x4 - core index']
  #allocation1 [shape = 'u32[144,128]{1,0:T(1,128)}', space=vmem, size = 0x12000, scoped, tag = 'internal scratch']
  %s0 = inlined_call_operand.vmem [shape: bf16[16,192], index: 0, kind: input, shape index: {}]
  %s1 = inlined_call_operand.vmem [shape: bf16[192,256], index: 1, kind: input, shape index: {}]
  %s2 = inlined_call_operand.vmem [shape: f32[16,1], index: 2, kind: input, shape index: {}]
  %s3 = inlined_call_operand.vmem [shape: f32[8,256], index: 3, kind: output, shape index: {0}]
  %s4 = inlined_call_operand.vmem [shape: f32[8,256], index: 4, kind: output, shape index: {1}]
  %5 = xla_tuple %s3, %s4
  %s6 = sld [smem:[#allocation0]]
  $region30: #{_lambda_.19} parent=0
    _
  %s8 = ssub.s32 1, %s6
  %s9 = scalar_select 0, %s8, %s6
  // Predicated region
  $region2: #{_lambda_.19} parent=0 // pred_check
    _
  $region3: #{_lambda_.19} parent=0 // pred_check_branch
    %11 = sbr.rel (0) target = $region5
  $region4: #{_lambda_.19} parent=0 // pred_region
    _
  $region5: #{_lambda_.19} parent=0 // pred_fallthru
    _
  // Predicated region
  $region6: #{_lambda_.19} parent=0 // pred_check
    _
  $region7: #{_lambda_.19} parent=0 // pred_check_branch
    %13 = sbr.rel (0) target = $region9
  $region8: #{_lambda_.19} parent=0 // pred_region
    _
  $region9: #{_lambda_.19} parent=0 // pred_fallthru
    _
  // Predicated region
  $region10: #{_lambda_.19} parent=0 // pred_check
    _
  $region11: #{_lambda_.19} parent=0 // pred_check_branch
    %15 = sbr.rel (0) target = $region13
  $region12: #{_lambda_.19} parent=0 // pred_region
    _
  $region13: #{_lambda_.19} parent=0 // pred_fallthru
    _
  %v17 = vld [vmem:[%s0] sm:$0xff]
  %v18 = vld [vmem:[%s0 + $0x8] sm:$0xff]
  %v19 = vld [vmem:[%s1] sm:$0xff]
  %v20 = vld [vmem:[%s1 + $0x8] sm:$0xff]
  %v21 = vld [vmem:[%s1 + $0x10] sm:$0xff]
  %v22 = vld [vmem:[%s1 + $0x18] sm:$0xff]
  %v23 = vld [vmem:[%s1 + $0x20] sm:$0xff]
  %v24 = vld [vmem:[%s1 + $0x28] sm:$0xff]
  %v25 = vld [vmem:[%s1 + $0x30] sm:$0xff]
  %v26 = vld [vmem:[%s1 + $0x38] sm:$0xff]
  %v27 = vld [vmem:[%s1 + $0x40] sm:$0xff]
  %v28 = vld [vmem:[%s1 + $0x48] sm:$0xff]
  %v29 = vld [vmem:[%s1 + $0x50] sm:$0xff]
  %v30 = vld [vmem:[%s1 + $0x58] sm:$0xff]
  %v31 = vld [vmem:[%s1 + $0x60] sm:$0xff]
  %v32 = vld [vmem:[%s1 + $0x68] sm:$0xff]
  %v33 = vld [vmem:[%s1 + $0x70] sm:$0xff]
  %v34 = vld [vmem:[%s1 + $0x78] sm:$0xff]
  %v35 = vld [vmem:[%s1 + $0x80] sm:$0xff]
  %v36 = vld [vmem:[%s1 + $0x88] sm:$0xff]
  %v37 = vld [vmem:[%s1 + $0x90] sm:$0xff]
  %v38 = vld [vmem:[%s1 + $0x98] sm:$0xff]
  %v39 = vld [vmem:[%s1 + $0xa0] sm:$0xff]
  %v40 = vld [vmem:[%s1 + $0xa8] sm:$0xff]
  %v41 = vld [vmem:[%s1 + $0xb0] sm:$0xff]
  %v42 = vld [vmem:[%s1 + $0xb8] sm:$0xff]
  %v43 = vld [vmem:[%s2] sm:$0xff]
  %v44 = vld [vmem:[%s2 + $0x8] sm:$0xff]
  %46 = vset.pattern.permute.xlu0 0
  %47 = vperm.xlu0 %46, %v43
  %v48 = vpop.permute.xlu0 %47
  %51 = vset.pattern.permute.xlu0 0
  %52 = vperm.xlu0 %51, %v44
  %v53 = vpop.permute.xlu0 %52
  %v57 = vunpack.c.l.b16 %v17
  %v58 = vunpack.c.h.b16 %v17
  %v59 = vunpack.c.l.b16 %v18
  %v60 = vunpack.c.h.b16 %v18
  %v61 = vpack.c.b16 %v59, %v57
  %v62 = vpack.c.b16 %v60, %v58
  %v88 = vunpack.c.l.b16 %v19
  %v89 = vunpack.c.h.b16 %v19
  %v90 = vunpack.c.l.b16 %v20
  %v91 = vunpack.c.h.b16 %v20
  %v92 = vunpack.c.l.b16 %v21
  %v93 = vunpack.c.h.b16 %v21
  %v94 = vunpack.c.l.b16 %v22
  %v95 = vunpack.c.h.b16 %v22
  %v96 = vunpack.c.l.b16 %v23
  %v97 = vunpack.c.h.b16 %v23
  %v98 = vunpack.c.l.b16 %v24
  %v99 = vunpack.c.h.b16 %v24
  %v100 = vunpack.c.l.b16 %v25
  %v101 = vunpack.c.h.b16 %v25
  %v102 = vunpack.c.l.b16 %v26
  %v103 = vunpack.c.h.b16 %v26
  %v104 = vunpack.c.l.b16 %v27
  %v105 = vunpack.c.h.b16 %v27
  %v106 = vunpack.c.l.b16 %v28
  %v107 = vunpack.c.h.b16 %v28
  %v108 = vunpack.c.l.b16 %v29
  %v109 = vunpack.c.h.b16 %v29
  %v110 = vunpack.c.l.b16 %v30
  %v111 = vunpack.c.h.b16 %v30
  %v112 = vunpack.c.l.b16 %v31
  %v113 = vunpack.c.h.b16 %v31
  %v114 = vunpack.c.l.b16 %v32
  %v115 = vunpack.c.h.b16 %v32
  %v116 = vunpack.c.l.b16 %v33
  %v117 = vunpack.c.h.b16 %v33
  %v118 = vunpack.c.l.b16 %v34
  %v119 = vunpack.c.h.b16 %v34
  %v120 = vunpack.c.l.b16 %v35
  %v121 = vunpack.c.h.b16 %v35
  %v122 = vunpack.c.l.b16 %v36
  %v123 = vunpack.c.h.b16 %v36
  %v124 = vunpack.c.l.b16 %v37
  %v125 = vunpack.c.h.b16 %v37
  %v126 = vunpack.c.l.b16 %v38
  %v127 = vunpack.c.h.b16 %v38
  %v128 = vunpack.c.l.b16 %v39
  %v129 = vunpack.c.h.b16 %v39
  %v130 = vunpack.c.l.b16 %v40
  %v131 = vunpack.c.h.b16 %v40
  %v132 = vunpack.c.l.b16 %v41
  %v133 = vunpack.c.h.b16 %v41
  %v134 = vunpack.c.l.b16 %v42
  %v135 = vunpack.c.h.b16 %v42
  %v136 = vpack.c.b16 %v90, %v88
  %v137 = vpack.c.b16 %v91, %v89
  %v138 = vpack.c.b16 %v94, %v92
  %v139 = vpack.c.b16 %v95, %v93
  %v140 = vpack.c.b16 %v98, %v96
  %v141 = vpack.c.b16 %v99, %v97
  %v142 = vpack.c.b16 %v102, %v100
  %v143 = vpack.c.b16 %v103, %v101
  %v144 = vpack.c.b16 %v106, %v104
  %v145 = vpack.c.b16 %v107, %v105
  %v146 = vpack.c.b16 %v110, %v108
  %v147 = vpack.c.b16 %v111, %v109
  %v148 = vpack.c.b16 %v114, %v112
  %v149 = vpack.c.b16 %v115, %v113
  %v150 = vpack.c.b16 %v118, %v116
  %v151 = vpack.c.b16 %v119, %v117
  %v152 = vpack.c.b16 %v122, %v120
  %v153 = vpack.c.b16 %v123, %v121
  %v154 = vpack.c.b16 %v126, %v124
  %v155 = vpack.c.b16 %v127, %v125
  %v156 = vpack.c.b16 %v130, %v128
  %v157 = vpack.c.b16 %v131, %v129
  %v158 = vpack.c.b16 %v134, %v132
  %v159 = vpack.c.b16 %v135, %v133
  %vm184 = vcmask 523264
  %v186 = vsel %vm184, %v62, 0
  %188 = vmatprep.subr.bf16.mxu0 %v151
  %189 = vmatpush1.bf16.msra.mxu0 %v150
  %190 = vmatprep.subr.bf16.mxu0 %v149
  %191 = vmatpush1.bf16.msra.mxu0 %v148
  %192 = vmatprep.subr.bf16.mxu0 %v147
  %193 = vmatpush1.bf16.msra.mxu0 %v146
  %194 = vmatprep.subr.bf16.mxu0 %v145
  %195 = vmatpush1.bf16.msra.mxu0 %v144
  %196 = vmatprep.subr.bf16.mxu0 %v143
  %197 = vmatpush1.bf16.msra.mxu0 %v142
  %198 = vmatprep.subr.bf16.mxu0 %v141
  %199 = vmatpush1.bf16.msra.mxu0 %v140
  %200 = vmatprep.subr.bf16.mxu0 %v139
  %201 = vmatpush1.bf16.msra.mxu0 %v138
  %202 = vmatprep.subr.bf16.mxu0 %v137
  %203 = vmatpush1.bf16.msra.mxu0 %v136
  %204 = vmatprep.subr.bf16.mxu0 0
  %205 = vmatpush2.bf16.msra.mxu0 0
  %206 = vmatprep.subr.bf16.mxu0 0
  %207 = vmatpush2.bf16.msra.mxu0 0
  %208 = vmatprep.subr.bf16.mxu0 0
  %209 = vmatpush2.bf16.msra.mxu0 0
  %210 = vmatprep.subr.bf16.mxu0 0
  %211 = vmatpush2.bf16.msra.mxu0 0
  %212 = vmatprep.subr.bf16.mxu0 %v159
  %213 = vmatpush2.bf16.msra.mxu0 %v158
  %214 = vmatprep.subr.bf16.mxu0 %v157
  %215 = vmatpush2.bf16.msra.mxu0 %v156
  %216 = vmatprep.subr.bf16.mxu0 %v155
  %217 = vmatpush2.bf16.msra.mxu0 %v154
  %218 = vmatprep.subr.bf16.mxu0 %v153
  %219 = vmatpush2.bf16.msra.mxu0 %v152
  %220 = vmatprep.mubr.bf16.mxu0 %v186
  %221 = vmatmul.mubr.bf16.gmra.mxu0 %v61
  %v222 = vpop.f32.mrf.mxu0
  %v223 = vadd.f32 %v48, %v222
  %v224 = vpop.f32.mrf.mxu0
  %v225 = vadd.f32 %v48, %v224
  %v226 = vpop.f32.mrf.mxu0
  %v227 = vadd.f32 %v53, %v226
  %v228 = vpop.f32.mrf.mxu0
  %v229 = vadd.f32 %v53, %v228
  %230 = vdwg.mxu0
  %231 = vst [vmem:[%s3] sm:$0xff] %v223
  %232 = vst [vmem:[%s3 + $0x8] sm:$0xff] %v225
  %233 = vst [vmem:[%s4] sm:$0xff] %v227
  %234 = vst [vmem:[%s4 + $0x8] sm:$0xff] %v229
  // Predicated region
  $region14: #{_lambda_.19} parent=0 // pred_check
    _
  $region15: #{_lambda_.19} parent=0 // pred_check_branch
    %236 = sbr.rel (0) target = $region17
  $region16: #{_lambda_.19} parent=0 // pred_region
    _
  $region17: #{_lambda_.19} parent=0 // pred_fallthru
    _
  // Predicated region
  $region18: #{_lambda_.19} parent=0 // pred_check
    _
  $region19: #{_lambda_.19} parent=0 // pred_check_branch
    %238 = sbr.rel (0) target = $region21
  $region20: #{_lambda_.19} parent=0 // pred_region
    _
  $region21: #{_lambda_.19} parent=0 // pred_fallthru
    _
  // Predicated region
  $region22: #{_lambda_.19} parent=0 // pred_check
    _
  $region23: #{_lambda_.19} parent=0 // pred_check_branch
    %240 = sbr.rel (0) target = $region25
  $region24: #{_lambda_.19} parent=0 // pred_region
    _
  $region25: #{_lambda_.19} parent=0 // pred_fallthru
    _
  // Predicated region
  $region26: #{_lambda_.19} parent=0 // pred_check
    _
  $region27: #{_lambda_.19} parent=0 // pred_check_branch
    %242 = sbr.rel (0) target = $region29
  $region28: #{_lambda_.19} parent=0 // pred_region
    _
  $region29: #{_lambda_.19} parent=0 // pred_fallthru
    _

// kernel: _lambda_.20
$region0: #{_lambda_.20}
  #allocation0 [shape = 'u32[]', space=smem, size = 0x4, offset = 0x4, fixed_abs, tag = 'smem constant byte address 0x4 - core index']
  #allocation1 [shape = 'u32[144,128]{1,0:T(1,128)}', space=vmem, size = 0x12000, scoped, tag = 'internal scratch']
  #allocation2 [shape = 'f32[1]{0:T(128)S(6)}', space=smem, size = 0x200, scoped, tag = 'scoped memory for _lambda_.20']
  %s0 = inlined_call_operand.vmem [shape: f32[2,128], index: 0, kind: input, shape index: {}]
  %s1 = inlined_call_operand.vmem [shape: f32[2,128], index: 1, kind: input, shape index: {}]
  %s2 = inlined_call_operand.vmem [shape: f32[1,128], index: 2, kind: input, shape index: {}, may-alias: {2,4}]
  %s3 = inlined_call_operand.vmem [shape: f32[1,128], index: 3, kind: input, shape index: {}, may-alias: {3,5,6}]
  %s4 = inlined_call_operand.vmem [shape: f32[1,128], index: 4, kind: input, shape index: {}, may-alias: {2,4}]
  %s5 = inlined_call_operand.vmem [shape: f32[1,128], index: 5, kind: input, shape index: {}, may-alias: {3,5,6}]
  %s6 = inlined_call_operand.vmem [shape: f32[1,128], index: 6, kind: input, shape index: {}, may-alias: {3,5,6}]
  %s7 = inlined_call_operand.<no memory space> [shape: f32[1], index: 7, kind: input, shape index: {}]
  %s8 = inlined_call_operand.vmem [shape: f32[2,128], index: 8, kind: output, shape index: {0}]
  %s9 = inlined_call_operand.vmem [shape: f32[2,128], index: 9, kind: output, shape index: {1}]
  %10 = xla_tuple %s8, %s9
  %s11 = sld [smem:[#allocation0]]
  $region50: #{_lambda_.20} parent=0
    _
  %s13 = ssub.s32 1, %s11
  %s14 = scalar_select 0, %s13, %s11
  %15 = sst [smem:[#allocation2]] %s7
  // Predicated region
  $region2: #{_lambda_.20} parent=0 // pred_check
    _
  $region3: #{_lambda_.20} parent=0 // pred_check_branch
    %17 = sbr.rel (0) target = $region5
  $region4: #{_lambda_.20} parent=0 // pred_region
    _
  $region5: #{_lambda_.20} parent=0 // pred_fallthru
    _
  // Predicated region
  $region6: #{_lambda_.20} parent=0 // pred_check
    _
  $region7: #{_lambda_.20} parent=0 // pred_check_branch
    %19 = sbr.rel (0) target = $region9
  $region8: #{_lambda_.20} parent=0 // pred_region
    _
  $region9: #{_lambda_.20} parent=0 // pred_fallthru
    _
  // Predicated region
  $region10: #{_lambda_.20} parent=0 // pred_check
    _
  $region11: #{_lambda_.20} parent=0 // pred_check_branch
    %21 = sbr.rel (0) target = $region13
  $region12: #{_lambda_.20} parent=0 // pred_region
    _
  $region13: #{_lambda_.20} parent=0 // pred_fallthru
    _
  // Predicated region
  $region14: #{_lambda_.20} parent=0 // pred_check
    _
  $region15: #{_lambda_.20} parent=0 // pred_check_branch
    %23 = sbr.rel (0) target = $region17
  $region16: #{_lambda_.20} parent=0 // pred_region
    _
  $region17: #{_lambda_.20} parent=0 // pred_fallthru
    _
  // Predicated region
  $region18: #{_lambda_.20} parent=0 // pred_check
    _
  $region19: #{_lambda_.20} parent=0 // pred_check_branch
    %25 = sbr.rel (0) target = $region21
  $region20: #{_lambda_.20} parent=0 // pred_region
    _
  $region21: #{_lambda_.20} parent=0 // pred_fallthru
    _
  // Predicated region
  $region22: #{_lambda_.20} parent=0 // pred_check
    _
  $region23: #{_lambda_.20} parent=0 // pred_check_branch
    %27 = sbr.rel (0) target = $region25
  $region24: #{_lambda_.20} parent=0 // pred_region
    _
  $region25: #{_lambda_.20} parent=0 // pred_fallthru
    _
  // Predicated region
  $region26: #{_lambda_.20} parent=0 // pred_check
    _
  $region27: #{_lambda_.20} parent=0 // pred_check_branch
    %29 = sbr.rel (0) target = $region29
  $region28: #{_lambda_.20} parent=0 // pred_region
    _
  $region29: #{_lambda_.20} parent=0 // pred_fallthru
    _
  // Predicated region
  $region30: #{_lambda_.20} parent=0 // pred_check
    _
  $region31: #{_lambda_.20} parent=0 // pred_check_branch
    %31 = sbr.rel (0) target = $region33
  $region32: #{_lambda_.20} parent=0 // pred_region
    _
  $region33: #{_lambda_.20} parent=0 // pred_fallthru
    _
  %s32 = sld [smem:[#allocation2]]
  %v33 = vld [vmem:[%s0] sm:$0x3]
  %v34 = vld [vmem:[%s1] sm:$0x3]
  %vm35 = vcmask 1041408
  %v36 = vsel %vm35, %v33, 0.0
  %v37 = vrot.slane %v36, 4
  %v38 = vadd.f32 %v36, %v37
  %v39 = vrot.slane %v38, 2
  %v40 = vadd.f32 %v38, %v39
  %v41 = vrot.slane %v40, 1
  %v42 = vadd.f32 %v40, %v41
  %v43 = vrcp.pop 2.0
  %v44 = vmul.f32 %v42, %v43
  %v45 = vsel %vm35, %v34, 0.0
  %v46 = vrot.slane %v45, 4
  %v47 = vadd.f32 %v45, %v46
  %v48 = vrot.slane %v47, 2
  %v49 = vadd.f32 %v47, %v48
  %v50 = vrot.slane %v49, 1
  %v51 = vadd.f32 %v49, %v50
  %v52 = vmul.f32 %v51, %v43
  %v53 = vsub.f32 %v33, %v44
  %v54 = vsub.f32 %v34, %v52
  %v55 = vmul.f32 %v53, %v53
  %v56 = vsel %vm35, %v55, 0.0
  %v57 = vrot.slane %v56, 4
  %v58 = vadd.f32 %v56, %v57
  %v59 = vrot.slane %v58, 2
  %v60 = vadd.f32 %v58, %v59
  %v61 = vrot.slane %v60, 1
  %v62 = vadd.f32 %v60, %v61
  %v63 = vmul.f32 %v62, %v43
  %v64 = vadd.f32 %v63, 1e-05
  %v65 = vmul.f32 %v54, %v54
  %v66 = vsel %vm35, %v65, 0.0
  %v67 = vrot.slane %v66, 4
  %v68 = vadd.f32 %v66, %v67
  %v69 = vrot.slane %v68, 2
  %v70 = vadd.f32 %v68, %v69
  %v71 = vrot.slane %v70, 1
  %v72 = vadd.f32 %v70, %v71
  %v73 = vmul.f32 %v72, %v43
  %v74 = vadd.f32 %v73, 1e-05
  %v75 = vmul.f32 %v53, %v54
  %v76 = vsel %vm35, %v75, 0.0
  %v77 = vrot.slane %v76, 4
  %v78 = vadd.f32 %v76, %v77
  %v79 = vrot.slane %v78, 2
  %v80 = vadd.f32 %v78, %v79
  %v81 = vrot.slane %v80, 1
  %v82 = vadd.f32 %v80, %v81
  %v83 = vmul.f32 %v82, %v43
  %v84 = vadd.f32 %v64, %v74
  %v85 = vmul.f32 %v64, %v74
  %v86 = vmul.f32 %v83, %v83
  %v87 = vsub.f32 %v85, %v86
  %v88 = vrsqrt.pop %v87
  %v89 = vmul.f32 %v87, %v88
  %vm90 = vcmp.eq.f32.partialorder %v87, inf
  %v91 = vsel %vm90, %v87, %v89
  %vm92 = vcmp.eq.f32.partialorder %v87, 0.0
  %v93 = vand.u32 %v87, 2147483648
  %v94 = vsel %vm92, %v93, %v91
  %v95 = vmul.f32 %v94, 2.0
  %v96 = vadd.f32 %v84, %v95
  %v97 = vmul.f32 %v87, %v96
  %v98 = vrsqrt.pop %v97
  %v99 = vadd.f32 %v74, %v94
  %v100 = vmul.f32 %v99, %v98
  %v101 = vadd.f32 %v64, %v94
  %v102 = vmul.f32 %v101, %v98
  %v103 = vsub.f32 0.0, %v83
  %v104 = vmul.f32 %v103, %v98
  %v105 = vmul.f32 %v100, %v53
  %v106 = vmul.f32 %v104, %v54
  %v107 = vadd.f32 %v105, %v106
  %v108 = vmul.f32 %v104, %v53
  %v109 = vmul.f32 %v102, %v54
  %v110 = vadd.f32 %v108, %v109
  %v111 = vld [vmem:[%s2] sm:$0x1]
  %v113 = vlaneseq
  %v114 = vshrl.u32 %v113, 7
  %v115 = vsub.s32 0, %v114
  %v116 = vrot.slane %v111, %v115
  %v118 = vmul.f32 %v116, %v107
  %v119 = vld [vmem:[%s3] sm:$0x1]
  %v121 = vlaneseq
  %v122 = vshrl.u32 %v121, 7
  %v123 = vsub.s32 0, %v122
  %v124 = vrot.slane %v119, %v123
  %v126 = vmul.f32 %v124, %v110
  %v127 = vadd.f32 %v118, %v126
  %v128 = vld [vmem:[%s5] sm:$0x1]
  %v130 = vlaneseq
  %v131 = vshrl.u32 %v130, 7
  %v132 = vsub.s32 0, %v131
  %v133 = vrot.slane %v128, %v132
  %v135 = vadd.f32 %v127, %v133
  %v136 = vmul.f32 %v124, %v107
  %v137 = vld [vmem:[%s4] sm:$0x1]
  %v139 = vlaneseq
  %v140 = vshrl.u32 %v139, 7
  %v141 = vsub.s32 0, %v140
  %v142 = vrot.slane %v137, %v141
  %v144 = vmul.f32 %v142, %v110
  %v145 = vadd.f32 %v136, %v144
  %v146 = vld [vmem:[%s6] sm:$0x1]
  %v148 = vlaneseq
  %v149 = vshrl.u32 %v148, 7
  %v150 = vsub.s32 0, %v149
  %v151 = vrot.slane %v146, %v150
  %v153 = vadd.f32 %v145, %v151
  %vm154 = vcmp.ge.f32.partialorder %v135, 0.0
  %v155 = vstv %s32
  %v156 = vmul.f32 %v155, %v135
  %v157 = vsel %vm154, %v135, %v156
  %158 = vst [vmem:[%s8] sm:$0x3] %v157
  %vm159 = vcmp.ge.f32.partialorder %v153, 0.0
  %v160 = vmul.f32 %v155, %v153
  %v161 = vsel %vm159, %v153, %v160
  %162 = vst [vmem:[%s9] sm:$0x3] %v161
  // Predicated region
  $region34: #{_lambda_.20} parent=0 // pred_check
    _
  $region35: #{_lambda_.20} parent=0 // pred_check_branch
    %164 = sbr.rel (0) target = $region37
  $region36: #{_lambda_.20} parent=0 // pred_region
    _
  $region37: #{_lambda_.20} parent=0 // pred_fallthru
    _
  // Predicated region
  $region38: #{_lambda_.20} parent=0 // pred_check
    _
  $region39: #{_lambda_.20} parent=0 // pred_check_branch
    %166 = sbr.rel (0) target = $region41
  $region40: #{_lambda_.20} parent=0 // pred_region
    _
  $region41: #{_lambda_.20} parent=0 // pred_fallthru
    _
  // Predicated region
  $region42: #{_lambda_.20} parent=0 // pred_check
    _
  $region43: #{_lambda_.20} parent=0 // pred_check_branch
    %168 = sbr.rel (0) target = $region45
  $region44: #{_lambda_.20} parent=0 // pred_region
    _
  $region45: #{_lambda_.20} parent=0 // pred_fallthru
    _
  // Predicated region
  $region46: #{_lambda_.20} parent=0 // pred_check
    _
  $region47: #{_lambda_.20} parent=0 // pred_check_branch
    %170 = sbr.rel (0) target = $region49
  $region48: #{_lambda_.20} parent=0 // pred_region
    _
  $region49: #{_lambda_.20} parent=0 // pred_fallthru
    _

// kernel: _lambda_.21
$region0: #{_lambda_.21}
  #allocation0 [shape = 'u32[]', space=smem, size = 0x4, offset = 0x4, fixed_abs, tag = 'smem constant byte address 0x4 - core index']
  #allocation1 [shape = 'u32[144,128]{1,0:T(1,128)}', space=vmem, size = 0x12000, scoped, tag = 'internal scratch']
  %s0 = inlined_call_operand.vmem [shape: bf16[16,16], index: 0, kind: input, shape index: {}]
  %s1 = inlined_call_operand.vmem [shape: bf16[16,256], index: 1, kind: input, shape index: {}]
  %s2 = inlined_call_operand.vmem [shape: f32[16,1], index: 2, kind: input, shape index: {}]
  %s3 = inlined_call_operand.vmem [shape: f32[8,256], index: 3, kind: output, shape index: {0}]
  %s4 = inlined_call_operand.vmem [shape: f32[8,256], index: 4, kind: output, shape index: {1}]
  %5 = xla_tuple %s3, %s4
  %s6 = sld [smem:[#allocation0]]
  $region30: #{_lambda_.21} parent=0
    _
  %s8 = ssub.s32 1, %s6
  %s9 = scalar_select 0, %s8, %s6
  // Predicated region
  $region2: #{_lambda_.21} parent=0 // pred_check
    _
  $region3: #{_lambda_.21} parent=0 // pred_check_branch
    %11 = sbr.rel (0) target = $region5
  $region4: #{_lambda_.21} parent=0 // pred_region
    _
  $region5: #{_lambda_.21} parent=0 // pred_fallthru
    _
  // Predicated region
  $region6: #{_lambda_.21} parent=0 // pred_check
    _
  $region7: #{_lambda_.21} parent=0 // pred_check_branch
    %13 = sbr.rel (0) target = $region9
  $region8: #{_lambda_.21} parent=0 // pred_region
    _
  $region9: #{_lambda_.21} parent=0 // pred_fallthru
    _
  // Predicated region
  $region10: #{_lambda_.21} parent=0 // pred_check
    _
  $region11: #{_lambda_.21} parent=0 // pred_check_branch
    %15 = sbr.rel (0) target = $region13
  $region12: #{_lambda_.21} parent=0 // pred_region
    _
  $region13: #{_lambda_.21} parent=0 // pred_fallthru
    _
  %v17 = vld [vmem:[%s0] sm:$0xf]
  %v18 = vld [vmem:[%s0 + $0x4] sm:$0xf]
  %v19 = vld [vmem:[%s1] sm:$0xff]
  %v20 = vld [vmem:[%s1 + $0x8] sm:$0xff]
  %v21 = vld [vmem:[%s2] sm:$0xff]
  %v22 = vld [vmem:[%s2 + $0x8] sm:$0xff]
  %24 = vset.pattern.permute.xlu0 0
  %25 = vperm.xlu0 %24, %v21
  %v26 = vpop.permute.xlu0 %25
  %29 = vset.pattern.permute.xlu0 0
  %30 = vperm.xlu0 %29, %v22
  %v31 = vpop.permute.xlu0 %30
  %v35 = vunpack.c.l.b16 %v17
  %v36 = vunpack.c.l.b16 %v18
  %v37 = vpack.c.b16 %v36, %v35
  %v40 = vunpack.c.l.b16 %v19
  %v41 = vunpack.c.h.b16 %v19
  %v42 = vunpack.c.l.b16 %v20
  %v43 = vunpack.c.h.b16 %v20
  %v44 = vpack.c.b16 %v42, %v40
  %v45 = vpack.c.b16 %v43, %v41
  %vm48 = vcmask 130048
  %v50 = vsel %vm48, %v37, 0
  %52 = vmatprep.subr.bf16.mxu0 0
  %53 = vmatpush1.bf16.msra.mxu0 0
  %54 = vmatprep.subr.bf16.mxu0 0
  %55 = vmatpush1.bf16.msra.mxu0 0
  %56 = vmatprep.subr.bf16.mxu0 0
  %57 = vmatpush1.bf16.msra.mxu0 0
  %58 = vmatprep.subr.bf16.mxu0 0
  %59 = vmatpush1.bf16.msra.mxu0 0
  %60 = vmatprep.subr.bf16.mxu0 0
  %61 = vmatpush1.bf16.msra.mxu0 0
  %62 = vmatprep.subr.bf16.mxu0 0
  %63 = vmatpush1.bf16.msra.mxu0 0
  %64 = vmatprep.subr.bf16.mxu0 0
  %65 = vmatpush1.bf16.msra.mxu0 0
  %66 = vmatprep.subr.bf16.mxu0 %v45
  %67 = vmatpush1.bf16.msra.mxu0 %v44
  %68 = vmatprep.subr.bf16.mxu0 0
  %69 = vmatpush2.bf16.msra.mxu0 0
  %70 = vmatprep.subr.bf16.mxu0 0
  %71 = vmatpush2.bf16.msra.mxu0 0
  %72 = vmatprep.subr.bf16.mxu0 0
  %73 = vmatpush2.bf16.msra.mxu0 0
  %74 = vmatprep.subr.bf16.mxu0 0
  %75 = vmatpush2.bf16.msra.mxu0 0
  %76 = vmatprep.subr.bf16.mxu0 0
  %77 = vmatpush2.bf16.msra.mxu0 0
  %78 = vmatprep.subr.bf16.mxu0 0
  %79 = vmatpush2.bf16.msra.mxu0 0
  %80 = vmatprep.subr.bf16.mxu0 0
  %81 = vmatpush2.bf16.msra.mxu0 0
  %82 = vmatprep.subr.bf16.mxu0 0
  %83 = vmatpush2.bf16.msra.mxu0 0
  %84 = vmatprep.mubr.bf16.mxu0 0
  %85 = vmatmul.mubr.bf16.gmra.mxu0 %v50
  %v86 = vpop.f32.mrf.mxu0
  %v87 = vadd.f32 %v26, %v86
  %v88 = vpop.f32.mrf.mxu0
  %v89 = vadd.f32 %v26, %v88
  %v90 = vpop.f32.mrf.mxu0
  %v91 = vadd.f32 %v31, %v90
  %v92 = vpop.f32.mrf.mxu0
  %v93 = vadd.f32 %v31, %v92
  %94 = vdwg.mxu0
  %v95 = vtanh.pop %v87
  %v96 = vtanh.pop %v89
  %v97 = vtanh.pop %v91
  %v98 = vtanh.pop %v93
  %99 = vst [vmem:[%s3] sm:$0xff] %v95
  %100 = vst [vmem:[%s3 + $0x8] sm:$0xff] %v96
  %101 = vst [vmem:[%s4] sm:$0xff] %v97
  %102 = vst [vmem:[%s4 + $0x8] sm:$0xff] %v98
  // Predicated region
  $region14: #{_lambda_.21} parent=0 // pred_check
    _
  $region15: #{_lambda_.21} parent=0 // pred_check_branch
    %104 = sbr.rel (0) target = $region17
  $region16: #{_lambda_.21} parent=0 // pred_region
    _
  $region17: #{_lambda_.21} parent=0 // pred_fallthru
    _
  // Predicated region
  $region18: #{_lambda_.21} parent=0 // pred_check
    _
  $region19: #{_lambda_.21} parent=0 // pred_check_branch
    %106 = sbr.rel (0) target = $region21
  $region20: #{_lambda_.21} parent=0 // pred_region
    _
  $region21: #{_lambda_.21} parent=0 // pred_fallthru
    _
  // Predicated region
  $region22: #{_lambda_.21} parent=0 // pred_check
    _
  $region23: #{_lambda_.21} parent=0 // pred_check_branch
    %108 = sbr.rel (0) target = $region25
  $region24: #{_lambda_.21} parent=0 // pred_region
    _
  $region25: #{_lambda_.21} parent=0 // pred_fallthru
    _
  // Predicated region
  $region26: #{_lambda_.21} parent=0 // pred_check
    _
  $region27: #{_lambda_.21} parent=0 // pred_check_branch
    %110 = sbr.rel (0) target = $region29
  $region28: #{_lambda_.21} parent=0 // pred_region
    _
  $region29: #{_lambda_.21} parent=0 // pred_fallthru
    _

</llo_original>
